<compile_context>
chip_gen: v5e
topology: v5e:2x2
jax: 0.10.0
libtpu: 0.0.40
codegen_flags: <defaults>
</compile_context>

<pallas_src>
import functools

import jax
import jax.numpy as jnp
from jax.experimental import pallas as pl
from jax.experimental.pallas import tpu as pltpu


def _round_up(x, m):
    return (x + m - 1) // m * m


# ----------------------------------------------------------------------------
# Kernel A: im2col-free conv (+bias) + per-image per-channel sum / sum-of-squares
# ----------------------------------------------------------------------------
def _conv_stats_kernel(x_ref, w_ref, b_ref, mask_ref, o_ref, sum_ref, sq_ref,
                       *, ksize_h, ksize_w, wp, p_out, compute_dtype):
    """One grid step == one image.

    x_ref:    (1, P_pad, Cin_p)      f32 flattened padded image (+ zero tail)
    w_ref:    (KH*KW, Cin_p, Cout_p) compute_dtype
    b_ref:    (1, Cout_p)            f32
    mask_ref: (P_out, 1)             f32, 1.0 where the pixel is a real conv output
    o_ref:    (1, P_out, Cout_p)     f32 conv+bias for every padded pixel position
    sum_ref:  (1, 1, Cout_p)         f32 per-image masked channel sum
    sq_ref:   (1, 1, Cout_p)         f32 per-image masked channel sum of squares
    """
    # K-reduction over the KH*KW taps.  Each tap is a statically shifted contiguous
    # slice of the flattened image -> (P_out, Cin_p) @ (Cin_p, Cout_p) on the MXU,
    # accumulated in f32 directly into the VMEM-resident output block.
    for i in range(ksize_h):
        for j in range(ksize_w):
            shift = i * wp + j
            lhs = x_ref[0, shift:shift + p_out, :].astype(compute_dtype)
            rhs = w_ref[i * ksize_w + j]
            d = jnp.dot(lhs, rhs, preferred_element_type=jnp.float32)
            if i == 0 and j == 0:
                o_ref[0] = d
            else:
                o_ref[0] = o_ref[0] + d

    y = o_ref[0] + b_ref[...]                     # (P_out, Cout_p) f32
    o_ref[0] = y

    # BatchNorm batch statistics (training mode): only real output pixels count.
    ym = y * mask_ref[...]                        # zero out junk rows
    sum_ref[0] = jnp.sum(ym, axis=0, keepdims=True)
    sq_ref[0] = jnp.sum(ym * y, axis=0, keepdims=True)


# ----------------------------------------------------------------------------
# Kernel B: fused BatchNorm affine (precomputed scale/shift) + ReLU (lane-dense)
# ----------------------------------------------------------------------------
def _bn_relu_kernel(x_ref, scale_ref, shift_ref, o_ref):
    o_ref[0] = jnp.maximum(x_ref[0] * scale_ref[...] + shift_ref[...], 0.0)


@functools.partial(jax.jit, static_argnames=("stride", "padding", "compute_dtype"))
def conv_block_forward(x_nchw, conv_w, conv_b, bn_gamma, bn_beta,
                       *, stride=1, padding=0, eps=1e-5,
                       compute_dtype=jnp.bfloat16):
    """Forward of ConvBlock: relu(batchnorm(conv2d(x))).  x is NCHW, output NCHW."""
    if stride != 1:
        # TODO(synk): general stride needs strided window reads or im2col fallback.
        raise NotImplementedError("fused Pallas ConvBlock supports stride=1 only")

    n, cin, h, w = x_nchw.shape
    cout, _, kh, kw = conv_w.shape

    hp, wp = h + 2 * padding, w + 2 * padding
    oh, ow = hp - kh + 1, wp - kw + 1
    assert oh > 0 and ow > 0

    cin_p = _round_up(cin, 8)                 # sublane-friendly contraction dim
    cout_p = _round_up(cout, 128)             # lane-dense output channels
    p_img = hp * wp                           # pixels per padded image
    p_out = _round_up(p_img, 8)               # rows of the "wide" conv output
    shift_max = (kh - 1) * wp + (kw - 1)
    p_pad = _round_up(p_out + shift_max, 8)   # flattened image + tail for shifts

    # ---- host-side layout prep (small tensors only; no im2col blow-up) ----
    x_nhwc = jnp.transpose(x_nchw.astype(jnp.float32), (0, 2, 3, 1))
    x_sp = jnp.pad(x_nhwc, ((0, 0), (padding, padding), (padding, padding),
                            (0, cin_p - cin)))
    x_flat = x_sp.reshape(n, p_img, cin_p)
    x_flat = jnp.pad(x_flat, ((0, 0), (0, p_pad - p_img), (0, 0)))

    # weights: (Cout, Cin, KH, KW) -> (KH*KW, Cin_p, Cout_p), bf16 for the MXU.
    w_k = jnp.transpose(conv_w.astype(jnp.float32), (2, 3, 1, 0))
    w_k = jnp.pad(w_k, ((0, 0), (0, 0), (0, cin_p - cin), (0, cout_p - cout)))
    w_k = w_k.reshape(kh * kw, cin_p, cout_p).astype(compute_dtype)
    b_p = jnp.pad(conv_b.astype(jnp.float32), (0, cout_p - cout)).reshape(1, cout_p)

    # validity mask over the "wide" output rows (p = oh'*WP + ow').
    p_idx = jnp.arange(p_out, dtype=jnp.int32)
    valid = ((p_idx % wp) < ow) & ((p_idx // wp) < oh)
    mask = valid.astype(jnp.float32).reshape(p_out, 1)

    kernel_a = functools.partial(_conv_stats_kernel, ksize_h=kh, ksize_w=kw,
                                 wp=wp, p_out=p_out, compute_dtype=compute_dtype)

    conv_out, sum_n, sq_n = pl.pallas_call(
        kernel_a,
        out_shape=(
            jax.ShapeDtypeStruct((n, p_out, cout_p), jnp.float32),
            jax.ShapeDtypeStruct((n, 1, cout_p), jnp.float32),
            jax.ShapeDtypeStruct((n, 1, cout_p), jnp.float32),
        ),
        grid=(n,),
        in_specs=[
            pl.BlockSpec((1, p_pad, cin_p), lambda b: (b, 0, 0)),
            pl.BlockSpec((kh * kw, cin_p, cout_p), lambda b: (0, 0, 0)),
            pl.BlockSpec((1, cout_p), lambda b: (0, 0)),
            pl.BlockSpec((p_out, 1), lambda b: (0, 0)),
        ],
        out_specs=(
            pl.BlockSpec((1, p_out, cout_p), lambda b: (b, 0, 0)),
            pl.BlockSpec((1, 1, cout_p), lambda b: (b, 0, 0)),
            pl.BlockSpec((1, 1, cout_p), lambda b: (b, 0, 0)),
        ),
        compiler_params=pltpu.CompilerParams(
            dimension_semantics=("parallel",)),   # per-image stats -> megacore OK
    )(x_flat, w_k, b_p, mask)

    # ---- BatchNorm batch statistics (training-mode, biased variance) ----
    count = jnp.float32(n * oh * ow)
    ch_sum = jnp.sum(sum_n, axis=(0, 1))                      # (Cout_p,)
    ch_sq = jnp.sum(sq_n, axis=(0, 1))                        # (Cout_p,)
    mean = ch_sum / count
    var = jnp.maximum(ch_sq / count - mean * mean, 0.0)       # clamp cancellation
    inv_std = jax.lax.rsqrt(var + jnp.float32(eps))
    gamma_p = jnp.pad(bn_gamma.astype(jnp.float32), (0, cout_p - cout),
                      constant_values=1.0)
    beta_p = jnp.pad(bn_beta.astype(jnp.float32), (0, cout_p - cout))
    scale = (gamma_p * inv_std).reshape(1, cout_p)
    shift = (beta_p - mean * gamma_p * inv_std).reshape(1, cout_p)

    y_full = pl.pallas_call(
        _bn_relu_kernel,
        out_shape=jax.ShapeDtypeStruct((n, p_out, cout_p), jnp.float32),
        grid=(n,),
        in_specs=[
            pl.BlockSpec((1, p_out, cout_p), lambda b: (b, 0, 0)),
            pl.BlockSpec((1, cout_p), lambda b: (0, 0)),
            pl.BlockSpec((1, cout_p), lambda b: (0, 0)),
        ],
        out_specs=pl.BlockSpec((1, p_out, cout_p), lambda b: (b, 0, 0)),
        compiler_params=pltpu.CompilerParams(
            dimension_semantics=("parallel",)),
    )(conv_out, scale, shift)

    # ---- extract the valid pixels / channels and return NCHW ----
    y = y_full[:, :oh * wp, :].reshape(n, oh, wp, cout_p)[:, :, :ow, :cout]
    return jnp.transpose(y, (0, 3, 1, 2))


def _reference(x_nchw, conv_w, conv_b, bn_gamma, bn_beta, *, stride, padding, eps=1e-5):
    """Pure-JAX reference (PyTorch training-mode BN semantics)."""
    conv = jax.lax.conv_general_dilated(
        x_nchw, conv_w, window_strides=(stride, stride),
        padding=[(padding, padding), (padding, padding)],
        dimension_numbers=("NCHW", "OIHW", "NCHW"))
    conv = conv + conv_b.reshape(1, -1, 1, 1)
    mean = jnp.mean(conv, axis=(0, 2, 3), keepdims=True)
    var = jnp.mean((conv - mean) ** 2, axis=(0, 2, 3), keepdims=True)
    bn = (conv - mean) * jax.lax.rsqrt(var + eps)
    bn = bn * bn_gamma.reshape(1, -1, 1, 1) + bn_beta.reshape(1, -1, 1, 1)
    return jnp.maximum(bn, 0.0)


if __name__ == "__main__":
    key = jax.random.PRNGKey(0)
    k1, k2, k3 = jax.random.split(key, 3)

    # Small shapes: N=2, Cin=4, H=W=16, Cout=8, kernel=3, stride=1, padding=1.
    N, Cin, H, W = 2, 4, 16, 16
    Cout, KH, KW = 8, 3, 3
    stride, padding = 1, 1

    x = jax.random.normal(k1, (N, Cin, H, W), dtype=jnp.float32)
    conv_w = 0.1 * jax.random.normal(k2, (Cout, Cin, KH, KW), dtype=jnp.float32)
    conv_b = 0.05 * jax.random.normal(k3, (Cout,), dtype=jnp.float32)
    bn_gamma = jnp.ones((Cout,), dtype=jnp.float32)   # PyTorch BatchNorm2d default init
    bn_beta = jnp.zeros((Cout,), dtype=jnp.float32)

    ref = _reference(x, conv_w, conv_b, bn_gamma, bn_beta,
                     stride=stride, padding=padding)

    # Strict correctness check with f32 MXU operands.
    out_f32 = conv_block_forward(x, conv_w, conv_b, bn_gamma, bn_beta,
                                 stride=stride, padding=padding,
                                 compute_dtype=jnp.float32)
    out_f32 = jax.block_until_ready(out_f32)
    assert out_f32.shape == (N, Cout, H, W)
    assert jnp.allclose(out_f32, ref, rtol=1e-4, atol=1e-4), "f32 mismatch vs reference"

    # Fast path: bf16 MXU operands, f32 accumulation (looser tolerance for bf16 inputs).
    out_bf16 = conv_block_forward(x, conv_w, conv_b, bn_gamma, bn_beta,
                                  stride=stride, padding=padding,
                                  compute_dtype=jnp.bfloat16)
    out_bf16 = jax.block_until_ready(out_bf16)
    assert out_bf16.shape == (N, Cout, H, W)
    assert jnp.allclose(out_bf16, ref, rtol=5e-2, atol=5e-2), "bf16 mismatch vs reference"

    print("KERNEL_OK")
</pallas_src>

<mosaic_0001>
module attributes {stable_mosaic.version = 11 : i64} {
  func.func @_bn_relu_kernel(%arg0: i32, %arg1: memref<1x328x128xf32, #tpu.memory_space<vmem>>, %arg2: memref<1x128xf32, #tpu.memory_space<vmem>>, %arg3: memref<1x128xf32, #tpu.memory_space<vmem>>, %arg4: memref<1x328x128xf32, #tpu.memory_space<vmem>>) attributes {dimension_semantics = [#tpu.dimension_semantics<parallel>], iteration_bounds = array<i64: 2>, scalar_prefetch = 0 : i64, scratch_operands = 0 : i64, tpu.core_type = #tpu.core_type<tc>, window_params = [{transform_indices = @transform_0, window_bounds = array<i64: 1, 328, 128>}, {pipeline_mode = #tpu.pipeline_mode<synchronous>, transform_indices = @transform_1, window_bounds = array<i64: 1, 128>}, {pipeline_mode = #tpu.pipeline_mode<synchronous>, transform_indices = @transform_2, window_bounds = array<i64: 1, 128>}, {transform_indices = @transform_3, window_bounds = array<i64: 1, 328, 128>}]} {
    %c0 = arith.constant 0 : index
    %c0_0 = arith.constant 0 : index
    %c0_1 = arith.constant 0 : index
    %0 = vector.load %arg1[%c0, %c0_0, %c0_1] : memref<1x328x128xf32, #tpu.memory_space<vmem>>, vector<1x328x128xf32>
    %1 = vector.shape_cast %0 : vector<1x328x128xf32> to vector<328x128xf32>
    %c0_2 = arith.constant 0 : index
    %c0_3 = arith.constant 0 : index
    %2 = vector.load %arg2[%c0_2, %c0_3] : memref<1x128xf32, #tpu.memory_space<vmem>>, vector<1x128xf32>
    %3 = vector.broadcast %2 : vector<1x128xf32> to vector<328x128xf32>
    %4 = arith.mulf %1, %3 : vector<328x128xf32>
    %c0_4 = arith.constant 0 : index
    %c0_5 = arith.constant 0 : index
    %5 = vector.load %arg3[%c0_4, %c0_5] : memref<1x128xf32, #tpu.memory_space<vmem>>, vector<1x128xf32>
    %6 = vector.broadcast %5 : vector<1x128xf32> to vector<328x128xf32>
    %7 = arith.addf %4, %6 : vector<328x128xf32>
    %cst = arith.constant 0.000000e+00 : f32
    %8 = vector.broadcast %cst : f32 to vector<328x128xf32>
    %9 = arith.maximumf %7, %8 : vector<328x128xf32>
    %c0_6 = arith.constant 0 : index
    %c0_7 = arith.constant 0 : index
    %c0_8 = arith.constant 0 : index
    %10 = vector.load %arg4[%c0_6, %c0_7, %c0_8] : memref<1x328x128xf32, #tpu.memory_space<vmem>>, vector<1x328x128xf32>
    %11 = vector.shape_cast %10 : vector<1x328x128xf32> to vector<328x128xf32>
    %12 = vector.shape_cast %9 : vector<328x128xf32> to vector<1x328x128xf32>
    tpu.vector_store %arg4[%c0_6, %c0_7, %c0_8], %12 {strides = array<i32>} : memref<1x328x128xf32, #tpu.memory_space<vmem>>, vector<1x328x128xf32>,
    return
  }
  func.func @transform_0(%arg0: i32) -> (i32, i32, i32) {
    %c0_i32 = arith.constant 0 : i32
    %c0_i32_0 = arith.constant 0 : i32
    %c0_i32_1 = arith.constant 0 : i32
    return %arg0, %c0_i32, %c0_i32_0 : i32, i32, i32
  }
  func.func @transform_1(%arg0: i32) -> (i32, i32) {
    %c0_i32 = arith.constant 0 : i32
    %c0_i32_0 = arith.constant 0 : i32
    %c0_i32_1 = arith.constant 0 : i32
    return %c0_i32, %c0_i32_0 : i32, i32
  }
  func.func @transform_2(%arg0: i32) -> (i32, i32) {
    %c0_i32 = arith.constant 0 : i32
    %c0_i32_0 = arith.constant 0 : i32
    %c0_i32_1 = arith.constant 0 : i32
    return %c0_i32, %c0_i32_0 : i32, i32
  }
  func.func @transform_3(%arg0: i32) -> (i32, i32, i32) {
    %c0_i32 = arith.constant 0 : i32
    %c0_i32_0 = arith.constant 0 : i32
    %c0_i32_1 = arith.constant 0 : i32
    return %arg0, %c0_i32, %c0_i32_0 : i32, i32, i32
  }
}

module attributes {stable_mosaic.version = 11 : i64} {
  func.func @_conv_stats_kernel(%arg0: i32, %arg1: memref<1x368x8xf32, #tpu.memory_space<vmem>>, %arg2: memref<9x8x128xf32, #tpu.memory_space<vmem>>, %arg3: memref<1x128xf32, #tpu.memory_space<vmem>>, %arg4: memref<328x1xf32, #tpu.memory_space<vmem>>, %arg5: memref<1x328x128xf32, #tpu.memory_space<vmem>>, %arg6: memref<1x1x128xf32, #tpu.memory_space<vmem>>, %arg7: memref<1x1x128xf32, #tpu.memory_space<vmem>>) attributes {dimension_semantics = [#tpu.dimension_semantics<parallel>], iteration_bounds = array<i64: 2>, scalar_prefetch = 0 : i64, scratch_operands = 0 : i64, tpu.core_type = #tpu.core_type<tc>, window_params = [{transform_indices = @transform_0, window_bounds = array<i64: 1, 368, 8>}, {pipeline_mode = #tpu.pipeline_mode<synchronous>, transform_indices = @transform_1, window_bounds = array<i64: 9, 8, 128>}, {pipeline_mode = #tpu.pipeline_mode<synchronous>, transform_indices = @transform_2, window_bounds = array<i64: 1, 128>}, {pipeline_mode = #tpu.pipeline_mode<synchronous>, transform_indices = @transform_3, window_bounds = array<i64: 328, 1>}, {transform_indices = @transform_4, window_bounds = array<i64: 1, 328, 128>}, {transform_indices = @transform_5, window_bounds = array<i64: 1, 1, 128>}, {transform_indices = @transform_6, window_bounds = array<i64: 1, 1, 128>}]} {
    %c0 = arith.constant 0 : index
    %c0_0 = arith.constant 0 : index
    %c0_1 = arith.constant 0 : index
    %0 = vector.load %arg1[%c0, %c0_0, %c0_1] : memref<1x368x8xf32, #tpu.memory_space<vmem>>, vector<1x328x8xf32>
    %1 = vector.shape_cast %0 : vector<1x328x8xf32> to vector<328x8xf32>
    %c0_2 = arith.constant 0 : index
    %c0_3 = arith.constant 0 : index
    %c0_4 = arith.constant 0 : index
    %2 = vector.load %arg2[%c0_2, %c0_3, %c0_4] : memref<9x8x128xf32, #tpu.memory_space<vmem>>, vector<1x8x128xf32>
    %3 = vector.shape_cast %2 : vector<1x8x128xf32> to vector<8x128xf32>
    %cst = arith.constant dense<0.000000e+00> : vector<328x128xf32>
    %4 = tpu.matmul %1, %3, %cst {dimension_numbers = #tpu.dot_dimension_numbers<[1], [0], [0], [1], [0, 0, 1, 1], [], []>} : vector<328x8xf32>, vector<8x128xf32>, vector<328x128xf32> -> vector<328x128xf32>
    %c0_5 = arith.constant 0 : index
    %c0_6 = arith.constant 0 : index
    %c0_7 = arith.constant 0 : index
    %5 = vector.load %arg5[%c0_5, %c0_6, %c0_7] : memref<1x328x128xf32, #tpu.memory_space<vmem>>, vector<1x328x128xf32>
    %6 = vector.shape_cast %5 : vector<1x328x128xf32> to vector<328x128xf32>
    %7 = vector.shape_cast %4 : vector<328x128xf32> to vector<1x328x128xf32>
    tpu.vector_store %arg5[%c0_5, %c0_6, %c0_7], %7 {strides = array<i32>} : memref<1x328x128xf32, #tpu.memory_space<vmem>>, vector<1x328x128xf32>,
    %c0_8 = arith.constant 0 : index
    %c1 = arith.constant 1 : index
    %c0_9 = arith.constant 0 : index
    %8 = vector.load %arg1[%c0_8, %c1, %c0_9] : memref<1x368x8xf32, #tpu.memory_space<vmem>>, vector<1x328x8xf32>
    %9 = vector.shape_cast %8 : vector<1x328x8xf32> to vector<328x8xf32>
    %c1_10 = arith.constant 1 : index
    %c0_11 = arith.constant 0 : index
    %c0_12 = arith.constant 0 : index
    %10 = vector.load %arg2[%c1_10, %c0_11, %c0_12] : memref<9x8x128xf32, #tpu.memory_space<vmem>>, vector<1x8x128xf32>
    %11 = vector.shape_cast %10 : vector<1x8x128xf32> to vector<8x128xf32>
    %cst_13 = arith.constant dense<0.000000e+00> : vector<328x128xf32>
    %12 = tpu.matmul %9, %11, %cst_13 {dimension_numbers = #tpu.dot_dimension_numbers<[1], [0], [0], [1], [0, 0, 1, 1], [], []>} : vector<328x8xf32>, vector<8x128xf32>, vector<328x128xf32> -> vector<328x128xf32>
    %c0_14 = arith.constant 0 : index
    %c0_15 = arith.constant 0 : index
    %c0_16 = arith.constant 0 : index
    %13 = vector.load %arg5[%c0_14, %c0_15, %c0_16] : memref<1x328x128xf32, #tpu.memory_space<vmem>>, vector<1x328x128xf32>
    %14 = vector.shape_cast %13 : vector<1x328x128xf32> to vector<328x128xf32>
    %15 = arith.addf %14, %12 : vector<328x128xf32>
    %c0_17 = arith.constant 0 : index
    %c0_18 = arith.constant 0 : index
    %c0_19 = arith.constant 0 : index
    %16 = vector.load %arg5[%c0_17, %c0_18, %c0_19] : memref<1x328x128xf32, #tpu.memory_space<vmem>>, vector<1x328x128xf32>
    %17 = vector.shape_cast %16 : vector<1x328x128xf32> to vector<328x128xf32>
    %18 = vector.shape_cast %15 : vector<328x128xf32> to vector<1x328x128xf32>
    tpu.vector_store %arg5[%c0_17, %c0_18, %c0_19], %18 {strides = array<i32>} : memref<1x328x128xf32, #tpu.memory_space<vmem>>, vector<1x328x128xf32>,
    %c0_20 = arith.constant 0 : index
    %c2 = arith.constant 2 : index
    %c0_21 = arith.constant 0 : index
    %19 = vector.load %arg1[%c0_20, %c2, %c0_21] : memref<1x368x8xf32, #tpu.memory_space<vmem>>, vector<1x328x8xf32>
    %20 = vector.shape_cast %19 : vector<1x328x8xf32> to vector<328x8xf32>
    %c2_22 = arith.constant 2 : index
    %c0_23 = arith.constant 0 : index
    %c0_24 = arith.constant 0 : index
    %21 = vector.load %arg2[%c2_22, %c0_23, %c0_24] : memref<9x8x128xf32, #tpu.memory_space<vmem>>, vector<1x8x128xf32>
    %22 = vector.shape_cast %21 : vector<1x8x128xf32> to vector<8x128xf32>
    %cst_25 = arith.constant dense<0.000000e+00> : vector<328x128xf32>
    %23 = tpu.matmul %20, %22, %cst_25 {dimension_numbers = #tpu.dot_dimension_numbers<[1], [0], [0], [1], [0, 0, 1, 1], [], []>} : vector<328x8xf32>, vector<8x128xf32>, vector<328x128xf32> -> vector<328x128xf32>
    %c0_26 = arith.constant 0 : index
    %c0_27 = arith.constant 0 : index
    %c0_28 = arith.constant 0 : index
    %24 = vector.load %arg5[%c0_26, %c0_27, %c0_28] : memref<1x328x128xf32, #tpu.memory_space<vmem>>, vector<1x328x128xf32>
    %25 = vector.shape_cast %24 : vector<1x328x128xf32> to vector<328x128xf32>
    %26 = arith.addf %25, %23 : vector<328x128xf32>
    %c0_29 = arith.constant 0 : index
    %c0_30 = arith.constant 0 : index
    %c0_31 = arith.constant 0 : index
    %27 = vector.load %arg5[%c0_29, %c0_30, %c0_31] : memref<1x328x128xf32, #tpu.memory_space<vmem>>, vector<1x328x128xf32>
    %28 = vector.shape_cast %27 : vector<1x328x128xf32> to vector<328x128xf32>
    %29 = vector.shape_cast %26 : vector<328x128xf32> to vector<1x328x128xf32>
    tpu.vector_store %arg5[%c0_29, %c0_30, %c0_31], %29 {strides = array<i32>} : memref<1x328x128xf32, #tpu.memory_space<vmem>>, vector<1x328x128xf32>,
    %c0_32 = arith.constant 0 : index
    %c18 = arith.constant 18 : index
    %c0_33 = arith.constant 0 : index
    %30 = vector.load %arg1[%c0_32, %c18, %c0_33] : memref<1x368x8xf32, #tpu.memory_space<vmem>>, vector<1x328x8xf32>
    %31 = vector.shape_cast %30 : vector<1x328x8xf32> to vector<328x8xf32>
    %c3 = arith.constant 3 : index
    %c0_34 = arith.constant 0 : index
    %c0_35 = arith.constant 0 : index
    %32 = vector.load %arg2[%c3, %c0_34, %c0_35] : memref<9x8x128xf32, #tpu.memory_space<vmem>>, vector<1x8x128xf32>
    %33 = vector.shape_cast %32 : vector<1x8x128xf32> to vector<8x128xf32>
    %cst_36 = arith.constant dense<0.000000e+00> : vector<328x128xf32>
    %34 = tpu.matmul %31, %33, %cst_36 {dimension_numbers = #tpu.dot_dimension_numbers<[1], [0], [0], [1], [0, 0, 1, 1], [], []>} : vector<328x8xf32>, vector<8x128xf32>, vector<328x128xf32> -> vector<328x128xf32>
    %c0_37 = arith.constant 0 : index
    %c0_38 = arith.constant 0 : index
    %c0_39 = arith.constant 0 : index
    %35 = vector.load %arg5[%c0_37, %c0_38, %c0_39] : memref<1x328x128xf32, #tpu.memory_space<vmem>>, vector<1x328x128xf32>
    %36 = vector.shape_cast %35 : vector<1x328x128xf32> to vector<328x128xf32>
    %37 = arith.addf %36, %34 : vector<328x128xf32>
    %c0_40 = arith.constant 0 : index
    %c0_41 = arith.constant 0 : index
    %c0_42 = arith.constant 0 : index
    %38 = vector.load %arg5[%c0_40, %c0_41, %c0_42] : memref<1x328x128xf32, #tpu.memory_space<vmem>>, vector<1x328x128xf32>
    %39 = vector.shape_cast %38 : vector<1x328x128xf32> to vector<328x128xf32>
    %40 = vector.shape_cast %37 : vector<328x128xf32> to vector<1x328x128xf32>
    tpu.vector_store %arg5[%c0_40, %c0_41, %c0_42], %40 {strides = array<i32>} : memref<1x328x128xf32, #tpu.memory_space<vmem>>, vector<1x328x128xf32>,
    %c0_43 = arith.constant 0 : index
    %c19 = arith.constant 19 : index
    %c0_44 = arith.constant 0 : index
    %41 = vector.load %arg1[%c0_43, %c19, %c0_44] : memref<1x368x8xf32, #tpu.memory_space<vmem>>, vector<1x328x8xf32>
    %42 = vector.shape_cast %41 : vector<1x328x8xf32> to vector<328x8xf32>
    %c4 = arith.constant 4 : index
    %c0_45 = arith.constant 0 : index
    %c0_46 = arith.constant 0 : index
    %43 = vector.load %arg2[%c4, %c0_45, %c0_46] : memref<9x8x128xf32, #tpu.memory_space<vmem>>, vector<1x8x128xf32>
    %44 = vector.shape_cast %43 : vector<1x8x128xf32> to vector<8x128xf32>
    %cst_47 = arith.constant dense<0.000000e+00> : vector<328x128xf32>
    %45 = tpu.matmul %42, %44, %cst_47 {dimension_numbers = #tpu.dot_dimension_numbers<[1], [0], [0], [1], [0, 0, 1, 1], [], []>} : vector<328x8xf32>, vector<8x128xf32>, vector<328x128xf32> -> vector<328x128xf32>
    %c0_48 = arith.constant 0 : index
    %c0_49 = arith.constant 0 : index
    %c0_50 = arith.constant 0 : index
    %46 = vector.load %arg5[%c0_48, %c0_49, %c0_50] : memref<1x328x128xf32, #tpu.memory_space<vmem>>, vector<1x328x128xf32>
    %47 = vector.shape_cast %46 : vector<1x328x128xf32> to vector<328x128xf32>
    %48 = arith.addf %47, %45 : vector<328x128xf32>
    %c0_51 = arith.constant 0 : index
    %c0_52 = arith.constant 0 : index
    %c0_53 = arith.constant 0 : index
    %49 = vector.load %arg5[%c0_51, %c0_52, %c0_53] : memref<1x328x128xf32, #tpu.memory_space<vmem>>, vector<1x328x128xf32>
    %50 = vector.shape_cast %49 : vector<1x328x128xf32> to vector<328x128xf32>
    %51 = vector.shape_cast %48 : vector<328x128xf32> to vector<1x328x128xf32>
    tpu.vector_store %arg5[%c0_51, %c0_52, %c0_53], %51 {strides = array<i32>} : memref<1x328x128xf32, #tpu.memory_space<vmem>>, vector<1x328x128xf32>,
    %c0_54 = arith.constant 0 : index
    %c20 = arith.constant 20 : index
    %c0_55 = arith.constant 0 : index
    %52 = vector.load %arg1[%c0_54, %c20, %c0_55] : memref<1x368x8xf32, #tpu.memory_space<vmem>>, vector<1x328x8xf32>
    %53 = vector.shape_cast %52 : vector<1x328x8xf32> to vector<328x8xf32>
    %c5 = arith.constant 5 : index
    %c0_56 = arith.constant 0 : index
    %c0_57 = arith.constant 0 : index
    %54 = vector.load %arg2[%c5, %c0_56, %c0_57] : memref<9x8x128xf32, #tpu.memory_space<vmem>>, vector<1x8x128xf32>
    %55 = vector.shape_cast %54 : vector<1x8x128xf32> to vector<8x128xf32>
    %cst_58 = arith.constant dense<0.000000e+00> : vector<328x128xf32>
    %56 = tpu.matmul %53, %55, %cst_58 {dimension_numbers = #tpu.dot_dimension_numbers<[1], [0], [0], [1], [0, 0, 1, 1], [], []>} : vector<328x8xf32>, vector<8x128xf32>, vector<328x128xf32> -> vector<328x128xf32>
    %c0_59 = arith.constant 0 : index
    %c0_60 = arith.constant 0 : index
    %c0_61 = arith.constant 0 : index
    %57 = vector.load %arg5[%c0_59, %c0_60, %c0_61] : memref<1x328x128xf32, #tpu.memory_space<vmem>>, vector<1x328x128xf32>
    %58 = vector.shape_cast %57 : vector<1x328x128xf32> to vector<328x128xf32>
    %59 = arith.addf %58, %56 : vector<328x128xf32>
    %c0_62 = arith.constant 0 : index
    %c0_63 = arith.constant 0 : index
    %c0_64 = arith.constant 0 : index
    %60 = vector.load %arg5[%c0_62, %c0_63, %c0_64] : memref<1x328x128xf32, #tpu.memory_space<vmem>>, vector<1x328x128xf32>
    %61 = vector.shape_cast %60 : vector<1x328x128xf32> to vector<328x128xf32>
    %62 = vector.shape_cast %59 : vector<328x128xf32> to vector<1x328x128xf32>
    tpu.vector_store %arg5[%c0_62, %c0_63, %c0_64], %62 {strides = array<i32>} : memref<1x328x128xf32, #tpu.memory_space<vmem>>, vector<1x328x128xf32>,
    %c0_65 = arith.constant 0 : index
    %c36 = arith.constant 36 : index
    %c0_66 = arith.constant 0 : index
    %63 = vector.load %arg1[%c0_65, %c36, %c0_66] : memref<1x368x8xf32, #tpu.memory_space<vmem>>, vector<1x328x8xf32>
    %64 = vector.shape_cast %63 : vector<1x328x8xf32> to vector<328x8xf32>
    %c6 = arith.constant 6 : index
    %c0_67 = arith.constant 0 : index
    %c0_68 = arith.constant 0 : index
    %65 = vector.load %arg2[%c6, %c0_67, %c0_68] : memref<9x8x128xf32, #tpu.memory_space<vmem>>, vector<1x8x128xf32>
    %66 = vector.shape_cast %65 : vector<1x8x128xf32> to vector<8x128xf32>
    %cst_69 = arith.constant dense<0.000000e+00> : vector<328x128xf32>
    %67 = tpu.matmul %64, %66, %cst_69 {dimension_numbers = #tpu.dot_dimension_numbers<[1], [0], [0], [1], [0, 0, 1, 1], [], []>} : vector<328x8xf32>, vector<8x128xf32>, vector<328x128xf32> -> vector<328x128xf32>
    %c0_70 = arith.constant 0 : index
    %c0_71 = arith.constant 0 : index
    %c0_72 = arith.constant 0 : index
    %68 = vector.load %arg5[%c0_70, %c0_71, %c0_72] : memref<1x328x128xf32, #tpu.memory_space<vmem>>, vector<1x328x128xf32>
    %69 = vector.shape_cast %68 : vector<1x328x128xf32> to vector<328x128xf32>
    %70 = arith.addf %69, %67 : vector<328x128xf32>
    %c0_73 = arith.constant 0 : index
    %c0_74 = arith.constant 0 : index
    %c0_75 = arith.constant 0 : index
    %71 = vector.load %arg5[%c0_73, %c0_74, %c0_75] : memref<1x328x128xf32, #tpu.memory_space<vmem>>, vector<1x328x128xf32>
    %72 = vector.shape_cast %71 : vector<1x328x128xf32> to vector<328x128xf32>
    %73 = vector.shape_cast %70 : vector<328x128xf32> to vector<1x328x128xf32>
    tpu.vector_store %arg5[%c0_73, %c0_74, %c0_75], %73 {strides = array<i32>} : memref<1x328x128xf32, #tpu.memory_space<vmem>>, vector<1x328x128xf32>,
    %c0_76 = arith.constant 0 : index
    %c37 = arith.constant 37 : index
    %c0_77 = arith.constant 0 : index
    %74 = vector.load %arg1[%c0_76, %c37, %c0_77] : memref<1x368x8xf32, #tpu.memory_space<vmem>>, vector<1x328x8xf32>
    %75 = vector.shape_cast %74 : vector<1x328x8xf32> to vector<328x8xf32>
    %c7 = arith.constant 7 : index
    %c0_78 = arith.constant 0 : index
    %c0_79 = arith.constant 0 : index
    %76 = vector.load %arg2[%c7, %c0_78, %c0_79] : memref<9x8x128xf32, #tpu.memory_space<vmem>>, vector<1x8x128xf32>
    %77 = vector.shape_cast %76 : vector<1x8x128xf32> to vector<8x128xf32>
    %cst_80 = arith.constant dense<0.000000e+00> : vector<328x128xf32>
    %78 = tpu.matmul %75, %77, %cst_80 {dimension_numbers = #tpu.dot_dimension_numbers<[1], [0], [0], [1], [0, 0, 1, 1], [], []>} : vector<328x8xf32>, vector<8x128xf32>, vector<328x128xf32> -> vector<328x128xf32>
    %c0_81 = arith.constant 0 : index
    %c0_82 = arith.constant 0 : index
    %c0_83 = arith.constant 0 : index
    %79 = vector.load %arg5[%c0_81, %c0_82, %c0_83] : memref<1x328x128xf32, #tpu.memory_space<vmem>>, vector<1x328x128xf32>
    %80 = vector.shape_cast %79 : vector<1x328x128xf32> to vector<328x128xf32>
    %81 = arith.addf %80, %78 : vector<328x128xf32>
    %c0_84 = arith.constant 0 : index
    %c0_85 = arith.constant 0 : index
    %c0_86 = arith.constant 0 : index
    %82 = vector.load %arg5[%c0_84, %c0_85, %c0_86] : memref<1x328x128xf32, #tpu.memory_space<vmem>>, vector<1x328x128xf32>
    %83 = vector.shape_cast %82 : vector<1x328x128xf32> to vector<328x128xf32>
    %84 = vector.shape_cast %81 : vector<328x128xf32> to vector<1x328x128xf32>
    tpu.vector_store %arg5[%c0_84, %c0_85, %c0_86], %84 {strides = array<i32>} : memref<1x328x128xf32, #tpu.memory_space<vmem>>, vector<1x328x128xf32>,
    %c0_87 = arith.constant 0 : index
    %c38 = arith.constant 38 : index
    %c0_88 = arith.constant 0 : index
    %85 = vector.load %arg1[%c0_87, %c38, %c0_88] : memref<1x368x8xf32, #tpu.memory_space<vmem>>, vector<1x328x8xf32>
    %86 = vector.shape_cast %85 : vector<1x328x8xf32> to vector<328x8xf32>
    %c8 = arith.constant 8 : index
    %c0_89 = arith.constant 0 : index
    %c0_90 = arith.constant 0 : index
    %87 = vector.load %arg2[%c8, %c0_89, %c0_90] : memref<9x8x128xf32, #tpu.memory_space<vmem>>, vector<1x8x128xf32>
    %88 = vector.shape_cast %87 : vector<1x8x128xf32> to vector<8x128xf32>
    %cst_91 = arith.constant dense<0.000000e+00> : vector<328x128xf32>
    %89 = tpu.matmul %86, %88, %cst_91 {dimension_numbers = #tpu.dot_dimension_numbers<[1], [0], [0], [1], [0, 0, 1, 1], [], []>} : vector<328x8xf32>, vector<8x128xf32>, vector<328x128xf32> -> vector<328x128xf32>
    %c0_92 = arith.constant 0 : index
    %c0_93 = arith.constant 0 : index
    %c0_94 = arith.constant 0 : index
    %90 = vector.load %arg5[%c0_92, %c0_93, %c0_94] : memref<1x328x128xf32, #tpu.memory_space<vmem>>, vector<1x328x128xf32>
    %91 = vector.shape_cast %90 : vector<1x328x128xf32> to vector<328x128xf32>
    %92 = arith.addf %91, %89 : vector<328x128xf32>
    %c0_95 = arith.constant 0 : index
    %c0_96 = arith.constant 0 : index
    %c0_97 = arith.constant 0 : index
    %93 = vector.load %arg5[%c0_95, %c0_96, %c0_97] : memref<1x328x128xf32, #tpu.memory_space<vmem>>, vector<1x328x128xf32>
    %94 = vector.shape_cast %93 : vector<1x328x128xf32> to vector<328x128xf32>
    %95 = vector.shape_cast %92 : vector<328x128xf32> to vector<1x328x128xf32>
    tpu.vector_store %arg5[%c0_95, %c0_96, %c0_97], %95 {strides = array<i32>} : memref<1x328x128xf32, #tpu.memory_space<vmem>>, vector<1x328x128xf32>,
    %c0_98 = arith.constant 0 : index
    %c0_99 = arith.constant 0 : index
    %c0_100 = arith.constant 0 : index
    %96 = vector.load %arg5[%c0_98, %c0_99, %c0_100] : memref<1x328x128xf32, #tpu.memory_space<vmem>>, vector<1x328x128xf32>
    %97 = vector.shape_cast %96 : vector<1x328x128xf32> to vector<328x128xf32>
    %c0_101 = arith.constant 0 : index
    %c0_102 = arith.constant 0 : index
    %98 = vector.load %arg3[%c0_101, %c0_102] : memref<1x128xf32, #tpu.memory_space<vmem>>, vector<1x128xf32>
    %99 = vector.broadcast %98 : vector<1x128xf32> to vector<328x128xf32>
    %100 = arith.addf %97, %99 : vector<328x128xf32>
    %c0_103 = arith.constant 0 : index
    %c0_104 = arith.constant 0 : index
    %c0_105 = arith.constant 0 : index
    %101 = vector.load %arg5[%c0_103, %c0_104, %c0_105] : memref<1x328x128xf32, #tpu.memory_space<vmem>>, vector<1x328x128xf32>
    %102 = vector.shape_cast %101 : vector<1x328x128xf32> to vector<328x128xf32>
    %103 = vector.shape_cast %100 : vector<328x128xf32> to vector<1x328x128xf32>
    tpu.vector_store %arg5[%c0_103, %c0_104, %c0_105], %103 {strides = array<i32>} : memref<1x328x128xf32, #tpu.memory_space<vmem>>, vector<1x328x128xf32>,
    %c0_106 = arith.constant 0 : index
    %c0_107 = arith.constant 0 : index
    %104 = vector.load %arg4[%c0_106, %c0_107] : memref<328x1xf32, #tpu.memory_space<vmem>>, vector<328x1xf32>
    %105 = vector.broadcast %104 : vector<328x1xf32> to vector<328x128xf32>
    %106 = arith.mulf %100, %105 : vector<328x128xf32>
    %cst_108 = arith.constant dense<0.000000e+00> : vector<128xf32>
    %107 = vector.multi_reduction <add>, %106, %cst_108 [0] : vector<328x128xf32> to vector<128xf32>
    %108 = vector.shape_cast %107 : vector<128xf32> to vector<1x128xf32>
    %c0_109 = arith.constant 0 : index
    %c0_110 = arith.constant 0 : index
    %c0_111 = arith.constant 0 : index
    %109 = vector.load %arg6[%c0_109, %c0_110, %c0_111] : memref<1x1x128xf32, #tpu.memory_space<vmem>>, vector<1x1x128xf32>
    %110 = vector.shape_cast %109 : vector<1x1x128xf32> to vector<1x128xf32>
    %111 = vector.shape_cast %108 : vector<1x128xf32> to vector<1x1x128xf32>
    tpu.vector_store %arg6[%c0_109, %c0_110, %c0_111], %111 {strides = array<i32>} : memref<1x1x128xf32, #tpu.memory_space<vmem>>, vector<1x1x128xf32>,
    %112 = arith.mulf %106, %100 : vector<328x128xf32>
    %cst_112 = arith.constant dense<0.000000e+00> : vector<128xf32>
    %113 = vector.multi_reduction <add>, %112, %cst_112 [0] : vector<328x128xf32> to vector<128xf32>
    %114 = vector.shape_cast %113 : vector<128xf32> to vector<1x128xf32>
    %c0_113 = arith.constant 0 : index
    %c0_114 = arith.constant 0 : index
    %c0_115 = arith.constant 0 : index
    %115 = vector.load %arg7[%c0_113, %c0_114, %c0_115] : memref<1x1x128xf32, #tpu.memory_space<vmem>>, vector<1x1x128xf32>
    %116 = vector.shape_cast %115 : vector<1x1x128xf32> to vector<1x128xf32>
    %117 = vector.shape_cast %114 : vector<1x128xf32> to vector<1x1x128xf32>
    tpu.vector_store %arg7[%c0_113, %c0_114, %c0_115], %117 {strides = array<i32>} : memref<1x1x128xf32, #tpu.memory_space<vmem>>, vector<1x1x128xf32>,
    return
  }
  func.func @transform_0(%arg0: i32) -> (i32, i32, i32) {
    %c0_i32 = arith.constant 0 : i32
    %c0_i32_0 = arith.constant 0 : i32
    %c0_i32_1 = arith.constant 0 : i32
    return %arg0, %c0_i32, %c0_i32_0 : i32, i32, i32
  }
  func.func @transform_1(%arg0: i32) -> (i32, i32, i32) {
    %c0_i32 = arith.constant 0 : i32
    %c0_i32_0 = arith.constant 0 : i32
    %c0_i32_1 = arith.constant 0 : i32
    %c0_i32_2 = arith.constant 0 : i32
    return %c0_i32, %c0_i32_0, %c0_i32_1 : i32, i32, i32
  }
  func.func @transform_2(%arg0: i32) -> (i32, i32) {
    %c0_i32 = arith.constant 0 : i32
    %c0_i32_0 = arith.constant 0 : i32
    %c0_i32_1 = arith.constant 0 : i32
    return %c0_i32, %c0_i32_0 : i32, i32
  }
  func.func @transform_3(%arg0: i32) -> (i32, i32) {
    %c0_i32 = arith.constant 0 : i32
    %c0_i32_0 = arith.constant 0 : i32
    %c0_i32_1 = arith.constant 0 : i32
    return %c0_i32, %c0_i32_0 : i32, i32
  }
  func.func @transform_4(%arg0: i32) -> (i32, i32, i32) {
    %c0_i32 = arith.constant 0 : i32
    %c0_i32_0 = arith.constant 0 : i32
    %c0_i32_1 = arith.constant 0 : i32
    return %arg0, %c0_i32, %c0_i32_0 : i32, i32, i32
  }
  func.func @transform_5(%arg0: i32) -> (i32, i32, i32) {
    %c0_i32 = arith.constant 0 : i32
    %c0_i32_0 = arith.constant 0 : i32
    %c0_i32_1 = arith.constant 0 : i32
    return %arg0, %c0_i32, %c0_i32_0 : i32, i32, i32
  }
  func.func @transform_6(%arg0: i32) -> (i32, i32, i32) {
    %c0_i32 = arith.constant 0 : i32
    %c0_i32_0 = arith.constant 0 : i32
    %c0_i32_1 = arith.constant 0 : i32
    return %arg0, %c0_i32, %c0_i32_0 : i32, i32, i32
  }
}

</mosaic_0001>

<llo_original>
// kernel: conv_block_forward.3
$region0: #{conv_block_forward.3}
  #allocation0 [shape = 'u32[]', space=smem, size = 0x4, offset = 0x4, fixed_abs, tag = 'smem constant byte address 0x4 - core index']
  #allocation1 [shape = 'u32[72,128]{1,0:T(1,128)}', space=vmem, size = 0x9000, scoped, tag = 'internal scratch']
  %s0 = inlined_call_operand.vmem [shape: f32[2,328,128], index: 0, kind: input, shape index: {}]
  %s1 = inlined_call_operand.vmem [shape: f32[1,128], index: 1, kind: input, shape index: {}]
  %s2 = inlined_call_operand.vmem [shape: f32[1,128], index: 2, kind: input, shape index: {}]
  %s3 = inlined_call_operand.vmem [shape: f32[2,328,128], index: 3, kind: output, shape index: {}]
  %s4 = sld [smem:[#allocation0]]
  $region45: #{conv_block_forward.3} parent=0
    _
  %s6 = ssub.s32 1, %s4
  %s7 = scalar_select 0, %s6, %s4
  loop: start=0, step=1, limit=4
  $region2: #{conv_block_forward.3} parent=0 // loop_pre_header
    _
  $region3: #{conv_block_forward.3} parent=0 // loop_header
    %s9 = sphi 0, %s13
    %p10 = scmp.ge.s32.totalorder %s9, 4
    %s19 = sphi 0, %s21
    %s22 = sphi 0, %s19
    %s23 = sphi 0, %s22
    %s39 = sphi 0, %s23
    %s43 = sphi 0, %s43
    %s45 = sphi 0, %s43
    %s46 = sphi 0, %s45
    %s60 = sphi 0, %s46
    %s64 = sphi 0, %s64
    %s66 = sphi 0, %s64
    %s67 = sphi 0, %s66
    %s81 = sphi 0, %s67
    %s87 = sphi 0, %s89
    %s90 = sphi 0, %s87
    %s91 = sphi 0, %s90
    %s107 = sphi 0, %s91
  $region4: #{conv_block_forward.3} parent=0 // loop_header_branch
    %12 = sbr.rel (%p10) target = $region8
  $region5: #{conv_block_forward.3} parent=0 // loop_body
    %s14 = ssub.s32 %s9, 1
    %s15 = ssub.s32 %s9, 2
    %s16 = sadd.s32 %s9, 1
    %s17 = ssub.s32 %s9, %s16
    %p18 = scmp.eq.s32.totalorder %s17, 0
    %s20 = sadd.s32 %s19, 1
    %s21 = scalar_select %p18, %s19, %s20
    %p24 = pneg %p18
    %p25 = scmp.eq.s32.totalorder %s9, 1
    %p26 = por %p24, %p25
    %p27 = scmp.ne.s32.totalorder %s19, %s22
    %p28 = scmp.eq.s32.totalorder %s9, 0
    %p29 = por %p27, %p28
    %p30 = scmp.ne.s32.totalorder %s19, %s22
    %p31 = scmp.eq.s32.totalorder %s14, 1
    %p32 = por %p30, %p31
    %p33 = scmp.ne.s32.totalorder %s22, %s23
    %p34 = scmp.eq.s32.totalorder %s14, 0
    %p35 = por %p33, %p34
    %p36 = scmp.ne.s32.totalorder %s22, %s23
    %p37 = scmp.eq.s32.totalorder %s15, 1
    %p38 = por %p36, %p37
    %p40 = scmp.ne.s32.totalorder %s23, %s39
    %p41 = scmp.eq.s32.totalorder %s15, 0
    %p42 = por %p40, %p41
    %s44 = sadd.s32 %s43, 1
    %p47 = scmp.eq.s32.totalorder %s9, 1
    %p48 = scmp.ne.s32.totalorder %s43, %s45
    %p49 = scmp.eq.s32.totalorder %s9, 0
    %p50 = por %p48, %p49
    %p51 = scmp.ne.s32.totalorder %s43, %s45
    %p52 = scmp.eq.s32.totalorder %s14, 1
    %p53 = por %p51, %p52
    %p54 = scmp.ne.s32.totalorder %s45, %s46
    %p55 = scmp.eq.s32.totalorder %s14, 0
    %p56 = por %p54, %p55
    %p57 = scmp.ne.s32.totalorder %s45, %s46
    %p58 = scmp.eq.s32.totalorder %s15, 1
    %p59 = por %p57, %p58
    %p61 = scmp.ne.s32.totalorder %s46, %s60
    %p62 = scmp.eq.s32.totalorder %s15, 0
    %p63 = por %p61, %p62
    %s65 = sadd.s32 %s64, 1
    %p68 = scmp.eq.s32.totalorder %s9, 1
    %p69 = scmp.ne.s32.totalorder %s64, %s66
    %p70 = scmp.eq.s32.totalorder %s9, 0
    %p71 = por %p69, %p70
    %p72 = scmp.ne.s32.totalorder %s64, %s66
    %p73 = scmp.eq.s32.totalorder %s14, 1
    %p74 = por %p72, %p73
    %p75 = scmp.ne.s32.totalorder %s66, %s67
    %p76 = scmp.eq.s32.totalorder %s14, 0
    %p77 = por %p75, %p76
    %p78 = scmp.ne.s32.totalorder %s66, %s67
    %p79 = scmp.eq.s32.totalorder %s15, 1
    %p80 = por %p78, %p79
    %p82 = scmp.ne.s32.totalorder %s67, %s81
    %p83 = scmp.eq.s32.totalorder %s15, 0
    %p84 = por %p82, %p83
    %s85 = ssub.s32 %s9, %s16
    %p86 = scmp.eq.s32.totalorder %s85, 0
    %s88 = sadd.s32 %s87, 1
    %s89 = scalar_select %p86, %s87, %s88
    %p92 = pneg %p86
    %p93 = scmp.eq.s32.totalorder %s9, 1
    %p94 = por %p92, %p93
    %p95 = scmp.ne.s32.totalorder %s87, %s90
    %p96 = scmp.eq.s32.totalorder %s9, 0
    %p97 = por %p95, %p96
    %p98 = scmp.ne.s32.totalorder %s87, %s90
    %p99 = scmp.eq.s32.totalorder %s14, 1
    %p100 = por %p98, %p99
    %p101 = scmp.ne.s32.totalorder %s90, %s91
    %p102 = scmp.eq.s32.totalorder %s14, 0
    %p103 = por %p101, %p102
    %p104 = scmp.ne.s32.totalorder %s90, %s91
    %p105 = scmp.eq.s32.totalorder %s15, 1
    %p106 = por %p104, %p105
    %p108 = scmp.ne.s32.totalorder %s91, %s107
    %p109 = scmp.eq.s32.totalorder %s15, 0
    %p110 = por %p108, %p109
    %p111 = scmp.le.s32.totalorder 1, %s9
    %p112 = scmp.lt.s32.totalorder %s9, 3
    %p113 = pnand %p111, %p112
    %p114 = pneg %p113
    // Predicated region
    $region9: #{conv_block_forward.3} parent=5 // pred_check
      _
    $region10: #{conv_block_forward.3} parent=5 // pred_check_branch
      %116 = sbr.rel (%p113) target = $region12
    $region11: #{conv_block_forward.3} parent=5 // pred_region
      %s117 = ssub.s32 %s9, 1
      // Predicated region
      $region13: #{conv_block_forward.3} parent=11 // pred_check
        %p118 = pneg %p56
      $region14: #{conv_block_forward.3} parent=11 // pred_check_branch
        %120 = sbr.rel (%p118) target = $region16
      $region15: #{conv_block_forward.3} parent=11 // pred_region
        _
      $region16: #{conv_block_forward.3} parent=11 // pred_fallthru
        _
      // Predicated region
      $region17: #{conv_block_forward.3} parent=11 // pred_check
        %p121 = pneg %p77
      $region18: #{conv_block_forward.3} parent=11 // pred_check_branch
        %123 = sbr.rel (%p121) target = $region20
      $region19: #{conv_block_forward.3} parent=11 // pred_region
        _
      $region20: #{conv_block_forward.3} parent=11 // pred_fallthru
        _
    $region12: #{conv_block_forward.3} parent=5 // pred_fallthru
      _
    %p124 = scmp.lt.s32.totalorder %s9, 2
    // Predicated region
    $region21: #{conv_block_forward.3} parent=5 // pred_check
      %p125 = pneg %p124
    $region22: #{conv_block_forward.3} parent=5 // pred_check_branch
      %127 = sbr.rel (%p125) target = $region24
    $region23: #{conv_block_forward.3} parent=5 // pred_region
      // Predicated region
      $region25: #{conv_block_forward.3} parent=23 // pred_check
        %p128 = pneg %p29
      $region26: #{conv_block_forward.3} parent=23 // pred_check_branch
        %130 = sbr.rel (%p128) target = $region28
      $region27: #{conv_block_forward.3} parent=23 // pred_region
        %p131 = scmp.lt.s32.totalorder %s9, 1
        %s132 = scalar_select %p131, %s9, 1
        %s133 = smul.addr %s132, 41
        %s134 = smul.addr %s133, 8
        %s135 = scalar_lea.vmem %s0, %s134
      $region28: #{conv_block_forward.3} parent=23 // pred_fallthru
        _
    $region24: #{conv_block_forward.3} parent=5 // pred_fallthru
      _
    %p136 = scmp.le.s32.totalorder 1, %s9
    %p137 = scmp.lt.s32.totalorder %s9, 3
    %p138 = pnand %p136, %p137
    %p139 = pneg %p138
    // Predicated region
    $region29: #{conv_block_forward.3} parent=5 // pred_check
      _
    $region30: #{conv_block_forward.3} parent=5 // pred_check_branch
      %141 = sbr.rel (%p138) target = $region32
    $region31: #{conv_block_forward.3} parent=5 // pred_region
      %s142 = ssub.s32 %s9, 1
      %p143 = scmp.lt.s32.totalorder %s14, 1
      %s144 = scalar_select %p143, %s14, 1
      %s145 = smul.addr %s144, 41
      %s146 = smul.addr %s145, 8
      %s147 = scalar_lea.vmem %s0, %s146
      %p148 = pneg %p35
      %p149 = pneg %p32
      %p150 = pneg %p56
      %p151 = pneg %p53
      %p152 = pneg %p77
      %p153 = pneg %p74
      %p154 = pneg %p103
      %p155 = pneg %p100
      %p156 = scmp.lt.s32.totalorder %s14, 1
      %s157 = scalar_select %p156, %s14, 1
      %s158 = smul.addr %s157, 41
      %s159 = smul.addr %s158, 8
      %s160 = scalar_lea.vmem %s3, %s159
      %p161 = scmp.lt.s32.totalorder %s14, 1
      %s162 = scalar_select %p161, %s14, 1
      %s163 = smul.addr %s162, 41
      %s164 = smul.addr %s163, 8
      %s165 = scalar_lea.vmem %s0, %s164
      %p166 = scmp.lt.s32.totalorder %s14, 1
      %s167 = scalar_select %p166, %s14, 1
      %s168 = smul.addr %s167, 41
      %s169 = smul.addr %s168, 8
      %s170 = scalar_lea.vmem %s3, %s169
      %v171 = vld [vmem:[%s165] sm:$0xff]
      %v172 = vld [vmem:[%s165 + $0x8] sm:$0xff]
      %v173 = vld [vmem:[%s165 + $0x10] sm:$0xff]
      %v174 = vld [vmem:[%s165 + $0x18] sm:$0xff]
      %v175 = vld [vmem:[%s165 + $0x20] sm:$0xff]
      %v176 = vld [vmem:[%s165 + $0x28] sm:$0xff]
      %v177 = vld [vmem:[%s165 + $0x30] sm:$0xff]
      %v178 = vld [vmem:[%s165 + $0x38] sm:$0xff]
      %v179 = vld [vmem:[%s165 + $0x40] sm:$0xff]
      %v180 = vld [vmem:[%s165 + $0x48] sm:$0xff]
      %v181 = vld [vmem:[%s165 + $0x50] sm:$0xff]
      %v182 = vld [vmem:[%s165 + $0x58] sm:$0xff]
      %v183 = vld [vmem:[%s165 + $0x60] sm:$0xff]
      %v184 = vld [vmem:[%s165 + $0x68] sm:$0xff]
      %v185 = vld [vmem:[%s165 + $0x70] sm:$0xff]
      %v186 = vld [vmem:[%s165 + $0x78] sm:$0xff]
      %v187 = vld [vmem:[%s165 + $0x80] sm:$0xff]
      %v188 = vld [vmem:[%s165 + $0x88] sm:$0xff]
      %v189 = vld [vmem:[%s165 + $0x90] sm:$0xff]
      %v190 = vld [vmem:[%s165 + $0x98] sm:$0xff]
      %v191 = vld [vmem:[%s165 + $0xa0] sm:$0xff]
      %v192 = vld [vmem:[%s165 + $0xa8] sm:$0xff]
      %v193 = vld [vmem:[%s165 + $0xb0] sm:$0xff]
      %v194 = vld [vmem:[%s165 + $0xb8] sm:$0xff]
      %v195 = vld [vmem:[%s165 + $0xc0] sm:$0xff]
      %v196 = vld [vmem:[%s165 + $0xc8] sm:$0xff]
      %v197 = vld [vmem:[%s165 + $0xd0] sm:$0xff]
      %v198 = vld [vmem:[%s165 + $0xd8] sm:$0xff]
      %v199 = vld [vmem:[%s165 + $0xe0] sm:$0xff]
      %v200 = vld [vmem:[%s165 + $0xe8] sm:$0xff]
      %v201 = vld [vmem:[%s165 + $0xf0] sm:$0xff]
      %v202 = vld [vmem:[%s165 + $0xf8] sm:$0xff]
      %v203 = vld [vmem:[%s165 + $0x100] sm:$0xff]
      %v204 = vld [vmem:[%s165 + $0x108] sm:$0xff]
      %v205 = vld [vmem:[%s165 + $0x110] sm:$0xff]
      %v206 = vld [vmem:[%s165 + $0x118] sm:$0xff]
      %v207 = vld [vmem:[%s165 + $0x120] sm:$0xff]
      %v208 = vld [vmem:[%s165 + $0x128] sm:$0xff]
      %v209 = vld [vmem:[%s165 + $0x130] sm:$0xff]
      %v210 = vld [vmem:[%s165 + $0x138] sm:$0xff]
      %v211 = vld [vmem:[%s165 + $0x140] sm:$0xff]
      %v212 = vld [vmem:[%s1] sm:$0x1]
      %v214 = vperm.slane %v212, 0
      %v216 = vmul.f32 %v171, %v214
      %v217 = vmul.f32 %v172, %v214
      %v218 = vmul.f32 %v173, %v214
      %v219 = vmul.f32 %v174, %v214
      %v220 = vmul.f32 %v175, %v214
      %v221 = vmul.f32 %v176, %v214
      %v222 = vmul.f32 %v177, %v214
      %v223 = vmul.f32 %v178, %v214
      %v224 = vmul.f32 %v179, %v214
      %v225 = vmul.f32 %v180, %v214
      %v226 = vmul.f32 %v181, %v214
      %v227 = vmul.f32 %v182, %v214
      %v228 = vmul.f32 %v183, %v214
      %v229 = vmul.f32 %v184, %v214
      %v230 = vmul.f32 %v185, %v214
      %v231 = vmul.f32 %v186, %v214
      %v232 = vmul.f32 %v187, %v214
      %v233 = vmul.f32 %v188, %v214
      %v234 = vmul.f32 %v189, %v214
      %v235 = vmul.f32 %v190, %v214
      %v236 = vmul.f32 %v191, %v214
      %v237 = vmul.f32 %v192, %v214
      %v238 = vmul.f32 %v193, %v214
      %v239 = vmul.f32 %v194, %v214
      %v240 = vmul.f32 %v195, %v214
      %v241 = vmul.f32 %v196, %v214
      %v242 = vmul.f32 %v197, %v214
      %v243 = vmul.f32 %v198, %v214
      %v244 = vmul.f32 %v199, %v214
      %v245 = vmul.f32 %v200, %v214
      %v246 = vmul.f32 %v201, %v214
      %v247 = vmul.f32 %v202, %v214
      %v248 = vmul.f32 %v203, %v214
      %v249 = vmul.f32 %v204, %v214
      %v250 = vmul.f32 %v205, %v214
      %v251 = vmul.f32 %v206, %v214
      %v252 = vmul.f32 %v207, %v214
      %v253 = vmul.f32 %v208, %v214
      %v254 = vmul.f32 %v209, %v214
      %v255 = vmul.f32 %v210, %v214
      %v256 = vmul.f32 %v211, %v214
      %v257 = vld [vmem:[%s2] sm:$0x1]
      %v259 = vperm.slane %v257, 0
      %v261 = vadd.f32 %v216, %v259
      %v262 = vadd.f32 %v217, %v259
      %v263 = vadd.f32 %v218, %v259
      %v264 = vadd.f32 %v219, %v259
      %v265 = vadd.f32 %v220, %v259
      %v266 = vadd.f32 %v221, %v259
      %v267 = vadd.f32 %v222, %v259
      %v268 = vadd.f32 %v223, %v259
      %v269 = vadd.f32 %v224, %v259
      %v270 = vadd.f32 %v225, %v259
      %v271 = vadd.f32 %v226, %v259
      %v272 = vadd.f32 %v227, %v259
      %v273 = vadd.f32 %v228, %v259
      %v274 = vadd.f32 %v229, %v259
      %v275 = vadd.f32 %v230, %v259
      %v276 = vadd.f32 %v231, %v259
      %v277 = vadd.f32 %v232, %v259
      %v278 = vadd.f32 %v233, %v259
      %v279 = vadd.f32 %v234, %v259
      %v280 = vadd.f32 %v235, %v259
      %v281 = vadd.f32 %v236, %v259
      %v282 = vadd.f32 %v237, %v259
      %v283 = vadd.f32 %v238, %v259
      %v284 = vadd.f32 %v239, %v259
      %v285 = vadd.f32 %v240, %v259
      %v286 = vadd.f32 %v241, %v259
      %v287 = vadd.f32 %v242, %v259
      %v288 = vadd.f32 %v243, %v259
      %v289 = vadd.f32 %v244, %v259
      %v290 = vadd.f32 %v245, %v259
      %v291 = vadd.f32 %v246, %v259
      %v292 = vadd.f32 %v247, %v259
      %v293 = vadd.f32 %v248, %v259
      %v294 = vadd.f32 %v249, %v259
      %v295 = vadd.f32 %v250, %v259
      %v296 = vadd.f32 %v251, %v259
      %v297 = vadd.f32 %v252, %v259
      %v298 = vadd.f32 %v253, %v259
      %v299 = vadd.f32 %v254, %v259
      %v300 = vadd.f32 %v255, %v259
      %v301 = vadd.f32 %v256, %v259
      %v302 = vmax.f32 %v261, 0.0
      %v303 = vmax.f32 %v262, 0.0
      %v304 = vmax.f32 %v263, 0.0
      %v305 = vmax.f32 %v264, 0.0
      %v306 = vmax.f32 %v265, 0.0
      %v307 = vmax.f32 %v266, 0.0
      %v308 = vmax.f32 %v267, 0.0
      %v309 = vmax.f32 %v268, 0.0
      %v310 = vmax.f32 %v269, 0.0
      %v311 = vmax.f32 %v270, 0.0
      %v312 = vmax.f32 %v271, 0.0
      %v313 = vmax.f32 %v272, 0.0
      %v314 = vmax.f32 %v273, 0.0
      %v315 = vmax.f32 %v274, 0.0
      %v316 = vmax.f32 %v275, 0.0
      %v317 = vmax.f32 %v276, 0.0
      %v318 = vmax.f32 %v277, 0.0
      %v319 = vmax.f32 %v278, 0.0
      %v320 = vmax.f32 %v279, 0.0
      %v321 = vmax.f32 %v280, 0.0
      %v322 = vmax.f32 %v281, 0.0
      %v323 = vmax.f32 %v282, 0.0
      %v324 = vmax.f32 %v283, 0.0
      %v325 = vmax.f32 %v284, 0.0
      %v326 = vmax.f32 %v285, 0.0
      %v327 = vmax.f32 %v286, 0.0
      %v328 = vmax.f32 %v287, 0.0
      %v329 = vmax.f32 %v288, 0.0
      %v330 = vmax.f32 %v289, 0.0
      %v331 = vmax.f32 %v290, 0.0
      %v332 = vmax.f32 %v291, 0.0
      %v333 = vmax.f32 %v292, 0.0
      %v334 = vmax.f32 %v293, 0.0
      %v335 = vmax.f32 %v294, 0.0
      %v336 = vmax.f32 %v295, 0.0
      %v337 = vmax.f32 %v296, 0.0
      %v338 = vmax.f32 %v297, 0.0
      %v339 = vmax.f32 %v298, 0.0
      %v340 = vmax.f32 %v299, 0.0
      %v341 = vmax.f32 %v300, 0.0
      %v342 = vmax.f32 %v301, 0.0
      %343 = vst [vmem:[%s170] sm:$0xff] %v302
      %344 = vst [vmem:[%s170 + $0x8] sm:$0xff] %v303
      %345 = vst [vmem:[%s170 + $0x10] sm:$0xff] %v304
      %346 = vst [vmem:[%s170 + $0x18] sm:$0xff] %v305
      %347 = vst [vmem:[%s170 + $0x20] sm:$0xff] %v306
      %348 = vst [vmem:[%s170 + $0x28] sm:$0xff] %v307
      %349 = vst [vmem:[%s170 + $0x30] sm:$0xff] %v308
      %350 = vst [vmem:[%s170 + $0x38] sm:$0xff] %v309
      %351 = vst [vmem:[%s170 + $0x40] sm:$0xff] %v310
      %352 = vst [vmem:[%s170 + $0x48] sm:$0xff] %v311
      %353 = vst [vmem:[%s170 + $0x50] sm:$0xff] %v312
      %354 = vst [vmem:[%s170 + $0x58] sm:$0xff] %v313
      %355 = vst [vmem:[%s170 + $0x60] sm:$0xff] %v314
      %356 = vst [vmem:[%s170 + $0x68] sm:$0xff] %v315
      %357 = vst [vmem:[%s170 + $0x70] sm:$0xff] %v316
      %358 = vst [vmem:[%s170 + $0x78] sm:$0xff] %v317
      %359 = vst [vmem:[%s170 + $0x80] sm:$0xff] %v318
      %360 = vst [vmem:[%s170 + $0x88] sm:$0xff] %v319
      %361 = vst [vmem:[%s170 + $0x90] sm:$0xff] %v320
      %362 = vst [vmem:[%s170 + $0x98] sm:$0xff] %v321
      %363 = vst [vmem:[%s170 + $0xa0] sm:$0xff] %v322
      %364 = vst [vmem:[%s170 + $0xa8] sm:$0xff] %v323
      %365 = vst [vmem:[%s170 + $0xb0] sm:$0xff] %v324
      %366 = vst [vmem:[%s170 + $0xb8] sm:$0xff] %v325
      %367 = vst [vmem:[%s170 + $0xc0] sm:$0xff] %v326
      %368 = vst [vmem:[%s170 + $0xc8] sm:$0xff] %v327
      %369 = vst [vmem:[%s170 + $0xd0] sm:$0xff] %v328
      %370 = vst [vmem:[%s170 + $0xd8] sm:$0xff] %v329
      %371 = vst [vmem:[%s170 + $0xe0] sm:$0xff] %v330
      %372 = vst [vmem:[%s170 + $0xe8] sm:$0xff] %v331
      %373 = vst [vmem:[%s170 + $0xf0] sm:$0xff] %v332
      %374 = vst [vmem:[%s170 + $0xf8] sm:$0xff] %v333
      %375 = vst [vmem:[%s170 + $0x100] sm:$0xff] %v334
      %376 = vst [vmem:[%s170 + $0x108] sm:$0xff] %v335
      %377 = vst [vmem:[%s170 + $0x110] sm:$0xff] %v336
      %378 = vst [vmem:[%s170 + $0x118] sm:$0xff] %v337
      %379 = vst [vmem:[%s170 + $0x120] sm:$0xff] %v338
      %380 = vst [vmem:[%s170 + $0x128] sm:$0xff] %v339
      %381 = vst [vmem:[%s170 + $0x130] sm:$0xff] %v340
      %382 = vst [vmem:[%s170 + $0x138] sm:$0xff] %v341
      %383 = vst [vmem:[%s170 + $0x140] sm:$0xff] %v342
      %p384 = scmp.lt.s32.totalorder %s14, 1
      %s385 = scalar_select %p384, %s14, 1
      %s386 = smul.addr %s385, 41
      %s387 = smul.addr %s386, 8
      %s388 = scalar_lea.vmem %s3, %s387
      // Predicated region
      $region33: #{conv_block_forward.3} parent=31 // pred_check
        %p389 = pneg %p100
      $region34: #{conv_block_forward.3} parent=31 // pred_check_branch
        %391 = sbr.rel (%p389) target = $region36
      $region35: #{conv_block_forward.3} parent=31 // pred_region
        _
      $region36: #{conv_block_forward.3} parent=31 // pred_fallthru
        _
    $region32: #{conv_block_forward.3} parent=5 // pred_fallthru
      _
    %p392 = scmp.le.s32.totalorder 2, %s9
    // Predicated region
    $region37: #{conv_block_forward.3} parent=5 // pred_check
      %p393 = pneg %p392
    $region38: #{conv_block_forward.3} parent=5 // pred_check_branch
      %395 = sbr.rel (%p393) target = $region40
    $region39: #{conv_block_forward.3} parent=5 // pred_region
      %s396 = ssub.s32 %s9, 2
      // Predicated region
      $region41: #{conv_block_forward.3} parent=39 // pred_check
        %p397 = pneg %p106
      $region42: #{conv_block_forward.3} parent=39 // pred_check_branch
        %399 = sbr.rel (%p397) target = $region44
      $region43: #{conv_block_forward.3} parent=39 // pred_region
        %p400 = scmp.lt.s32.totalorder %s15, 1
        %s401 = scalar_select %p400, %s15, 1
        %s402 = smul.addr %s401, 41
        %s403 = smul.addr %s402, 8
        %s404 = scalar_lea.vmem %s3, %s403
      $region44: #{conv_block_forward.3} parent=39 // pred_fallthru
        _
    $region40: #{conv_block_forward.3} parent=5 // pred_fallthru
      _
  $region6: #{conv_block_forward.3} parent=0 // loop_footer
    %s13 = sadd.s32 1, %s9
  $region7: #{conv_block_forward.3} parent=0 // loop_footer_branch
    %8 = sbr.rel target = $region3
  $region8: #{conv_block_forward.3} parent=0 // loop_exit
    _

// kernel: conv_block_forward.2
$region0: #{conv_block_forward.2}
  #allocation0 [shape = 'u32[]', space=smem, size = 0x4, offset = 0x4, fixed_abs, tag = 'smem constant byte address 0x4 - core index']
  #allocation1 [shape = 'u32[72,128]{1,0:T(1,128)}', space=vmem, size = 0x9000, scoped, tag = 'internal scratch']
  %s0 = inlined_call_operand.vmem [shape: f32[2,368,8], index: 0, kind: input, shape index: {}]
  %s1 = inlined_call_operand.vmem [shape: f32[9,8,128], index: 1, kind: input, shape index: {}]
  %s2 = inlined_call_operand.vmem [shape: f32[1,128], index: 2, kind: input, shape index: {}]
  %s3 = inlined_call_operand.vmem [shape: f32[328,1], index: 3, kind: input, shape index: {}]
  %s4 = inlined_call_operand.vmem [shape: f32[2,328,128], index: 4, kind: output, shape index: {0}]
  %s5 = inlined_call_operand.vmem [shape: f32[2,1,128], index: 5, kind: output, shape index: {1}]
  %s6 = inlined_call_operand.vmem [shape: f32[2,1,128], index: 6, kind: output, shape index: {2}]
  %7 = xla_tuple %s4, %s5, %s6
  %s8 = sld [smem:[#allocation0]]
  $region65: #{conv_block_forward.2} parent=0
    _
  %s10 = ssub.s32 1, %s8
  %s11 = scalar_select 0, %s10, %s8
  loop: start=0, step=1, limit=4
  $region2: #{conv_block_forward.2} parent=0 // loop_pre_header
    _
  $region3: #{conv_block_forward.2} parent=0 // loop_header
    %s13 = sphi 0, %s17
    %p14 = scmp.ge.s32.totalorder %s13, 4
    %s23 = sphi 0, %s25
    %s26 = sphi 0, %s23
    %s27 = sphi 0, %s26
    %s43 = sphi 0, %s27
    %s47 = sphi 0, %s47
    %s49 = sphi 0, %s47
    %s50 = sphi 0, %s49
    %s64 = sphi 0, %s50
    %s68 = sphi 0, %s68
    %s70 = sphi 0, %s68
    %s71 = sphi 0, %s70
    %s85 = sphi 0, %s71
    %s89 = sphi 0, %s89
    %s91 = sphi 0, %s89
    %s92 = sphi 0, %s91
    %s106 = sphi 0, %s92
    %s112 = sphi 0, %s114
    %s115 = sphi 0, %s112
    %s116 = sphi 0, %s115
    %s132 = sphi 0, %s116
    %s138 = sphi 0, %s140
    %s141 = sphi 0, %s138
    %s142 = sphi 0, %s141
    %s158 = sphi 0, %s142
    %s164 = sphi 0, %s166
    %s167 = sphi 0, %s164
    %s168 = sphi 0, %s167
    %s184 = sphi 0, %s168
  $region4: #{conv_block_forward.2} parent=0 // loop_header_branch
    %16 = sbr.rel (%p14) target = $region8
  $region5: #{conv_block_forward.2} parent=0 // loop_body
    %s18 = ssub.s32 %s13, 1
    %s19 = ssub.s32 %s13, 2
    %s20 = sadd.s32 %s13, 1
    %s21 = ssub.s32 %s13, %s20
    %p22 = scmp.eq.s32.totalorder %s21, 0
    %s24 = sadd.s32 %s23, 1
    %s25 = scalar_select %p22, %s23, %s24
    %p28 = pneg %p22
    %p29 = scmp.eq.s32.totalorder %s13, 1
    %p30 = por %p28, %p29
    %p31 = scmp.ne.s32.totalorder %s23, %s26
    %p32 = scmp.eq.s32.totalorder %s13, 0
    %p33 = por %p31, %p32
    %p34 = scmp.ne.s32.totalorder %s23, %s26
    %p35 = scmp.eq.s32.totalorder %s18, 1
    %p36 = por %p34, %p35
    %p37 = scmp.ne.s32.totalorder %s26, %s27
    %p38 = scmp.eq.s32.totalorder %s18, 0
    %p39 = por %p37, %p38
    %p40 = scmp.ne.s32.totalorder %s26, %s27
    %p41 = scmp.eq.s32.totalorder %s19, 1
    %p42 = por %p40, %p41
    %p44 = scmp.ne.s32.totalorder %s27, %s43
    %p45 = scmp.eq.s32.totalorder %s19, 0
    %p46 = por %p44, %p45
    %s48 = sadd.s32 %s47, 1
    %p51 = scmp.eq.s32.totalorder %s13, 1
    %p52 = scmp.ne.s32.totalorder %s47, %s49
    %p53 = scmp.eq.s32.totalorder %s13, 0
    %p54 = por %p52, %p53
    %p55 = scmp.ne.s32.totalorder %s47, %s49
    %p56 = scmp.eq.s32.totalorder %s18, 1
    %p57 = por %p55, %p56
    %p58 = scmp.ne.s32.totalorder %s49, %s50
    %p59 = scmp.eq.s32.totalorder %s18, 0
    %p60 = por %p58, %p59
    %p61 = scmp.ne.s32.totalorder %s49, %s50
    %p62 = scmp.eq.s32.totalorder %s19, 1
    %p63 = por %p61, %p62
    %p65 = scmp.ne.s32.totalorder %s50, %s64
    %p66 = scmp.eq.s32.totalorder %s19, 0
    %p67 = por %p65, %p66
    %s69 = sadd.s32 %s68, 1
    %p72 = scmp.eq.s32.totalorder %s13, 1
    %p73 = scmp.ne.s32.totalorder %s68, %s70
    %p74 = scmp.eq.s32.totalorder %s13, 0
    %p75 = por %p73, %p74
    %p76 = scmp.ne.s32.totalorder %s68, %s70
    %p77 = scmp.eq.s32.totalorder %s18, 1
    %p78 = por %p76, %p77
    %p79 = scmp.ne.s32.totalorder %s70, %s71
    %p80 = scmp.eq.s32.totalorder %s18, 0
    %p81 = por %p79, %p80
    %p82 = scmp.ne.s32.totalorder %s70, %s71
    %p83 = scmp.eq.s32.totalorder %s19, 1
    %p84 = por %p82, %p83
    %p86 = scmp.ne.s32.totalorder %s71, %s85
    %p87 = scmp.eq.s32.totalorder %s19, 0
    %p88 = por %p86, %p87
    %s90 = sadd.s32 %s89, 1
    %p93 = scmp.eq.s32.totalorder %s13, 1
    %p94 = scmp.ne.s32.totalorder %s89, %s91
    %p95 = scmp.eq.s32.totalorder %s13, 0
    %p96 = por %p94, %p95
    %p97 = scmp.ne.s32.totalorder %s89, %s91
    %p98 = scmp.eq.s32.totalorder %s18, 1
    %p99 = por %p97, %p98
    %p100 = scmp.ne.s32.totalorder %s91, %s92
    %p101 = scmp.eq.s32.totalorder %s18, 0
    %p102 = por %p100, %p101
    %p103 = scmp.ne.s32.totalorder %s91, %s92
    %p104 = scmp.eq.s32.totalorder %s19, 1
    %p105 = por %p103, %p104
    %p107 = scmp.ne.s32.totalorder %s92, %s106
    %p108 = scmp.eq.s32.totalorder %s19, 0
    %p109 = por %p107, %p108
    %s110 = ssub.s32 %s13, %s20
    %p111 = scmp.eq.s32.totalorder %s110, 0
    %s113 = sadd.s32 %s112, 1
    %s114 = scalar_select %p111, %s112, %s113
    %p117 = pneg %p111
    %p118 = scmp.eq.s32.totalorder %s13, 1
    %p119 = por %p117, %p118
    %p120 = scmp.ne.s32.totalorder %s112, %s115
    %p121 = scmp.eq.s32.totalorder %s13, 0
    %p122 = por %p120, %p121
    %p123 = scmp.ne.s32.totalorder %s112, %s115
    %p124 = scmp.eq.s32.totalorder %s18, 1
    %p125 = por %p123, %p124
    %p126 = scmp.ne.s32.totalorder %s115, %s116
    %p127 = scmp.eq.s32.totalorder %s18, 0
    %p128 = por %p126, %p127
    %p129 = scmp.ne.s32.totalorder %s115, %s116
    %p130 = scmp.eq.s32.totalorder %s19, 1
    %p131 = por %p129, %p130
    %p133 = scmp.ne.s32.totalorder %s116, %s132
    %p134 = scmp.eq.s32.totalorder %s19, 0
    %p135 = por %p133, %p134
    %s136 = ssub.s32 %s13, %s20
    %p137 = scmp.eq.s32.totalorder %s136, 0
    %s139 = sadd.s32 %s138, 1
    %s140 = scalar_select %p137, %s138, %s139
    %p143 = pneg %p137
    %p144 = scmp.eq.s32.totalorder %s13, 1
    %p145 = por %p143, %p144
    %p146 = scmp.ne.s32.totalorder %s138, %s141
    %p147 = scmp.eq.s32.totalorder %s13, 0
    %p148 = por %p146, %p147
    %p149 = scmp.ne.s32.totalorder %s138, %s141
    %p150 = scmp.eq.s32.totalorder %s18, 1
    %p151 = por %p149, %p150
    %p152 = scmp.ne.s32.totalorder %s141, %s142
    %p153 = scmp.eq.s32.totalorder %s18, 0
    %p154 = por %p152, %p153
    %p155 = scmp.ne.s32.totalorder %s141, %s142
    %p156 = scmp.eq.s32.totalorder %s19, 1
    %p157 = por %p155, %p156
    %p159 = scmp.ne.s32.totalorder %s142, %s158
    %p160 = scmp.eq.s32.totalorder %s19, 0
    %p161 = por %p159, %p160
    %s162 = ssub.s32 %s13, %s20
    %p163 = scmp.eq.s32.totalorder %s162, 0
    %s165 = sadd.s32 %s164, 1
    %s166 = scalar_select %p163, %s164, %s165
    %p169 = pneg %p163
    %p170 = scmp.eq.s32.totalorder %s13, 1
    %p171 = por %p169, %p170
    %p172 = scmp.ne.s32.totalorder %s164, %s167
    %p173 = scmp.eq.s32.totalorder %s13, 0
    %p174 = por %p172, %p173
    %p175 = scmp.ne.s32.totalorder %s164, %s167
    %p176 = scmp.eq.s32.totalorder %s18, 1
    %p177 = por %p175, %p176
    %p178 = scmp.ne.s32.totalorder %s167, %s168
    %p179 = scmp.eq.s32.totalorder %s18, 0
    %p180 = por %p178, %p179
    %p181 = scmp.ne.s32.totalorder %s167, %s168
    %p182 = scmp.eq.s32.totalorder %s19, 1
    %p183 = por %p181, %p182
    %p185 = scmp.ne.s32.totalorder %s168, %s184
    %p186 = scmp.eq.s32.totalorder %s19, 0
    %p187 = por %p185, %p186
    %p188 = scmp.le.s32.totalorder 1, %s13
    %p189 = scmp.lt.s32.totalorder %s13, 3
    %p190 = pnand %p188, %p189
    %p191 = pneg %p190
    // Predicated region
    $region9: #{conv_block_forward.2} parent=5 // pred_check
      _
    $region10: #{conv_block_forward.2} parent=5 // pred_check_branch
      %193 = sbr.rel (%p190) target = $region12
    $region11: #{conv_block_forward.2} parent=5 // pred_region
      %s194 = ssub.s32 %s13, 1
      // Predicated region
      $region13: #{conv_block_forward.2} parent=11 // pred_check
        %p195 = pneg %p60
      $region14: #{conv_block_forward.2} parent=11 // pred_check_branch
        %197 = sbr.rel (%p195) target = $region16
      $region15: #{conv_block_forward.2} parent=11 // pred_region
        _
      $region16: #{conv_block_forward.2} parent=11 // pred_fallthru
        _
      // Predicated region
      $region17: #{conv_block_forward.2} parent=11 // pred_check
        %p198 = pneg %p81
      $region18: #{conv_block_forward.2} parent=11 // pred_check_branch
        %200 = sbr.rel (%p198) target = $region20
      $region19: #{conv_block_forward.2} parent=11 // pred_region
        _
      $region20: #{conv_block_forward.2} parent=11 // pred_fallthru
        _
      // Predicated region
      $region21: #{conv_block_forward.2} parent=11 // pred_check
        %p201 = pneg %p102
      $region22: #{conv_block_forward.2} parent=11 // pred_check_branch
        %203 = sbr.rel (%p201) target = $region24
      $region23: #{conv_block_forward.2} parent=11 // pred_region
        _
      $region24: #{conv_block_forward.2} parent=11 // pred_fallthru
        _
    $region12: #{conv_block_forward.2} parent=5 // pred_fallthru
      _
    %p204 = scmp.lt.s32.totalorder %s13, 2
    // Predicated region
    $region25: #{conv_block_forward.2} parent=5 // pred_check
      %p205 = pneg %p204
    $region26: #{conv_block_forward.2} parent=5 // pred_check_branch
      %207 = sbr.rel (%p205) target = $region28
    $region27: #{conv_block_forward.2} parent=5 // pred_region
      // Predicated region
      $region29: #{conv_block_forward.2} parent=27 // pred_check
        %p208 = pneg %p33
      $region30: #{conv_block_forward.2} parent=27 // pred_check_branch
        %210 = sbr.rel (%p208) target = $region32
      $region31: #{conv_block_forward.2} parent=27 // pred_region
        %p211 = scmp.lt.s32.totalorder %s13, 1
        %s212 = scalar_select %p211, %s13, 1
        %s213 = smul.addr %s212, 46
        %s214 = smul.addr %s213, 8
        %s215 = scalar_lea.vmem %s0, %s214
      $region32: #{conv_block_forward.2} parent=27 // pred_fallthru
        _
    $region28: #{conv_block_forward.2} parent=5 // pred_fallthru
      _
    %p216 = scmp.le.s32.totalorder 1, %s13
    %p217 = scmp.lt.s32.totalorder %s13, 3
    %p218 = pnand %p216, %p217
    %p219 = pneg %p218
    // Predicated region
    $region33: #{conv_block_forward.2} parent=5 // pred_check
      _
    $region34: #{conv_block_forward.2} parent=5 // pred_check_branch
      %221 = sbr.rel (%p218) target = $region36
    $region35: #{conv_block_forward.2} parent=5 // pred_region
      %s222 = ssub.s32 %s13, 1
      %p223 = scmp.lt.s32.totalorder %s18, 1
      %s224 = scalar_select %p223, %s18, 1
      %s225 = smul.addr %s224, 46
      %s226 = smul.addr %s225, 8
      %s227 = scalar_lea.vmem %s0, %s226
      %p228 = pneg %p39
      %p229 = pneg %p36
      %p230 = pneg %p60
      %p231 = pneg %p57
      %p232 = pneg %p81
      %p233 = pneg %p78
      %p234 = pneg %p102
      %p235 = pneg %p99
      %p236 = pneg %p128
      %p237 = pneg %p125
      %p238 = scmp.lt.s32.totalorder %s18, 1
      %s239 = scalar_select %p238, %s18, 1
      %s240 = smul.addr %s239, 41
      %s241 = smul.addr %s240, 8
      %s242 = scalar_lea.vmem %s4, %s241
      %p243 = pneg %p154
      %p244 = pneg %p151
      %p245 = scmp.lt.s32.totalorder %s18, 1
      %s246 = scalar_select %p245, %s18, 1
      %s247 = scalar_lea.vmem %s5, %s246
      %p248 = pneg %p180
      %p249 = pneg %p177
      %p250 = scmp.lt.s32.totalorder %s18, 1
      %s251 = scalar_select %p250, %s18, 1
      %s252 = scalar_lea.vmem %s6, %s251
      %p253 = scmp.lt.s32.totalorder %s18, 1
      %s254 = scalar_select %p253, %s18, 1
      %s255 = smul.addr %s254, 46
      %s256 = smul.addr %s255, 8
      %s257 = scalar_lea.vmem %s0, %s256
      %p258 = scmp.lt.s32.totalorder %s18, 1
      %s259 = scalar_select %p258, %s18, 1
      %s260 = smul.addr %s259, 41
      %s261 = smul.addr %s260, 8
      %s262 = scalar_lea.vmem %s4, %s261
      %p263 = scmp.lt.s32.totalorder %s18, 1
      %s264 = scalar_select %p263, %s18, 1
      %s265 = scalar_lea.vmem %s5, %s264
      %p266 = scmp.lt.s32.totalorder %s18, 1
      %s267 = scalar_select %p266, %s18, 1
      %s268 = scalar_lea.vmem %s6, %s267
      %v269 = vld [vmem:[%s257] sm:$0xff]
      %v270 = vld [vmem:[%s257 + $0x8] sm:$0xff]
      %v271 = vld [vmem:[%s257 + $0x10] sm:$0xff]
      %v272 = vld [vmem:[%s257 + $0x18] sm:$0xff]
      %v273 = vld [vmem:[%s257 + $0x20] sm:$0xff]
      %v274 = vld [vmem:[%s257 + $0x28] sm:$0xff]
      %v275 = vld [vmem:[%s257 + $0x30] sm:$0xff]
      %v276 = vld [vmem:[%s257 + $0x38] sm:$0xff]
      %v277 = vld [vmem:[%s257 + $0x40] sm:$0xff]
      %v278 = vld [vmem:[%s257 + $0x48] sm:$0xff]
      %v279 = vld [vmem:[%s257 + $0x50] sm:$0xff]
      %v280 = vld [vmem:[%s257 + $0x58] sm:$0xff]
      %v281 = vld [vmem:[%s257 + $0x60] sm:$0xff]
      %v282 = vld [vmem:[%s257 + $0x68] sm:$0xff]
      %v283 = vld [vmem:[%s257 + $0x70] sm:$0xff]
      %v284 = vld [vmem:[%s257 + $0x78] sm:$0xff]
      %v285 = vld [vmem:[%s257 + $0x80] sm:$0xff]
      %v286 = vld [vmem:[%s257 + $0x88] sm:$0xff]
      %v287 = vld [vmem:[%s257 + $0x90] sm:$0xff]
      %v288 = vld [vmem:[%s257 + $0x98] sm:$0xff]
      %v289 = vld [vmem:[%s257 + $0xa0] sm:$0xff]
      %v290 = vld [vmem:[%s257 + $0xa8] sm:$0xff]
      %v291 = vld [vmem:[%s257 + $0xb0] sm:$0xff]
      %v292 = vld [vmem:[%s257 + $0xb8] sm:$0xff]
      %v293 = vld [vmem:[%s257 + $0xc0] sm:$0xff]
      %v294 = vld [vmem:[%s257 + $0xc8] sm:$0xff]
      %v295 = vld [vmem:[%s257 + $0xd0] sm:$0xff]
      %v296 = vld [vmem:[%s257 + $0xd8] sm:$0xff]
      %v297 = vld [vmem:[%s257 + $0xe0] sm:$0xff]
      %v298 = vld [vmem:[%s257 + $0xe8] sm:$0xff]
      %v299 = vld [vmem:[%s257 + $0xf0] sm:$0xff]
      %v300 = vld [vmem:[%s257 + $0xf8] sm:$0xff]
      %v301 = vld [vmem:[%s257 + $0x100] sm:$0xff]
      %v302 = vld [vmem:[%s257 + $0x108] sm:$0xff]
      %v303 = vld [vmem:[%s257 + $0x110] sm:$0xff]
      %v304 = vld [vmem:[%s257 + $0x118] sm:$0xff]
      %v305 = vld [vmem:[%s257 + $0x120] sm:$0xff]
      %v306 = vld [vmem:[%s257 + $0x128] sm:$0xff]
      %v307 = vld [vmem:[%s257 + $0x130] sm:$0xff]
      %v308 = vld [vmem:[%s257 + $0x138] sm:$0xff]
      %v309 = vld [vmem:[%s257 + $0x140] sm:$0xff]
      %v310 = vld [vmem:[%s1] sm:$0xff]
      %vm311 = vcmask 64512
      %v313 = vsel %vm311, %v269, 0
      %v316 = vsel %vm311, %v270, 0
      %v319 = vsel %vm311, %v271, 0
      %v322 = vsel %vm311, %v272, 0
      %v325 = vsel %vm311, %v273, 0
      %v328 = vsel %vm311, %v274, 0
      %v331 = vsel %vm311, %v275, 0
      %v334 = vsel %vm311, %v276, 0
      %v337 = vsel %vm311, %v277, 0
      %v340 = vsel %vm311, %v278, 0
      %v343 = vsel %vm311, %v279, 0
      %v346 = vsel %vm311, %v280, 0
      %v349 = vsel %vm311, %v281, 0
      %v352 = vsel %vm311, %v282, 0
      %v355 = vsel %vm311, %v283, 0
      %v358 = vsel %vm311, %v284, 0
      %v361 = vsel %vm311, %v285, 0
      %v364 = vsel %vm311, %v286, 0
      %v367 = vsel %vm311, %v287, 0
      %v370 = vsel %vm311, %v288, 0
      %v373 = vsel %vm311, %v289, 0
      %v376 = vsel %vm311, %v290, 0
      %v379 = vsel %vm311, %v291, 0
      %v382 = vsel %vm311, %v292, 0
      %v385 = vsel %vm311, %v293, 0
      %v388 = vsel %vm311, %v294, 0
      %v391 = vsel %vm311, %v295, 0
      %v394 = vsel %vm311, %v296, 0
      %v397 = vsel %vm311, %v297, 0
      %v400 = vsel %vm311, %v298, 0
      %v403 = vsel %vm311, %v299, 0
      %v406 = vsel %vm311, %v300, 0
      %v409 = vsel %vm311, %v301, 0
      %v412 = vsel %vm311, %v302, 0
      %v415 = vsel %vm311, %v303, 0
      %v418 = vsel %vm311, %v304, 0
      %v421 = vsel %vm311, %v305, 0
      %v424 = vsel %vm311, %v306, 0
      %v427 = vsel %vm311, %v307, 0
      %v430 = vsel %vm311, %v308, 0
      %v433 = vsel %vm311, %v309, 0
      %435 = vmatpush.msra.mxu0 0.0
      %436 = vmatpush.msra.mxu0 0.0
      %437 = vmatpush.msra.mxu0 0.0
      %438 = vmatpush.msra.mxu0 0.0
      %439 = vmatpush.msra.mxu0 0.0
      %440 = vmatpush.msra.mxu0 0.0
      %441 = vmatpush.msra.mxu0 0.0
      %442 = vmatpush.msra.mxu0 0.0
      %443 = vmatpush.msra.mxu0 0.0
      %444 = vmatpush.msra.mxu0 0.0
      %445 = vmatpush.msra.mxu0 0.0
      %446 = vmatpush.msra.mxu0 0.0
      %447 = vmatpush.msra.mxu0 0.0
      %448 = vmatpush.msra.mxu0 0.0
      %449 = vmatpush.msra.mxu0 0.0
      %450 = vmatpush.msra.mxu0 %v310
      %451 = vmatmul.f32.gmra.mxu0 %v313
      %v452 = vpop.f32.mrf.mxu0
      %v453 = vadd.f32 0.0, %v452
      %454 = vmatmul.f32.gmra.mxu0 %v316
      %v455 = vpop.f32.mrf.mxu0
      %v456 = vadd.f32 0.0, %v455
      %457 = vmatmul.f32.gmra.mxu0 %v319
      %v458 = vpop.f32.mrf.mxu0
      %v459 = vadd.f32 0.0, %v458
      %460 = vmatmul.f32.gmra.mxu0 %v322
      %v461 = vpop.f32.mrf.mxu0
      %v462 = vadd.f32 0.0, %v461
      %463 = vmatmul.f32.gmra.mxu0 %v325
      %v464 = vpop.f32.mrf.mxu0
      %v465 = vadd.f32 0.0, %v464
      %466 = vmatmul.f32.gmra.mxu0 %v328
      %v467 = vpop.f32.mrf.mxu0
      %v468 = vadd.f32 0.0, %v467
      %469 = vmatmul.f32.gmra.mxu0 %v331
      %v470 = vpop.f32.mrf.mxu0
      %v471 = vadd.f32 0.0, %v470
      %472 = vmatmul.f32.gmra.mxu0 %v334
      %v473 = vpop.f32.mrf.mxu0
      %v474 = vadd.f32 0.0, %v473
      %475 = vmatmul.f32.gmra.mxu0 %v337
      %v476 = vpop.f32.mrf.mxu0
      %v477 = vadd.f32 0.0, %v476
      %478 = vmatmul.f32.gmra.mxu0 %v340
      %v479 = vpop.f32.mrf.mxu0
      %v480 = vadd.f32 0.0, %v479
      %481 = vmatmul.f32.gmra.mxu0 %v343
      %v482 = vpop.f32.mrf.mxu0
      %v483 = vadd.f32 0.0, %v482
      %484 = vmatmul.f32.gmra.mxu0 %v346
      %v485 = vpop.f32.mrf.mxu0
      %v486 = vadd.f32 0.0, %v485
      %487 = vmatmul.f32.gmra.mxu0 %v349
      %v488 = vpop.f32.mrf.mxu0
      %v489 = vadd.f32 0.0, %v488
      %490 = vmatmul.f32.gmra.mxu0 %v352
      %v491 = vpop.f32.mrf.mxu0
      %v492 = vadd.f32 0.0, %v491
      %493 = vmatmul.f32.gmra.mxu0 %v355
      %v494 = vpop.f32.mrf.mxu0
      %v495 = vadd.f32 0.0, %v494
      %496 = vmatmul.f32.gmra.mxu0 %v358
      %v497 = vpop.f32.mrf.mxu0
      %v498 = vadd.f32 0.0, %v497
      %499 = vmatmul.f32.gmra.mxu0 %v361
      %v500 = vpop.f32.mrf.mxu0
      %v501 = vadd.f32 0.0, %v500
      %502 = vmatmul.f32.gmra.mxu0 %v364
      %v503 = vpop.f32.mrf.mxu0
      %v504 = vadd.f32 0.0, %v503
      %505 = vmatmul.f32.gmra.mxu0 %v367
      %v506 = vpop.f32.mrf.mxu0
      %v507 = vadd.f32 0.0, %v506
      %508 = vmatmul.f32.gmra.mxu0 %v370
      %v509 = vpop.f32.mrf.mxu0
      %v510 = vadd.f32 0.0, %v509
      %511 = vmatmul.f32.gmra.mxu0 %v373
      %v512 = vpop.f32.mrf.mxu0
      %v513 = vadd.f32 0.0, %v512
      %514 = vmatmul.f32.gmra.mxu0 %v376
      %v515 = vpop.f32.mrf.mxu0
      %v516 = vadd.f32 0.0, %v515
      %517 = vmatmul.f32.gmra.mxu0 %v379
      %v518 = vpop.f32.mrf.mxu0
      %v519 = vadd.f32 0.0, %v518
      %520 = vmatmul.f32.gmra.mxu0 %v382
      %v521 = vpop.f32.mrf.mxu0
      %v522 = vadd.f32 0.0, %v521
      %523 = vmatmul.f32.gmra.mxu0 %v385
      %v524 = vpop.f32.mrf.mxu0
      %v525 = vadd.f32 0.0, %v524
      %526 = vmatmul.f32.gmra.mxu0 %v388
      %v527 = vpop.f32.mrf.mxu0
      %v528 = vadd.f32 0.0, %v527
      %529 = vmatmul.f32.gmra.mxu0 %v391
      %v530 = vpop.f32.mrf.mxu0
      %v531 = vadd.f32 0.0, %v530
      %532 = vmatmul.f32.gmra.mxu0 %v394
      %v533 = vpop.f32.mrf.mxu0
      %v534 = vadd.f32 0.0, %v533
      %535 = vmatmul.f32.gmra.mxu0 %v397
      %v536 = vpop.f32.mrf.mxu0
      %v537 = vadd.f32 0.0, %v536
      %538 = vmatmul.f32.gmra.mxu0 %v400
      %v539 = vpop.f32.mrf.mxu0
      %v540 = vadd.f32 0.0, %v539
      %541 = vmatmul.f32.gmra.mxu0 %v403
      %v542 = vpop.f32.mrf.mxu0
      %v543 = vadd.f32 0.0, %v542
      %544 = vmatmul.f32.gmra.mxu0 %v406
      %v545 = vpop.f32.mrf.mxu0
      %v546 = vadd.f32 0.0, %v545
      %547 = vmatmul.f32.gmra.mxu0 %v409
      %v548 = vpop.f32.mrf.mxu0
      %v549 = vadd.f32 0.0, %v548
      %550 = vmatmul.f32.gmra.mxu0 %v412
      %v551 = vpop.f32.mrf.mxu0
      %v552 = vadd.f32 0.0, %v551
      %553 = vmatmul.f32.gmra.mxu0 %v415
      %v554 = vpop.f32.mrf.mxu0
      %v555 = vadd.f32 0.0, %v554
      %556 = vmatmul.f32.gmra.mxu0 %v418
      %v557 = vpop.f32.mrf.mxu0
      %v558 = vadd.f32 0.0, %v557
      %559 = vmatmul.f32.gmra.mxu0 %v421
      %v560 = vpop.f32.mrf.mxu0
      %v561 = vadd.f32 0.0, %v560
      %562 = vmatmul.f32.gmra.mxu0 %v424
      %v563 = vpop.f32.mrf.mxu0
      %v564 = vadd.f32 0.0, %v563
      %565 = vmatmul.f32.gmra.mxu0 %v427
      %v566 = vpop.f32.mrf.mxu0
      %v567 = vadd.f32 0.0, %v566
      %568 = vmatmul.f32.gmra.mxu0 %v430
      %v569 = vpop.f32.mrf.mxu0
      %v570 = vadd.f32 0.0, %v569
      %571 = vmatmul.f32.gmra.mxu0 %v433
      %v572 = vpop.f32.mrf.mxu0
      %v573 = vadd.f32 0.0, %v572
      %574 = vdwg.mxu0
      %575 = vst [vmem:[%s262] sm:$0xff] %v453
      %576 = vst [vmem:[%s262 + $0x8] sm:$0xff] %v456
      %577 = vst [vmem:[%s262 + $0x10] sm:$0xff] %v459
      %578 = vst [vmem:[%s262 + $0x18] sm:$0xff] %v462
      %579 = vst [vmem:[%s262 + $0x20] sm:$0xff] %v465
      %580 = vst [vmem:[%s262 + $0x28] sm:$0xff] %v468
      %581 = vst [vmem:[%s262 + $0x30] sm:$0xff] %v471
      %582 = vst [vmem:[%s262 + $0x38] sm:$0xff] %v474
      %583 = vst [vmem:[%s262 + $0x40] sm:$0xff] %v477
      %584 = vst [vmem:[%s262 + $0x48] sm:$0xff] %v480
      %585 = vst [vmem:[%s262 + $0x50] sm:$0xff] %v483
      %586 = vst [vmem:[%s262 + $0x58] sm:$0xff] %v486
      %587 = vst [vmem:[%s262 + $0x60] sm:$0xff] %v489
      %588 = vst [vmem:[%s262 + $0x68] sm:$0xff] %v492
      %589 = vst [vmem:[%s262 + $0x70] sm:$0xff] %v495
      %590 = vst [vmem:[%s262 + $0x78] sm:$0xff] %v498
      %591 = vst [vmem:[%s262 + $0x80] sm:$0xff] %v501
      %592 = vst [vmem:[%s262 + $0x88] sm:$0xff] %v504
      %593 = vst [vmem:[%s262 + $0x90] sm:$0xff] %v507
      %594 = vst [vmem:[%s262 + $0x98] sm:$0xff] %v510
      %595 = vst [vmem:[%s262 + $0xa0] sm:$0xff] %v513
      %596 = vst [vmem:[%s262 + $0xa8] sm:$0xff] %v516
      %597 = vst [vmem:[%s262 + $0xb0] sm:$0xff] %v519
      %598 = vst [vmem:[%s262 + $0xb8] sm:$0xff] %v522
      %599 = vst [vmem:[%s262 + $0xc0] sm:$0xff] %v525
      %600 = vst [vmem:[%s262 + $0xc8] sm:$0xff] %v528
      %601 = vst [vmem:[%s262 + $0xd0] sm:$0xff] %v531
      %602 = vst [vmem:[%s262 + $0xd8] sm:$0xff] %v534
      %603 = vst [vmem:[%s262 + $0xe0] sm:$0xff] %v537
      %604 = vst [vmem:[%s262 + $0xe8] sm:$0xff] %v540
      %605 = vst [vmem:[%s262 + $0xf0] sm:$0xff] %v543
      %606 = vst [vmem:[%s262 + $0xf8] sm:$0xff] %v546
      %607 = vst [vmem:[%s262 + $0x100] sm:$0xff] %v549
      %608 = vst [vmem:[%s262 + $0x108] sm:$0xff] %v552
      %609 = vst [vmem:[%s262 + $0x110] sm:$0xff] %v555
      %610 = vst [vmem:[%s262 + $0x118] sm:$0xff] %v558
      %611 = vst [vmem:[%s262 + $0x120] sm:$0xff] %v561
      %612 = vst [vmem:[%s262 + $0x128] sm:$0xff] %v564
      %613 = vst [vmem:[%s262 + $0x130] sm:$0xff] %v567
      %614 = vst [vmem:[%s262 + $0x138] sm:$0xff] %v570
      %615 = vst [vmem:[%s262 + $0x140] sm:$0xff] %v573
      %v616 = vld [vmem:[%s257 + $0x1] sm:$0xff]
      %v617 = vld [vmem:[%s257 + $0x9] sm:$0xff]
      %v618 = vld [vmem:[%s257 + $0x11] sm:$0xff]
      %v619 = vld [vmem:[%s257 + $0x19] sm:$0xff]
      %v620 = vld [vmem:[%s257 + $0x21] sm:$0xff]
      %v621 = vld [vmem:[%s257 + $0x29] sm:$0xff]
      %v622 = vld [vmem:[%s257 + $0x31] sm:$0xff]
      %v623 = vld [vmem:[%s257 + $0x39] sm:$0xff]
      %v624 = vld [vmem:[%s257 + $0x41] sm:$0xff]
      %v625 = vld [vmem:[%s257 + $0x49] sm:$0xff]
      %v626 = vld [vmem:[%s257 + $0x51] sm:$0xff]
      %v627 = vld [vmem:[%s257 + $0x59] sm:$0xff]
      %v628 = vld [vmem:[%s257 + $0x61] sm:$0xff]
      %v629 = vld [vmem:[%s257 + $0x69] sm:$0xff]
      %v630 = vld [vmem:[%s257 + $0x71] sm:$0xff]
      %v631 = vld [vmem:[%s257 + $0x79] sm:$0xff]
      %v632 = vld [vmem:[%s257 + $0x81] sm:$0xff]
      %v633 = vld [vmem:[%s257 + $0x89] sm:$0xff]
      %v634 = vld [vmem:[%s257 + $0x91] sm:$0xff]
      %v635 = vld [vmem:[%s257 + $0x99] sm:$0xff]
      %v636 = vld [vmem:[%s257 + $0xa1] sm:$0xff]
      %v637 = vld [vmem:[%s257 + $0xa9] sm:$0xff]
      %v638 = vld [vmem:[%s257 + $0xb1] sm:$0xff]
      %v639 = vld [vmem:[%s257 + $0xb9] sm:$0xff]
      %v640 = vld [vmem:[%s257 + $0xc1] sm:$0xff]
      %v641 = vld [vmem:[%s257 + $0xc9] sm:$0xff]
      %v642 = vld [vmem:[%s257 + $0xd1] sm:$0xff]
      %v643 = vld [vmem:[%s257 + $0xd9] sm:$0xff]
      %v644 = vld [vmem:[%s257 + $0xe1] sm:$0xff]
      %v645 = vld [vmem:[%s257 + $0xe9] sm:$0xff]
      %v646 = vld [vmem:[%s257 + $0xf1] sm:$0xff]
      %v647 = vld [vmem:[%s257 + $0xf9] sm:$0xff]
      %v648 = vld [vmem:[%s257 + $0x101] sm:$0xff]
      %v649 = vld [vmem:[%s257 + $0x109] sm:$0xff]
      %v650 = vld [vmem:[%s257 + $0x111] sm:$0xff]
      %v651 = vld [vmem:[%s257 + $0x119] sm:$0xff]
      %v652 = vld [vmem:[%s257 + $0x121] sm:$0xff]
      %v653 = vld [vmem:[%s257 + $0x129] sm:$0xff]
      %v654 = vld [vmem:[%s257 + $0x131] sm:$0xff]
      %v655 = vld [vmem:[%s257 + $0x139] sm:$0xff]
      %v656 = vld [vmem:[%s257 + $0x141] sm:$0xff]
      %s657 = scalar_lea.vmem %s1, 8
      %v658 = vld [vmem:[%s657] sm:$0xff]
      %v660 = vsel %vm311, %v616, 0
      %v663 = vsel %vm311, %v617, 0
      %v666 = vsel %vm311, %v618, 0
      %v669 = vsel %vm311, %v619, 0
      %v672 = vsel %vm311, %v620, 0
      %v675 = vsel %vm311, %v621, 0
      %v678 = vsel %vm311, %v622, 0
      %v681 = vsel %vm311, %v623, 0
      %v684 = vsel %vm311, %v624, 0
      %v687 = vsel %vm311, %v625, 0
      %v690 = vsel %vm311, %v626, 0
      %v693 = vsel %vm311, %v627, 0
      %v696 = vsel %vm311, %v628, 0
      %v699 = vsel %vm311, %v629, 0
      %v702 = vsel %vm311, %v630, 0
      %v705 = vsel %vm311, %v631, 0
      %v708 = vsel %vm311, %v632, 0
      %v711 = vsel %vm311, %v633, 0
      %v714 = vsel %vm311, %v634, 0
      %v717 = vsel %vm311, %v635, 0
      %v720 = vsel %vm311, %v636, 0
      %v723 = vsel %vm311, %v637, 0
      %v726 = vsel %vm311, %v638, 0
      %v729 = vsel %vm311, %v639, 0
      %v732 = vsel %vm311, %v640, 0
      %v735 = vsel %vm311, %v641, 0
      %v738 = vsel %vm311, %v642, 0
      %v741 = vsel %vm311, %v643, 0
      %v744 = vsel %vm311, %v644, 0
      %v747 = vsel %vm311, %v645, 0
      %v750 = vsel %vm311, %v646, 0
      %v753 = vsel %vm311, %v647, 0
      %v756 = vsel %vm311, %v648, 0
      %v759 = vsel %vm311, %v649, 0
      %v762 = vsel %vm311, %v650, 0
      %v765 = vsel %vm311, %v651, 0
      %v768 = vsel %vm311, %v652, 0
      %v771 = vsel %vm311, %v653, 0
      %v774 = vsel %vm311, %v654, 0
      %v777 = vsel %vm311, %v655, 0
      %v780 = vsel %vm311, %v656, 0
      %782 = vmatpush.msra.mxu0 0.0
      %783 = vmatpush.msra.mxu0 0.0
      %784 = vmatpush.msra.mxu0 0.0
      %785 = vmatpush.msra.mxu0 0.0
      %786 = vmatpush.msra.mxu0 0.0
      %787 = vmatpush.msra.mxu0 0.0
      %788 = vmatpush.msra.mxu0 0.0
      %789 = vmatpush.msra.mxu0 0.0
      %790 = vmatpush.msra.mxu0 0.0
      %791 = vmatpush.msra.mxu0 0.0
      %792 = vmatpush.msra.mxu0 0.0
      %793 = vmatpush.msra.mxu0 0.0
      %794 = vmatpush.msra.mxu0 0.0
      %795 = vmatpush.msra.mxu0 0.0
      %796 = vmatpush.msra.mxu0 0.0
      %797 = vmatpush.msra.mxu0 %v658
      %798 = vmatmul.f32.gmra.mxu0 %v660
      %v799 = vpop.f32.mrf.mxu0
      %v800 = vadd.f32 0.0, %v799
      %801 = vmatmul.f32.gmra.mxu0 %v663
      %v802 = vpop.f32.mrf.mxu0
      %v803 = vadd.f32 0.0, %v802
      %804 = vmatmul.f32.gmra.mxu0 %v666
      %v805 = vpop.f32.mrf.mxu0
      %v806 = vadd.f32 0.0, %v805
      %807 = vmatmul.f32.gmra.mxu0 %v669
      %v808 = vpop.f32.mrf.mxu0
      %v809 = vadd.f32 0.0, %v808
      %810 = vmatmul.f32.gmra.mxu0 %v672
      %v811 = vpop.f32.mrf.mxu0
      %v812 = vadd.f32 0.0, %v811
      %813 = vmatmul.f32.gmra.mxu0 %v675
      %v814 = vpop.f32.mrf.mxu0
      %v815 = vadd.f32 0.0, %v814
      %816 = vmatmul.f32.gmra.mxu0 %v678
      %v817 = vpop.f32.mrf.mxu0
      %v818 = vadd.f32 0.0, %v817
      %819 = vmatmul.f32.gmra.mxu0 %v681
      %v820 = vpop.f32.mrf.mxu0
      %v821 = vadd.f32 0.0, %v820
      %822 = vmatmul.f32.gmra.mxu0 %v684
      %v823 = vpop.f32.mrf.mxu0
      %v824 = vadd.f32 0.0, %v823
      %825 = vmatmul.f32.gmra.mxu0 %v687
      %v826 = vpop.f32.mrf.mxu0
      %v827 = vadd.f32 0.0, %v826
      %828 = vmatmul.f32.gmra.mxu0 %v690
      %v829 = vpop.f32.mrf.mxu0
      %v830 = vadd.f32 0.0, %v829
      %831 = vmatmul.f32.gmra.mxu0 %v693
      %v832 = vpop.f32.mrf.mxu0
      %v833 = vadd.f32 0.0, %v832
      %834 = vmatmul.f32.gmra.mxu0 %v696
      %v835 = vpop.f32.mrf.mxu0
      %v836 = vadd.f32 0.0, %v835
      %837 = vmatmul.f32.gmra.mxu0 %v699
      %v838 = vpop.f32.mrf.mxu0
      %v839 = vadd.f32 0.0, %v838
      %840 = vmatmul.f32.gmra.mxu0 %v702
      %v841 = vpop.f32.mrf.mxu0
      %v842 = vadd.f32 0.0, %v841
      %843 = vmatmul.f32.gmra.mxu0 %v705
      %v844 = vpop.f32.mrf.mxu0
      %v845 = vadd.f32 0.0, %v844
      %846 = vmatmul.f32.gmra.mxu0 %v708
      %v847 = vpop.f32.mrf.mxu0
      %v848 = vadd.f32 0.0, %v847
      %849 = vmatmul.f32.gmra.mxu0 %v711
      %v850 = vpop.f32.mrf.mxu0
      %v851 = vadd.f32 0.0, %v850
      %852 = vmatmul.f32.gmra.mxu0 %v714
      %v853 = vpop.f32.mrf.mxu0
      %v854 = vadd.f32 0.0, %v853
      %855 = vmatmul.f32.gmra.mxu0 %v717
      %v856 = vpop.f32.mrf.mxu0
      %v857 = vadd.f32 0.0, %v856
      %858 = vmatmul.f32.gmra.mxu0 %v720
      %v859 = vpop.f32.mrf.mxu0
      %v860 = vadd.f32 0.0, %v859
      %861 = vmatmul.f32.gmra.mxu0 %v723
      %v862 = vpop.f32.mrf.mxu0
      %v863 = vadd.f32 0.0, %v862
      %864 = vmatmul.f32.gmra.mxu0 %v726
      %v865 = vpop.f32.mrf.mxu0
      %v866 = vadd.f32 0.0, %v865
      %867 = vmatmul.f32.gmra.mxu0 %v729
      %v868 = vpop.f32.mrf.mxu0
      %v869 = vadd.f32 0.0, %v868
      %870 = vmatmul.f32.gmra.mxu0 %v732
      %v871 = vpop.f32.mrf.mxu0
      %v872 = vadd.f32 0.0, %v871
      %873 = vmatmul.f32.gmra.mxu0 %v735
      %v874 = vpop.f32.mrf.mxu0
      %v875 = vadd.f32 0.0, %v874
      %876 = vmatmul.f32.gmra.mxu0 %v738
      %v877 = vpop.f32.mrf.mxu0
      %v878 = vadd.f32 0.0, %v877
      %879 = vmatmul.f32.gmra.mxu0 %v741
      %v880 = vpop.f32.mrf.mxu0
      %v881 = vadd.f32 0.0, %v880
      %882 = vmatmul.f32.gmra.mxu0 %v744
      %v883 = vpop.f32.mrf.mxu0
      %v884 = vadd.f32 0.0, %v883
      %885 = vmatmul.f32.gmra.mxu0 %v747
      %v886 = vpop.f32.mrf.mxu0
      %v887 = vadd.f32 0.0, %v886
      %888 = vmatmul.f32.gmra.mxu0 %v750
      %v889 = vpop.f32.mrf.mxu0
      %v890 = vadd.f32 0.0, %v889
      %891 = vmatmul.f32.gmra.mxu0 %v753
      %v892 = vpop.f32.mrf.mxu0
      %v893 = vadd.f32 0.0, %v892
      %894 = vmatmul.f32.gmra.mxu0 %v756
      %v895 = vpop.f32.mrf.mxu0
      %v896 = vadd.f32 0.0, %v895
      %897 = vmatmul.f32.gmra.mxu0 %v759
      %v898 = vpop.f32.mrf.mxu0
      %v899 = vadd.f32 0.0, %v898
      %900 = vmatmul.f32.gmra.mxu0 %v762
      %v901 = vpop.f32.mrf.mxu0
      %v902 = vadd.f32 0.0, %v901
      %903 = vmatmul.f32.gmra.mxu0 %v765
      %v904 = vpop.f32.mrf.mxu0
      %v905 = vadd.f32 0.0, %v904
      %906 = vmatmul.f32.gmra.mxu0 %v768
      %v907 = vpop.f32.mrf.mxu0
      %v908 = vadd.f32 0.0, %v907
      %909 = vmatmul.f32.gmra.mxu0 %v771
      %v910 = vpop.f32.mrf.mxu0
      %v911 = vadd.f32 0.0, %v910
      %912 = vmatmul.f32.gmra.mxu0 %v774
      %v913 = vpop.f32.mrf.mxu0
      %v914 = vadd.f32 0.0, %v913
      %915 = vmatmul.f32.gmra.mxu0 %v777
      %v916 = vpop.f32.mrf.mxu0
      %v917 = vadd.f32 0.0, %v916
      %918 = vmatmul.f32.gmra.mxu0 %v780
      %v919 = vpop.f32.mrf.mxu0
      %v920 = vadd.f32 0.0, %v919
      %921 = vdwg.mxu0
      %v922 = vld [vmem:[%s262] sm:$0xff]
      %v923 = vld [vmem:[%s262 + $0x8] sm:$0xff]
      %v924 = vld [vmem:[%s262 + $0x10] sm:$0xff]
      %v925 = vld [vmem:[%s262 + $0x18] sm:$0xff]
      %v926 = vld [vmem:[%s262 + $0x20] sm:$0xff]
      %v927 = vld [vmem:[%s262 + $0x28] sm:$0xff]
      %v928 = vld [vmem:[%s262 + $0x30] sm:$0xff]
      %v929 = vld [vmem:[%s262 + $0x38] sm:$0xff]
      %v930 = vld [vmem:[%s262 + $0x40] sm:$0xff]
      %v931 = vld [vmem:[%s262 + $0x48] sm:$0xff]
      %v932 = vld [vmem:[%s262 + $0x50] sm:$0xff]
      %v933 = vld [vmem:[%s262 + $0x58] sm:$0xff]
      %v934 = vld [vmem:[%s262 + $0x60] sm:$0xff]
      %v935 = vld [vmem:[%s262 + $0x68] sm:$0xff]
      %v936 = vld [vmem:[%s262 + $0x70] sm:$0xff]
      %v937 = vld [vmem:[%s262 + $0x78] sm:$0xff]
      %v938 = vld [vmem:[%s262 + $0x80] sm:$0xff]
      %v939 = vld [vmem:[%s262 + $0x88] sm:$0xff]
      %v940 = vld [vmem:[%s262 + $0x90] sm:$0xff]
      %v941 = vld [vmem:[%s262 + $0x98] sm:$0xff]
      %v942 = vld [vmem:[%s262 + $0xa0] sm:$0xff]
      %v943 = vld [vmem:[%s262 + $0xa8] sm:$0xff]
      %v944 = vld [vmem:[%s262 + $0xb0] sm:$0xff]
      %v945 = vld [vmem:[%s262 + $0xb8] sm:$0xff]
      %v946 = vld [vmem:[%s262 + $0xc0] sm:$0xff]
      %v947 = vld [vmem:[%s262 + $0xc8] sm:$0xff]
      %v948 = vld [vmem:[%s262 + $0xd0] sm:$0xff]
      %v949 = vld [vmem:[%s262 + $0xd8] sm:$0xff]
      %v950 = vld [vmem:[%s262 + $0xe0] sm:$0xff]
      %v951 = vld [vmem:[%s262 + $0xe8] sm:$0xff]
      %v952 = vld [vmem:[%s262 + $0xf0] sm:$0xff]
      %v953 = vld [vmem:[%s262 + $0xf8] sm:$0xff]
      %v954 = vld [vmem:[%s262 + $0x100] sm:$0xff]
      %v955 = vld [vmem:[%s262 + $0x108] sm:$0xff]
      %v956 = vld [vmem:[%s262 + $0x110] sm:$0xff]
      %v957 = vld [vmem:[%s262 + $0x118] sm:$0xff]
      %v958 = vld [vmem:[%s262 + $0x120] sm:$0xff]
      %v959 = vld [vmem:[%s262 + $0x128] sm:$0xff]
      %v960 = vld [vmem:[%s262 + $0x130] sm:$0xff]
      %v961 = vld [vmem:[%s262 + $0x138] sm:$0xff]
      %v962 = vld [vmem:[%s262 + $0x140] sm:$0xff]
      %v963 = vadd.f32 %v922, %v800
      %v964 = vadd.f32 %v923, %v803
      %v965 = vadd.f32 %v924, %v806
      %v966 = vadd.f32 %v925, %v809
      %v967 = vadd.f32 %v926, %v812
      %v968 = vadd.f32 %v927, %v815
      %v969 = vadd.f32 %v928, %v818
      %v970 = vadd.f32 %v929, %v821
      %v971 = vadd.f32 %v930, %v824
      %v972 = vadd.f32 %v931, %v827
      %v973 = vadd.f32 %v932, %v830
      %v974 = vadd.f32 %v933, %v833
      %v975 = vadd.f32 %v934, %v836
      %v976 = vadd.f32 %v935, %v839
      %v977 = vadd.f32 %v936, %v842
      %v978 = vadd.f32 %v937, %v845
      %v979 = vadd.f32 %v938, %v848
      %v980 = vadd.f32 %v939, %v851
      %v981 = vadd.f32 %v940, %v854
      %v982 = vadd.f32 %v941, %v857
      %v983 = vadd.f32 %v942, %v860
      %v984 = vadd.f32 %v943, %v863
      %v985 = vadd.f32 %v944, %v866
      %v986 = vadd.f32 %v945, %v869
      %v987 = vadd.f32 %v946, %v872
      %v988 = vadd.f32 %v947, %v875
      %v989 = vadd.f32 %v948, %v878
      %v990 = vadd.f32 %v949, %v881
      %v991 = vadd.f32 %v950, %v884
      %v992 = vadd.f32 %v951, %v887
      %v993 = vadd.f32 %v952, %v890
      %v994 = vadd.f32 %v953, %v893
      %v995 = vadd.f32 %v954, %v896
      %v996 = vadd.f32 %v955, %v899
      %v997 = vadd.f32 %v956, %v902
      %v998 = vadd.f32 %v957, %v905
      %v999 = vadd.f32 %v958, %v908
      %v1000 = vadd.f32 %v959, %v911
      %v1001 = vadd.f32 %v960, %v914
      %v1002 = vadd.f32 %v961, %v917
      %v1003 = vadd.f32 %v962, %v920
      %1004 = vst [vmem:[%s262] sm:$0xff] %v963
      %1005 = vst [vmem:[%s262 + $0x8] sm:$0xff] %v964
      %1006 = vst [vmem:[%s262 + $0x10] sm:$0xff] %v965
      %1007 = vst [vmem:[%s262 + $0x18] sm:$0xff] %v966
      %1008 = vst [vmem:[%s262 + $0x20] sm:$0xff] %v967
      %1009 = vst [vmem:[%s262 + $0x28] sm:$0xff] %v968
      %1010 = vst [vmem:[%s262 + $0x30] sm:$0xff] %v969
      %1011 = vst [vmem:[%s262 + $0x38] sm:$0xff] %v970
      %1012 = vst [vmem:[%s262 + $0x40] sm:$0xff] %v971
      %1013 = vst [vmem:[%s262 + $0x48] sm:$0xff] %v972
      %1014 = vst [vmem:[%s262 + $0x50] sm:$0xff] %v973
      %1015 = vst [vmem:[%s262 + $0x58] sm:$0xff] %v974
      %1016 = vst [vmem:[%s262 + $0x60] sm:$0xff] %v975
      %1017 = vst [vmem:[%s262 + $0x68] sm:$0xff] %v976
      %1018 = vst [vmem:[%s262 + $0x70] sm:$0xff] %v977
      %1019 = vst [vmem:[%s262 + $0x78] sm:$0xff] %v978
      %1020 = vst [vmem:[%s262 + $0x80] sm:$0xff] %v979
      %1021 = vst [vmem:[%s262 + $0x88] sm:$0xff] %v980
      %1022 = vst [vmem:[%s262 + $0x90] sm:$0xff] %v981
      %1023 = vst [vmem:[%s262 + $0x98] sm:$0xff] %v982
      %1024 = vst [vmem:[%s262 + $0xa0] sm:$0xff] %v983
      %1025 = vst [vmem:[%s262 + $0xa8] sm:$0xff] %v984
      %1026 = vst [vmem:[%s262 + $0xb0] sm:$0xff] %v985
      %1027 = vst [vmem:[%s262 + $0xb8] sm:$0xff] %v986
      %1028 = vst [vmem:[%s262 + $0xc0] sm:$0xff] %v987
      %1029 = vst [vmem:[%s262 + $0xc8] sm:$0xff] %v988
      %1030 = vst [vmem:[%s262 + $0xd0] sm:$0xff] %v989
      %1031 = vst [vmem:[%s262 + $0xd8] sm:$0xff] %v990
      %1032 = vst [vmem:[%s262 + $0xe0] sm:$0xff] %v991
      %1033 = vst [vmem:[%s262 + $0xe8] sm:$0xff] %v992
      %1034 = vst [vmem:[%s262 + $0xf0] sm:$0xff] %v993
      %1035 = vst [vmem:[%s262 + $0xf8] sm:$0xff] %v994
      %1036 = vst [vmem:[%s262 + $0x100] sm:$0xff] %v995
      %1037 = vst [vmem:[%s262 + $0x108] sm:$0xff] %v996
      %1038 = vst [vmem:[%s262 + $0x110] sm:$0xff] %v997
      %1039 = vst [vmem:[%s262 + $0x118] sm:$0xff] %v998
      %1040 = vst [vmem:[%s262 + $0x120] sm:$0xff] %v999
      %1041 = vst [vmem:[%s262 + $0x128] sm:$0xff] %v1000
      %1042 = vst [vmem:[%s262 + $0x130] sm:$0xff] %v1001
      %1043 = vst [vmem:[%s262 + $0x138] sm:$0xff] %v1002
      %1044 = vst [vmem:[%s262 + $0x140] sm:$0xff] %v1003
      %v1045 = vld [vmem:[%s257 + $0x2] sm:$0xff]
      %v1046 = vld [vmem:[%s257 + $0xa] sm:$0xff]
      %v1047 = vld [vmem:[%s257 + $0x12] sm:$0xff]
      %v1048 = vld [vmem:[%s257 + $0x1a] sm:$0xff]
      %v1049 = vld [vmem:[%s257 + $0x22] sm:$0xff]
      %v1050 = vld [vmem:[%s257 + $0x2a] sm:$0xff]
      %v1051 = vld [vmem:[%s257 + $0x32] sm:$0xff]
      %v1052 = vld [vmem:[%s257 + $0x3a] sm:$0xff]
      %v1053 = vld [vmem:[%s257 + $0x42] sm:$0xff]
      %v1054 = vld [vmem:[%s257 + $0x4a] sm:$0xff]
      %v1055 = vld [vmem:[%s257 + $0x52] sm:$0xff]
      %v1056 = vld [vmem:[%s257 + $0x5a] sm:$0xff]
      %v1057 = vld [vmem:[%s257 + $0x62] sm:$0xff]
      %v1058 = vld [vmem:[%s257 + $0x6a] sm:$0xff]
      %v1059 = vld [vmem:[%s257 + $0x72] sm:$0xff]
      %v1060 = vld [vmem:[%s257 + $0x7a] sm:$0xff]
      %v1061 = vld [vmem:[%s257 + $0x82] sm:$0xff]
      %v1062 = vld [vmem:[%s257 + $0x8a] sm:$0xff]
      %v1063 = vld [vmem:[%s257 + $0x92] sm:$0xff]
      %v1064 = vld [vmem:[%s257 + $0x9a] sm:$0xff]
      %v1065 = vld [vmem:[%s257 + $0xa2] sm:$0xff]
      %v1066 = vld [vmem:[%s257 + $0xaa] sm:$0xff]
      %v1067 = vld [vmem:[%s257 + $0xb2] sm:$0xff]
      %v1068 = vld [vmem:[%s257 + $0xba] sm:$0xff]
      %v1069 = vld [vmem:[%s257 + $0xc2] sm:$0xff]
      %v1070 = vld [vmem:[%s257 + $0xca] sm:$0xff]
      %v1071 = vld [vmem:[%s257 + $0xd2] sm:$0xff]
      %v1072 = vld [vmem:[%s257 + $0xda] sm:$0xff]
      %v1073 = vld [vmem:[%s257 + $0xe2] sm:$0xff]
      %v1074 = vld [vmem:[%s257 + $0xea] sm:$0xff]
      %v1075 = vld [vmem:[%s257 + $0xf2] sm:$0xff]
      %v1076 = vld [vmem:[%s257 + $0xfa] sm:$0xff]
      %v1077 = vld [vmem:[%s257 + $0x102] sm:$0xff]
      %v1078 = vld [vmem:[%s257 + $0x10a] sm:$0xff]
      %v1079 = vld [vmem:[%s257 + $0x112] sm:$0xff]
      %v1080 = vld [vmem:[%s257 + $0x11a] sm:$0xff]
      %v1081 = vld [vmem:[%s257 + $0x122] sm:$0xff]
      %v1082 = vld [vmem:[%s257 + $0x12a] sm:$0xff]
      %v1083 = vld [vmem:[%s257 + $0x132] sm:$0xff]
      %v1084 = vld [vmem:[%s257 + $0x13a] sm:$0xff]
      %v1085 = vld [vmem:[%s257 + $0x142] sm:$0xff]
      %s1086 = scalar_lea.vmem %s1, 16
      %v1087 = vld [vmem:[%s1086] sm:$0xff]
      %v1089 = vsel %vm311, %v1045, 0
      %v1092 = vsel %vm311, %v1046, 0
      %v1095 = vsel %vm311, %v1047, 0
      %v1098 = vsel %vm311, %v1048, 0
      %v1101 = vsel %vm311, %v1049, 0
      %v1104 = vsel %vm311, %v1050, 0
      %v1107 = vsel %vm311, %v1051, 0
      %v1110 = vsel %vm311, %v1052, 0
      %v1113 = vsel %vm311, %v1053, 0
      %v1116 = vsel %vm311, %v1054, 0
      %v1119 = vsel %vm311, %v1055, 0
      %v1122 = vsel %vm311, %v1056, 0
      %v1125 = vsel %vm311, %v1057, 0
      %v1128 = vsel %vm311, %v1058, 0
      %v1131 = vsel %vm311, %v1059, 0
      %v1134 = vsel %vm311, %v1060, 0
      %v1137 = vsel %vm311, %v1061, 0
      %v1140 = vsel %vm311, %v1062, 0
      %v1143 = vsel %vm311, %v1063, 0
      %v1146 = vsel %vm311, %v1064, 0
      %v1149 = vsel %vm311, %v1065, 0
      %v1152 = vsel %vm311, %v1066, 0
      %v1155 = vsel %vm311, %v1067, 0
      %v1158 = vsel %vm311, %v1068, 0
      %v1161 = vsel %vm311, %v1069, 0
      %v1164 = vsel %vm311, %v1070, 0
      %v1167 = vsel %vm311, %v1071, 0
      %v1170 = vsel %vm311, %v1072, 0
      %v1173 = vsel %vm311, %v1073, 0
      %v1176 = vsel %vm311, %v1074, 0
      %v1179 = vsel %vm311, %v1075, 0
      %v1182 = vsel %vm311, %v1076, 0
      %v1185 = vsel %vm311, %v1077, 0
      %v1188 = vsel %vm311, %v1078, 0
      %v1191 = vsel %vm311, %v1079, 0
      %v1194 = vsel %vm311, %v1080, 0
      %v1197 = vsel %vm311, %v1081, 0
      %v1200 = vsel %vm311, %v1082, 0
      %v1203 = vsel %vm311, %v1083, 0
      %v1206 = vsel %vm311, %v1084, 0
      %v1209 = vsel %vm311, %v1085, 0
      %1211 = vmatpush.msra.mxu0 0.0
      %1212 = vmatpush.msra.mxu0 0.0
      %1213 = vmatpush.msra.mxu0 0.0
      %1214 = vmatpush.msra.mxu0 0.0
      %1215 = vmatpush.msra.mxu0 0.0
      %1216 = vmatpush.msra.mxu0 0.0
      %1217 = vmatpush.msra.mxu0 0.0
      %1218 = vmatpush.msra.mxu0 0.0
      %1219 = vmatpush.msra.mxu0 0.0
      %1220 = vmatpush.msra.mxu0 0.0
      %1221 = vmatpush.msra.mxu0 0.0
      %1222 = vmatpush.msra.mxu0 0.0
      %1223 = vmatpush.msra.mxu0 0.0
      %1224 = vmatpush.msra.mxu0 0.0
      %1225 = vmatpush.msra.mxu0 0.0
      %1226 = vmatpush.msra.mxu0 %v1087
      %1227 = vmatmul.f32.gmra.mxu0 %v1089
      %v1228 = vpop.f32.mrf.mxu0
      %v1229 = vadd.f32 0.0, %v1228
      %1230 = vmatmul.f32.gmra.mxu0 %v1092
      %v1231 = vpop.f32.mrf.mxu0
      %v1232 = vadd.f32 0.0, %v1231
      %1233 = vmatmul.f32.gmra.mxu0 %v1095
      %v1234 = vpop.f32.mrf.mxu0
      %v1235 = vadd.f32 0.0, %v1234
      %1236 = vmatmul.f32.gmra.mxu0 %v1098
      %v1237 = vpop.f32.mrf.mxu0
      %v1238 = vadd.f32 0.0, %v1237
      %1239 = vmatmul.f32.gmra.mxu0 %v1101
      %v1240 = vpop.f32.mrf.mxu0
      %v1241 = vadd.f32 0.0, %v1240
      %1242 = vmatmul.f32.gmra.mxu0 %v1104
      %v1243 = vpop.f32.mrf.mxu0
      %v1244 = vadd.f32 0.0, %v1243
      %1245 = vmatmul.f32.gmra.mxu0 %v1107
      %v1246 = vpop.f32.mrf.mxu0
      %v1247 = vadd.f32 0.0, %v1246
      %1248 = vmatmul.f32.gmra.mxu0 %v1110
      %v1249 = vpop.f32.mrf.mxu0
      %v1250 = vadd.f32 0.0, %v1249
      %1251 = vmatmul.f32.gmra.mxu0 %v1113
      %v1252 = vpop.f32.mrf.mxu0
      %v1253 = vadd.f32 0.0, %v1252
      %1254 = vmatmul.f32.gmra.mxu0 %v1116
      %v1255 = vpop.f32.mrf.mxu0
      %v1256 = vadd.f32 0.0, %v1255
      %1257 = vmatmul.f32.gmra.mxu0 %v1119
      %v1258 = vpop.f32.mrf.mxu0
      %v1259 = vadd.f32 0.0, %v1258
      %1260 = vmatmul.f32.gmra.mxu0 %v1122
      %v1261 = vpop.f32.mrf.mxu0
      %v1262 = vadd.f32 0.0, %v1261
      %1263 = vmatmul.f32.gmra.mxu0 %v1125
      %v1264 = vpop.f32.mrf.mxu0
      %v1265 = vadd.f32 0.0, %v1264
      %1266 = vmatmul.f32.gmra.mxu0 %v1128
      %v1267 = vpop.f32.mrf.mxu0
      %v1268 = vadd.f32 0.0, %v1267
      %1269 = vmatmul.f32.gmra.mxu0 %v1131
      %v1270 = vpop.f32.mrf.mxu0
      %v1271 = vadd.f32 0.0, %v1270
      %1272 = vmatmul.f32.gmra.mxu0 %v1134
      %v1273 = vpop.f32.mrf.mxu0
      %v1274 = vadd.f32 0.0, %v1273
      %1275 = vmatmul.f32.gmra.mxu0 %v1137
      %v1276 = vpop.f32.mrf.mxu0
      %v1277 = vadd.f32 0.0, %v1276
      %1278 = vmatmul.f32.gmra.mxu0 %v1140
      %v1279 = vpop.f32.mrf.mxu0
      %v1280 = vadd.f32 0.0, %v1279
      %1281 = vmatmul.f32.gmra.mxu0 %v1143
      %v1282 = vpop.f32.mrf.mxu0
      %v1283 = vadd.f32 0.0, %v1282
      %1284 = vmatmul.f32.gmra.mxu0 %v1146
      %v1285 = vpop.f32.mrf.mxu0
      %v1286 = vadd.f32 0.0, %v1285
      %1287 = vmatmul.f32.gmra.mxu0 %v1149
      %v1288 = vpop.f32.mrf.mxu0
      %v1289 = vadd.f32 0.0, %v1288
      %1290 = vmatmul.f32.gmra.mxu0 %v1152
      %v1291 = vpop.f32.mrf.mxu0
      %v1292 = vadd.f32 0.0, %v1291
      %1293 = vmatmul.f32.gmra.mxu0 %v1155
      %v1294 = vpop.f32.mrf.mxu0
      %v1295 = vadd.f32 0.0, %v1294
      %1296 = vmatmul.f32.gmra.mxu0 %v1158
      %v1297 = vpop.f32.mrf.mxu0
      %v1298 = vadd.f32 0.0, %v1297
      %1299 = vmatmul.f32.gmra.mxu0 %v1161
      %v1300 = vpop.f32.mrf.mxu0
      %v1301 = vadd.f32 0.0, %v1300
      %1302 = vmatmul.f32.gmra.mxu0 %v1164
      %v1303 = vpop.f32.mrf.mxu0
      %v1304 = vadd.f32 0.0, %v1303
      %1305 = vmatmul.f32.gmra.mxu0 %v1167
      %v1306 = vpop.f32.mrf.mxu0
      %v1307 = vadd.f32 0.0, %v1306
      %1308 = vmatmul.f32.gmra.mxu0 %v1170
      %v1309 = vpop.f32.mrf.mxu0
      %v1310 = vadd.f32 0.0, %v1309
      %1311 = vmatmul.f32.gmra.mxu0 %v1173
      %v1312 = vpop.f32.mrf.mxu0
      %v1313 = vadd.f32 0.0, %v1312
      %1314 = vmatmul.f32.gmra.mxu0 %v1176
      %v1315 = vpop.f32.mrf.mxu0
      %v1316 = vadd.f32 0.0, %v1315
      %1317 = vmatmul.f32.gmra.mxu0 %v1179
      %v1318 = vpop.f32.mrf.mxu0
      %v1319 = vadd.f32 0.0, %v1318
      %1320 = vmatmul.f32.gmra.mxu0 %v1182
      %v1321 = vpop.f32.mrf.mxu0
      %v1322 = vadd.f32 0.0, %v1321
      %1323 = vmatmul.f32.gmra.mxu0 %v1185
      %v1324 = vpop.f32.mrf.mxu0
      %v1325 = vadd.f32 0.0, %v1324
      %1326 = vmatmul.f32.gmra.mxu0 %v1188
      %v1327 = vpop.f32.mrf.mxu0
      %v1328 = vadd.f32 0.0, %v1327
      %1329 = vmatmul.f32.gmra.mxu0 %v1191
      %v1330 = vpop.f32.mrf.mxu0
      %v1331 = vadd.f32 0.0, %v1330
      %1332 = vmatmul.f32.gmra.mxu0 %v1194
      %v1333 = vpop.f32.mrf.mxu0
      %v1334 = vadd.f32 0.0, %v1333
      %1335 = vmatmul.f32.gmra.mxu0 %v1197
      %v1336 = vpop.f32.mrf.mxu0
      %v1337 = vadd.f32 0.0, %v1336
      %1338 = vmatmul.f32.gmra.mxu0 %v1200
      %v1339 = vpop.f32.mrf.mxu0
      %v1340 = vadd.f32 0.0, %v1339
      %1341 = vmatmul.f32.gmra.mxu0 %v1203
      %v1342 = vpop.f32.mrf.mxu0
      %v1343 = vadd.f32 0.0, %v1342
      %1344 = vmatmul.f32.gmra.mxu0 %v1206
      %v1345 = vpop.f32.mrf.mxu0
      %v1346 = vadd.f32 0.0, %v1345
      %1347 = vmatmul.f32.gmra.mxu0 %v1209
      %v1348 = vpop.f32.mrf.mxu0
      %v1349 = vadd.f32 0.0, %v1348
      %1350 = vdwg.mxu0
      %v1351 = vld [vmem:[%s262] sm:$0xff]
      %v1352 = vld [vmem:[%s262 + $0x8] sm:$0xff]
      %v1353 = vld [vmem:[%s262 + $0x10] sm:$0xff]
      %v1354 = vld [vmem:[%s262 + $0x18] sm:$0xff]
      %v1355 = vld [vmem:[%s262 + $0x20] sm:$0xff]
      %v1356 = vld [vmem:[%s262 + $0x28] sm:$0xff]
      %v1357 = vld [vmem:[%s262 + $0x30] sm:$0xff]
      %v1358 = vld [vmem:[%s262 + $0x38] sm:$0xff]
      %v1359 = vld [vmem:[%s262 + $0x40] sm:$0xff]
      %v1360 = vld [vmem:[%s262 + $0x48] sm:$0xff]
      %v1361 = vld [vmem:[%s262 + $0x50] sm:$0xff]
      %v1362 = vld [vmem:[%s262 + $0x58] sm:$0xff]
      %v1363 = vld [vmem:[%s262 + $0x60] sm:$0xff]
      %v1364 = vld [vmem:[%s262 + $0x68] sm:$0xff]
      %v1365 = vld [vmem:[%s262 + $0x70] sm:$0xff]
      %v1366 = vld [vmem:[%s262 + $0x78] sm:$0xff]
      %v1367 = vld [vmem:[%s262 + $0x80] sm:$0xff]
      %v1368 = vld [vmem:[%s262 + $0x88] sm:$0xff]
      %v1369 = vld [vmem:[%s262 + $0x90] sm:$0xff]
      %v1370 = vld [vmem:[%s262 + $0x98] sm:$0xff]
      %v1371 = vld [vmem:[%s262 + $0xa0] sm:$0xff]
      %v1372 = vld [vmem:[%s262 + $0xa8] sm:$0xff]
      %v1373 = vld [vmem:[%s262 + $0xb0] sm:$0xff]
      %v1374 = vld [vmem:[%s262 + $0xb8] sm:$0xff]
      %v1375 = vld [vmem:[%s262 + $0xc0] sm:$0xff]
      %v1376 = vld [vmem:[%s262 + $0xc8] sm:$0xff]
      %v1377 = vld [vmem:[%s262 + $0xd0] sm:$0xff]
      %v1378 = vld [vmem:[%s262 + $0xd8] sm:$0xff]
      %v1379 = vld [vmem:[%s262 + $0xe0] sm:$0xff]
      %v1380 = vld [vmem:[%s262 + $0xe8] sm:$0xff]
      %v1381 = vld [vmem:[%s262 + $0xf0] sm:$0xff]
      %v1382 = vld [vmem:[%s262 + $0xf8] sm:$0xff]
      %v1383 = vld [vmem:[%s262 + $0x100] sm:$0xff]
      %v1384 = vld [vmem:[%s262 + $0x108] sm:$0xff]
      %v1385 = vld [vmem:[%s262 + $0x110] sm:$0xff]
      %v1386 = vld [vmem:[%s262 + $0x118] sm:$0xff]
      %v1387 = vld [vmem:[%s262 + $0x120] sm:$0xff]
      %v1388 = vld [vmem:[%s262 + $0x128] sm:$0xff]
      %v1389 = vld [vmem:[%s262 + $0x130] sm:$0xff]
      %v1390 = vld [vmem:[%s262 + $0x138] sm:$0xff]
      %v1391 = vld [vmem:[%s262 + $0x140] sm:$0xff]
      %v1392 = vadd.f32 %v1351, %v1229
      %v1393 = vadd.f32 %v1352, %v1232
      %v1394 = vadd.f32 %v1353, %v1235
      %v1395 = vadd.f32 %v1354, %v1238
      %v1396 = vadd.f32 %v1355, %v1241
      %v1397 = vadd.f32 %v1356, %v1244
      %v1398 = vadd.f32 %v1357, %v1247
      %v1399 = vadd.f32 %v1358, %v1250
      %v1400 = vadd.f32 %v1359, %v1253
      %v1401 = vadd.f32 %v1360, %v1256
      %v1402 = vadd.f32 %v1361, %v1259
      %v1403 = vadd.f32 %v1362, %v1262
      %v1404 = vadd.f32 %v1363, %v1265
      %v1405 = vadd.f32 %v1364, %v1268
      %v1406 = vadd.f32 %v1365, %v1271
      %v1407 = vadd.f32 %v1366, %v1274
      %v1408 = vadd.f32 %v1367, %v1277
      %v1409 = vadd.f32 %v1368, %v1280
      %v1410 = vadd.f32 %v1369, %v1283
      %v1411 = vadd.f32 %v1370, %v1286
      %v1412 = vadd.f32 %v1371, %v1289
      %v1413 = vadd.f32 %v1372, %v1292
      %v1414 = vadd.f32 %v1373, %v1295
      %v1415 = vadd.f32 %v1374, %v1298
      %v1416 = vadd.f32 %v1375, %v1301
      %v1417 = vadd.f32 %v1376, %v1304
      %v1418 = vadd.f32 %v1377, %v1307
      %v1419 = vadd.f32 %v1378, %v1310
      %v1420 = vadd.f32 %v1379, %v1313
      %v1421 = vadd.f32 %v1380, %v1316
      %v1422 = vadd.f32 %v1381, %v1319
      %v1423 = vadd.f32 %v1382, %v1322
      %v1424 = vadd.f32 %v1383, %v1325
      %v1425 = vadd.f32 %v1384, %v1328
      %v1426 = vadd.f32 %v1385, %v1331
      %v1427 = vadd.f32 %v1386, %v1334
      %v1428 = vadd.f32 %v1387, %v1337
      %v1429 = vadd.f32 %v1388, %v1340
      %v1430 = vadd.f32 %v1389, %v1343
      %v1431 = vadd.f32 %v1390, %v1346
      %v1432 = vadd.f32 %v1391, %v1349
      %1433 = vst [vmem:[%s262] sm:$0xff] %v1392
      %1434 = vst [vmem:[%s262 + $0x8] sm:$0xff] %v1393
      %1435 = vst [vmem:[%s262 + $0x10] sm:$0xff] %v1394
      %1436 = vst [vmem:[%s262 + $0x18] sm:$0xff] %v1395
      %1437 = vst [vmem:[%s262 + $0x20] sm:$0xff] %v1396
      %1438 = vst [vmem:[%s262 + $0x28] sm:$0xff] %v1397
      %1439 = vst [vmem:[%s262 + $0x30] sm:$0xff] %v1398
      %1440 = vst [vmem:[%s262 + $0x38] sm:$0xff] %v1399
      %1441 = vst [vmem:[%s262 + $0x40] sm:$0xff] %v1400
      %1442 = vst [vmem:[%s262 + $0x48] sm:$0xff] %v1401
      %1443 = vst [vmem:[%s262 + $0x50] sm:$0xff] %v1402
      %1444 = vst [vmem:[%s262 + $0x58] sm:$0xff] %v1403
      %1445 = vst [vmem:[%s262 + $0x60] sm:$0xff] %v1404
      %1446 = vst [vmem:[%s262 + $0x68] sm:$0xff] %v1405
      %1447 = vst [vmem:[%s262 + $0x70] sm:$0xff] %v1406
      %1448 = vst [vmem:[%s262 + $0x78] sm:$0xff] %v1407
      %1449 = vst [vmem:[%s262 + $0x80] sm:$0xff] %v1408
      %1450 = vst [vmem:[%s262 + $0x88] sm:$0xff] %v1409
      %1451 = vst [vmem:[%s262 + $0x90] sm:$0xff] %v1410
      %1452 = vst [vmem:[%s262 + $0x98] sm:$0xff] %v1411
      %1453 = vst [vmem:[%s262 + $0xa0] sm:$0xff] %v1412
      %1454 = vst [vmem:[%s262 + $0xa8] sm:$0xff] %v1413
      %1455 = vst [vmem:[%s262 + $0xb0] sm:$0xff] %v1414
      %1456 = vst [vmem:[%s262 + $0xb8] sm:$0xff] %v1415
      %1457 = vst [vmem:[%s262 + $0xc0] sm:$0xff] %v1416
      %1458 = vst [vmem:[%s262 + $0xc8] sm:$0xff] %v1417
      %1459 = vst [vmem:[%s262 + $0xd0] sm:$0xff] %v1418
      %1460 = vst [vmem:[%s262 + $0xd8] sm:$0xff] %v1419
      %1461 = vst [vmem:[%s262 + $0xe0] sm:$0xff] %v1420
      %1462 = vst [vmem:[%s262 + $0xe8] sm:$0xff] %v1421
      %1463 = vst [vmem:[%s262 + $0xf0] sm:$0xff] %v1422
      %1464 = vst [vmem:[%s262 + $0xf8] sm:$0xff] %v1423
      %1465 = vst [vmem:[%s262 + $0x100] sm:$0xff] %v1424
      %1466 = vst [vmem:[%s262 + $0x108] sm:$0xff] %v1425
      %1467 = vst [vmem:[%s262 + $0x110] sm:$0xff] %v1426
      %1468 = vst [vmem:[%s262 + $0x118] sm:$0xff] %v1427
      %1469 = vst [vmem:[%s262 + $0x120] sm:$0xff] %v1428
      %1470 = vst [vmem:[%s262 + $0x128] sm:$0xff] %v1429
      %1471 = vst [vmem:[%s262 + $0x130] sm:$0xff] %v1430
      %1472 = vst [vmem:[%s262 + $0x138] sm:$0xff] %v1431
      %1473 = vst [vmem:[%s262 + $0x140] sm:$0xff] %v1432
      %v1474 = vld [vmem:[%s257 + $0x12] sm:$0xff]
      %v1475 = vld [vmem:[%s257 + $0x1a] sm:$0xff]
      %v1476 = vld [vmem:[%s257 + $0x22] sm:$0xff]
      %v1477 = vld [vmem:[%s257 + $0x2a] sm:$0xff]
      %v1478 = vld [vmem:[%s257 + $0x32] sm:$0xff]
      %v1479 = vld [vmem:[%s257 + $0x3a] sm:$0xff]
      %v1480 = vld [vmem:[%s257 + $0x42] sm:$0xff]
      %v1481 = vld [vmem:[%s257 + $0x4a] sm:$0xff]
      %v1482 = vld [vmem:[%s257 + $0x52] sm:$0xff]
      %v1483 = vld [vmem:[%s257 + $0x5a] sm:$0xff]
      %v1484 = vld [vmem:[%s257 + $0x62] sm:$0xff]
      %v1485 = vld [vmem:[%s257 + $0x6a] sm:$0xff]
      %v1486 = vld [vmem:[%s257 + $0x72] sm:$0xff]
      %v1487 = vld [vmem:[%s257 + $0x7a] sm:$0xff]
      %v1488 = vld [vmem:[%s257 + $0x82] sm:$0xff]
      %v1489 = vld [vmem:[%s257 + $0x8a] sm:$0xff]
      %v1490 = vld [vmem:[%s257 + $0x92] sm:$0xff]
      %v1491 = vld [vmem:[%s257 + $0x9a] sm:$0xff]
      %v1492 = vld [vmem:[%s257 + $0xa2] sm:$0xff]
      %v1493 = vld [vmem:[%s257 + $0xaa] sm:$0xff]
      %v1494 = vld [vmem:[%s257 + $0xb2] sm:$0xff]
      %v1495 = vld [vmem:[%s257 + $0xba] sm:$0xff]
      %v1496 = vld [vmem:[%s257 + $0xc2] sm:$0xff]
      %v1497 = vld [vmem:[%s257 + $0xca] sm:$0xff]
      %v1498 = vld [vmem:[%s257 + $0xd2] sm:$0xff]
      %v1499 = vld [vmem:[%s257 + $0xda] sm:$0xff]
      %v1500 = vld [vmem:[%s257 + $0xe2] sm:$0xff]
      %v1501 = vld [vmem:[%s257 + $0xea] sm:$0xff]
      %v1502 = vld [vmem:[%s257 + $0xf2] sm:$0xff]
      %v1503 = vld [vmem:[%s257 + $0xfa] sm:$0xff]
      %v1504 = vld [vmem:[%s257 + $0x102] sm:$0xff]
      %v1505 = vld [vmem:[%s257 + $0x10a] sm:$0xff]
      %v1506 = vld [vmem:[%s257 + $0x112] sm:$0xff]
      %v1507 = vld [vmem:[%s257 + $0x11a] sm:$0xff]
      %v1508 = vld [vmem:[%s257 + $0x122] sm:$0xff]
      %v1509 = vld [vmem:[%s257 + $0x12a] sm:$0xff]
      %v1510 = vld [vmem:[%s257 + $0x132] sm:$0xff]
      %v1511 = vld [vmem:[%s257 + $0x13a] sm:$0xff]
      %v1512 = vld [vmem:[%s257 + $0x142] sm:$0xff]
      %v1513 = vld [vmem:[%s257 + $0x14a] sm:$0xff]
      %v1514 = vld [vmem:[%s257 + $0x152] sm:$0xff]
      %s1515 = scalar_lea.vmem %s1, 24
      %v1516 = vld [vmem:[%s1515] sm:$0xff]
      %v1518 = vsel %vm311, %v1474, 0
      %v1521 = vsel %vm311, %v1475, 0
      %v1524 = vsel %vm311, %v1476, 0
      %v1527 = vsel %vm311, %v1477, 0
      %v1530 = vsel %vm311, %v1478, 0
      %v1533 = vsel %vm311, %v1479, 0
      %v1536 = vsel %vm311, %v1480, 0
      %v1539 = vsel %vm311, %v1481, 0
      %v1542 = vsel %vm311, %v1482, 0
      %v1545 = vsel %vm311, %v1483, 0
      %v1548 = vsel %vm311, %v1484, 0
      %v1551 = vsel %vm311, %v1485, 0
      %v1554 = vsel %vm311, %v1486, 0
      %v1557 = vsel %vm311, %v1487, 0
      %v1560 = vsel %vm311, %v1488, 0
      %v1563 = vsel %vm311, %v1489, 0
      %v1566 = vsel %vm311, %v1490, 0
      %v1569 = vsel %vm311, %v1491, 0
      %v1572 = vsel %vm311, %v1492, 0
      %v1575 = vsel %vm311, %v1493, 0
      %v1578 = vsel %vm311, %v1494, 0
      %v1581 = vsel %vm311, %v1495, 0
      %v1584 = vsel %vm311, %v1496, 0
      %v1587 = vsel %vm311, %v1497, 0
      %v1590 = vsel %vm311, %v1498, 0
      %v1593 = vsel %vm311, %v1499, 0
      %v1596 = vsel %vm311, %v1500, 0
      %v1599 = vsel %vm311, %v1501, 0
      %v1602 = vsel %vm311, %v1502, 0
      %v1605 = vsel %vm311, %v1503, 0
      %v1608 = vsel %vm311, %v1504, 0
      %v1611 = vsel %vm311, %v1505, 0
      %v1614 = vsel %vm311, %v1506, 0
      %v1617 = vsel %vm311, %v1507, 0
      %v1620 = vsel %vm311, %v1508, 0
      %v1623 = vsel %vm311, %v1509, 0
      %v1626 = vsel %vm311, %v1510, 0
      %v1629 = vsel %vm311, %v1511, 0
      %v1632 = vsel %vm311, %v1512, 0
      %v1635 = vsel %vm311, %v1513, 0
      %v1638 = vsel %vm311, %v1514, 0
      %1640 = vmatpush.msra.mxu0 0.0
      %1641 = vmatpush.msra.mxu0 0.0
      %1642 = vmatpush.msra.mxu0 0.0
      %1643 = vmatpush.msra.mxu0 0.0
      %1644 = vmatpush.msra.mxu0 0.0
      %1645 = vmatpush.msra.mxu0 0.0
      %1646 = vmatpush.msra.mxu0 0.0
      %1647 = vmatpush.msra.mxu0 0.0
      %1648 = vmatpush.msra.mxu0 0.0
      %1649 = vmatpush.msra.mxu0 0.0
      %1650 = vmatpush.msra.mxu0 0.0
      %1651 = vmatpush.msra.mxu0 0.0
      %1652 = vmatpush.msra.mxu0 0.0
      %1653 = vmatpush.msra.mxu0 0.0
      %1654 = vmatpush.msra.mxu0 0.0
      %1655 = vmatpush.msra.mxu0 %v1516
      %1656 = vmatmul.f32.gmra.mxu0 %v1518
      %v1657 = vpop.f32.mrf.mxu0
      %v1658 = vadd.f32 0.0, %v1657
      %1659 = vmatmul.f32.gmra.mxu0 %v1521
      %v1660 = vpop.f32.mrf.mxu0
      %v1661 = vadd.f32 0.0, %v1660
      %1662 = vmatmul.f32.gmra.mxu0 %v1524
      %v1663 = vpop.f32.mrf.mxu0
      %v1664 = vadd.f32 0.0, %v1663
      %1665 = vmatmul.f32.gmra.mxu0 %v1527
      %v1666 = vpop.f32.mrf.mxu0
      %v1667 = vadd.f32 0.0, %v1666
      %1668 = vmatmul.f32.gmra.mxu0 %v1530
      %v1669 = vpop.f32.mrf.mxu0
      %v1670 = vadd.f32 0.0, %v1669
      %1671 = vmatmul.f32.gmra.mxu0 %v1533
      %v1672 = vpop.f32.mrf.mxu0
      %v1673 = vadd.f32 0.0, %v1672
      %1674 = vmatmul.f32.gmra.mxu0 %v1536
      %v1675 = vpop.f32.mrf.mxu0
      %v1676 = vadd.f32 0.0, %v1675
      %1677 = vmatmul.f32.gmra.mxu0 %v1539
      %v1678 = vpop.f32.mrf.mxu0
      %v1679 = vadd.f32 0.0, %v1678
      %1680 = vmatmul.f32.gmra.mxu0 %v1542
      %v1681 = vpop.f32.mrf.mxu0
      %v1682 = vadd.f32 0.0, %v1681
      %1683 = vmatmul.f32.gmra.mxu0 %v1545
      %v1684 = vpop.f32.mrf.mxu0
      %v1685 = vadd.f32 0.0, %v1684
      %1686 = vmatmul.f32.gmra.mxu0 %v1548
      %v1687 = vpop.f32.mrf.mxu0
      %v1688 = vadd.f32 0.0, %v1687
      %1689 = vmatmul.f32.gmra.mxu0 %v1551
      %v1690 = vpop.f32.mrf.mxu0
      %v1691 = vadd.f32 0.0, %v1690
      %1692 = vmatmul.f32.gmra.mxu0 %v1554
      %v1693 = vpop.f32.mrf.mxu0
      %v1694 = vadd.f32 0.0, %v1693
      %1695 = vmatmul.f32.gmra.mxu0 %v1557
      %v1696 = vpop.f32.mrf.mxu0
      %v1697 = vadd.f32 0.0, %v1696
      %1698 = vmatmul.f32.gmra.mxu0 %v1560
      %v1699 = vpop.f32.mrf.mxu0
      %v1700 = vadd.f32 0.0, %v1699
      %1701 = vmatmul.f32.gmra.mxu0 %v1563
      %v1702 = vpop.f32.mrf.mxu0
      %v1703 = vadd.f32 0.0, %v1702
      %1704 = vmatmul.f32.gmra.mxu0 %v1566
      %v1705 = vpop.f32.mrf.mxu0
      %v1706 = vadd.f32 0.0, %v1705
      %1707 = vmatmul.f32.gmra.mxu0 %v1569
      %v1708 = vpop.f32.mrf.mxu0
      %v1709 = vadd.f32 0.0, %v1708
      %1710 = vmatmul.f32.gmra.mxu0 %v1572
      %v1711 = vpop.f32.mrf.mxu0
      %v1712 = vadd.f32 0.0, %v1711
      %1713 = vmatmul.f32.gmra.mxu0 %v1575
      %v1714 = vpop.f32.mrf.mxu0
      %v1715 = vadd.f32 0.0, %v1714
      %1716 = vmatmul.f32.gmra.mxu0 %v1578
      %v1717 = vpop.f32.mrf.mxu0
      %v1718 = vadd.f32 0.0, %v1717
      %1719 = vmatmul.f32.gmra.mxu0 %v1581
      %v1720 = vpop.f32.mrf.mxu0
      %v1721 = vadd.f32 0.0, %v1720
      %1722 = vmatmul.f32.gmra.mxu0 %v1584
      %v1723 = vpop.f32.mrf.mxu0
      %v1724 = vadd.f32 0.0, %v1723
      %1725 = vmatmul.f32.gmra.mxu0 %v1587
      %v1726 = vpop.f32.mrf.mxu0
      %v1727 = vadd.f32 0.0, %v1726
      %1728 = vmatmul.f32.gmra.mxu0 %v1590
      %v1729 = vpop.f32.mrf.mxu0
      %v1730 = vadd.f32 0.0, %v1729
      %1731 = vmatmul.f32.gmra.mxu0 %v1593
      %v1732 = vpop.f32.mrf.mxu0
      %v1733 = vadd.f32 0.0, %v1732
      %1734 = vmatmul.f32.gmra.mxu0 %v1596
      %v1735 = vpop.f32.mrf.mxu0
      %v1736 = vadd.f32 0.0, %v1735
      %1737 = vmatmul.f32.gmra.mxu0 %v1599
      %v1738 = vpop.f32.mrf.mxu0
      %v1739 = vadd.f32 0.0, %v1738
      %1740 = vmatmul.f32.gmra.mxu0 %v1602
      %v1741 = vpop.f32.mrf.mxu0
      %v1742 = vadd.f32 0.0, %v1741
      %1743 = vmatmul.f32.gmra.mxu0 %v1605
      %v1744 = vpop.f32.mrf.mxu0
      %v1745 = vadd.f32 0.0, %v1744
      %1746 = vmatmul.f32.gmra.mxu0 %v1608
      %v1747 = vpop.f32.mrf.mxu0
      %v1748 = vadd.f32 0.0, %v1747
      %1749 = vmatmul.f32.gmra.mxu0 %v1611
      %v1750 = vpop.f32.mrf.mxu0
      %v1751 = vadd.f32 0.0, %v1750
      %1752 = vmatmul.f32.gmra.mxu0 %v1614
      %v1753 = vpop.f32.mrf.mxu0
      %v1754 = vadd.f32 0.0, %v1753
      %1755 = vmatmul.f32.gmra.mxu0 %v1617
      %v1756 = vpop.f32.mrf.mxu0
      %v1757 = vadd.f32 0.0, %v1756
      %1758 = vmatmul.f32.gmra.mxu0 %v1620
      %v1759 = vpop.f32.mrf.mxu0
      %v1760 = vadd.f32 0.0, %v1759
      %1761 = vmatmul.f32.gmra.mxu0 %v1623
      %v1762 = vpop.f32.mrf.mxu0
      %v1763 = vadd.f32 0.0, %v1762
      %1764 = vmatmul.f32.gmra.mxu0 %v1626
      %v1765 = vpop.f32.mrf.mxu0
      %v1766 = vadd.f32 0.0, %v1765
      %1767 = vmatmul.f32.gmra.mxu0 %v1629
      %v1768 = vpop.f32.mrf.mxu0
      %v1769 = vadd.f32 0.0, %v1768
      %1770 = vmatmul.f32.gmra.mxu0 %v1632
      %v1771 = vpop.f32.mrf.mxu0
      %v1772 = vadd.f32 0.0, %v1771
      %1773 = vmatmul.f32.gmra.mxu0 %v1635
      %v1774 = vpop.f32.mrf.mxu0
      %v1775 = vadd.f32 0.0, %v1774
      %1776 = vmatmul.f32.gmra.mxu0 %v1638
      %v1777 = vpop.f32.mrf.mxu0
      %v1778 = vadd.f32 0.0, %v1777
      %1779 = vdwg.mxu0
      %v1780 = vld [vmem:[%s262] sm:$0xff]
      %v1781 = vld [vmem:[%s262 + $0x8] sm:$0xff]
      %v1782 = vld [vmem:[%s262 + $0x10] sm:$0xff]
      %v1783 = vld [vmem:[%s262 + $0x18] sm:$0xff]
      %v1784 = vld [vmem:[%s262 + $0x20] sm:$0xff]
      %v1785 = vld [vmem:[%s262 + $0x28] sm:$0xff]
      %v1786 = vld [vmem:[%s262 + $0x30] sm:$0xff]
      %v1787 = vld [vmem:[%s262 + $0x38] sm:$0xff]
      %v1788 = vld [vmem:[%s262 + $0x40] sm:$0xff]
      %v1789 = vld [vmem:[%s262 + $0x48] sm:$0xff]
      %v1790 = vld [vmem:[%s262 + $0x50] sm:$0xff]
      %v1791 = vld [vmem:[%s262 + $0x58] sm:$0xff]
      %v1792 = vld [vmem:[%s262 + $0x60] sm:$0xff]
      %v1793 = vld [vmem:[%s262 + $0x68] sm:$0xff]
      %v1794 = vld [vmem:[%s262 + $0x70] sm:$0xff]
      %v1795 = vld [vmem:[%s262 + $0x78] sm:$0xff]
      %v1796 = vld [vmem:[%s262 + $0x80] sm:$0xff]
      %v1797 = vld [vmem:[%s262 + $0x88] sm:$0xff]
      %v1798 = vld [vmem:[%s262 + $0x90] sm:$0xff]
      %v1799 = vld [vmem:[%s262 + $0x98] sm:$0xff]
      %v1800 = vld [vmem:[%s262 + $0xa0] sm:$0xff]
      %v1801 = vld [vmem:[%s262 + $0xa8] sm:$0xff]
      %v1802 = vld [vmem:[%s262 + $0xb0] sm:$0xff]
      %v1803 = vld [vmem:[%s262 + $0xb8] sm:$0xff]
      %v1804 = vld [vmem:[%s262 + $0xc0] sm:$0xff]
      %v1805 = vld [vmem:[%s262 + $0xc8] sm:$0xff]
      %v1806 = vld [vmem:[%s262 + $0xd0] sm:$0xff]
      %v1807 = vld [vmem:[%s262 + $0xd8] sm:$0xff]
      %v1808 = vld [vmem:[%s262 + $0xe0] sm:$0xff]
      %v1809 = vld [vmem:[%s262 + $0xe8] sm:$0xff]
      %v1810 = vld [vmem:[%s262 + $0xf0] sm:$0xff]
      %v1811 = vld [vmem:[%s262 + $0xf8] sm:$0xff]
      %v1812 = vld [vmem:[%s262 + $0x100] sm:$0xff]
      %v1813 = vld [vmem:[%s262 + $0x108] sm:$0xff]
      %v1814 = vld [vmem:[%s262 + $0x110] sm:$0xff]
      %v1815 = vld [vmem:[%s262 + $0x118] sm:$0xff]
      %v1816 = vld [vmem:[%s262 + $0x120] sm:$0xff]
      %v1817 = vld [vmem:[%s262 + $0x128] sm:$0xff]
      %v1818 = vld [vmem:[%s262 + $0x130] sm:$0xff]
      %v1819 = vld [vmem:[%s262 + $0x138] sm:$0xff]
      %v1820 = vld [vmem:[%s262 + $0x140] sm:$0xff]
      %v1821 = vadd.f32 %v1780, %v1658
      %v1822 = vadd.f32 %v1781, %v1661
      %v1823 = vadd.f32 %v1782, %v1664
      %v1824 = vadd.f32 %v1783, %v1667
      %v1825 = vadd.f32 %v1784, %v1670
      %v1826 = vadd.f32 %v1785, %v1673
      %v1827 = vadd.f32 %v1786, %v1676
      %v1828 = vadd.f32 %v1787, %v1679
      %v1829 = vadd.f32 %v1788, %v1682
      %v1830 = vadd.f32 %v1789, %v1685
      %v1831 = vadd.f32 %v1790, %v1688
      %v1832 = vadd.f32 %v1791, %v1691
      %v1833 = vadd.f32 %v1792, %v1694
      %v1834 = vadd.f32 %v1793, %v1697
      %v1835 = vadd.f32 %v1794, %v1700
      %v1836 = vadd.f32 %v1795, %v1703
      %v1837 = vadd.f32 %v1796, %v1706
      %v1838 = vadd.f32 %v1797, %v1709
      %v1839 = vadd.f32 %v1798, %v1712
      %v1840 = vadd.f32 %v1799, %v1715
      %v1841 = vadd.f32 %v1800, %v1718
      %v1842 = vadd.f32 %v1801, %v1721
      %v1843 = vadd.f32 %v1802, %v1724
      %v1844 = vadd.f32 %v1803, %v1727
      %v1845 = vadd.f32 %v1804, %v1730
      %v1846 = vadd.f32 %v1805, %v1733
      %v1847 = vadd.f32 %v1806, %v1736
      %v1848 = vadd.f32 %v1807, %v1739
      %v1849 = vadd.f32 %v1808, %v1742
      %v1850 = vadd.f32 %v1809, %v1745
      %v1851 = vadd.f32 %v1810, %v1748
      %v1852 = vadd.f32 %v1811, %v1751
      %v1853 = vadd.f32 %v1812, %v1754
      %v1854 = vadd.f32 %v1813, %v1757
      %v1855 = vadd.f32 %v1814, %v1760
      %v1856 = vadd.f32 %v1815, %v1763
      %v1857 = vadd.f32 %v1816, %v1766
      %v1858 = vadd.f32 %v1817, %v1769
      %v1859 = vadd.f32 %v1818, %v1772
      %v1860 = vadd.f32 %v1819, %v1775
      %v1861 = vadd.f32 %v1820, %v1778
      %1862 = vst [vmem:[%s262] sm:$0xff] %v1821
      %1863 = vst [vmem:[%s262 + $0x8] sm:$0xff] %v1822
      %1864 = vst [vmem:[%s262 + $0x10] sm:$0xff] %v1823
      %1865 = vst [vmem:[%s262 + $0x18] sm:$0xff] %v1824
      %1866 = vst [vmem:[%s262 + $0x20] sm:$0xff] %v1825
      %1867 = vst [vmem:[%s262 + $0x28] sm:$0xff] %v1826
      %1868 = vst [vmem:[%s262 + $0x30] sm:$0xff] %v1827
      %1869 = vst [vmem:[%s262 + $0x38] sm:$0xff] %v1828
      %1870 = vst [vmem:[%s262 + $0x40] sm:$0xff] %v1829
      %1871 = vst [vmem:[%s262 + $0x48] sm:$0xff] %v1830
      %1872 = vst [vmem:[%s262 + $0x50] sm:$0xff] %v1831
      %1873 = vst [vmem:[%s262 + $0x58] sm:$0xff] %v1832
      %1874 = vst [vmem:[%s262 + $0x60] sm:$0xff] %v1833
      %1875 = vst [vmem:[%s262 + $0x68] sm:$0xff] %v1834
      %1876 = vst [vmem:[%s262 + $0x70] sm:$0xff] %v1835
      %1877 = vst [vmem:[%s262 + $0x78] sm:$0xff] %v1836
      %1878 = vst [vmem:[%s262 + $0x80] sm:$0xff] %v1837
      %1879 = vst [vmem:[%s262 + $0x88] sm:$0xff] %v1838
      %1880 = vst [vmem:[%s262 + $0x90] sm:$0xff] %v1839
      %1881 = vst [vmem:[%s262 + $0x98] sm:$0xff] %v1840
      %1882 = vst [vmem:[%s262 + $0xa0] sm:$0xff] %v1841
      %1883 = vst [vmem:[%s262 + $0xa8] sm:$0xff] %v1842
      %1884 = vst [vmem:[%s262 + $0xb0] sm:$0xff] %v1843
      %1885 = vst [vmem:[%s262 + $0xb8] sm:$0xff] %v1844
      %1886 = vst [vmem:[%s262 + $0xc0] sm:$0xff] %v1845
      %1887 = vst [vmem:[%s262 + $0xc8] sm:$0xff] %v1846
      %1888 = vst [vmem:[%s262 + $0xd0] sm:$0xff] %v1847
      %1889 = vst [vmem:[%s262 + $0xd8] sm:$0xff] %v1848
      %1890 = vst [vmem:[%s262 + $0xe0] sm:$0xff] %v1849
      %1891 = vst [vmem:[%s262 + $0xe8] sm:$0xff] %v1850
      %1892 = vst [vmem:[%s262 + $0xf0] sm:$0xff] %v1851
      %1893 = vst [vmem:[%s262 + $0xf8] sm:$0xff] %v1852
      %1894 = vst [vmem:[%s262 + $0x100] sm:$0xff] %v1853
      %1895 = vst [vmem:[%s262 + $0x108] sm:$0xff] %v1854
      %1896 = vst [vmem:[%s262 + $0x110] sm:$0xff] %v1855
      %1897 = vst [vmem:[%s262 + $0x118] sm:$0xff] %v1856
      %1898 = vst [vmem:[%s262 + $0x120] sm:$0xff] %v1857
      %1899 = vst [vmem:[%s262 + $0x128] sm:$0xff] %v1858
      %1900 = vst [vmem:[%s262 + $0x130] sm:$0xff] %v1859
      %1901 = vst [vmem:[%s262 + $0x138] sm:$0xff] %v1860
      %1902 = vst [vmem:[%s262 + $0x140] sm:$0xff] %v1861
      %v1903 = vld [vmem:[%s257 + $0x13] sm:$0xff]
      %v1904 = vld [vmem:[%s257 + $0x1b] sm:$0xff]
      %v1905 = vld [vmem:[%s257 + $0x23] sm:$0xff]
      %v1906 = vld [vmem:[%s257 + $0x2b] sm:$0xff]
      %v1907 = vld [vmem:[%s257 + $0x33] sm:$0xff]
      %v1908 = vld [vmem:[%s257 + $0x3b] sm:$0xff]
      %v1909 = vld [vmem:[%s257 + $0x43] sm:$0xff]
      %v1910 = vld [vmem:[%s257 + $0x4b] sm:$0xff]
      %v1911 = vld [vmem:[%s257 + $0x53] sm:$0xff]
      %v1912 = vld [vmem:[%s257 + $0x5b] sm:$0xff]
      %v1913 = vld [vmem:[%s257 + $0x63] sm:$0xff]
      %v1914 = vld [vmem:[%s257 + $0x6b] sm:$0xff]
      %v1915 = vld [vmem:[%s257 + $0x73] sm:$0xff]
      %v1916 = vld [vmem:[%s257 + $0x7b] sm:$0xff]
      %v1917 = vld [vmem:[%s257 + $0x83] sm:$0xff]
      %v1918 = vld [vmem:[%s257 + $0x8b] sm:$0xff]
      %v1919 = vld [vmem:[%s257 + $0x93] sm:$0xff]
      %v1920 = vld [vmem:[%s257 + $0x9b] sm:$0xff]
      %v1921 = vld [vmem:[%s257 + $0xa3] sm:$0xff]
      %v1922 = vld [vmem:[%s257 + $0xab] sm:$0xff]
      %v1923 = vld [vmem:[%s257 + $0xb3] sm:$0xff]
      %v1924 = vld [vmem:[%s257 + $0xbb] sm:$0xff]
      %v1925 = vld [vmem:[%s257 + $0xc3] sm:$0xff]
      %v1926 = vld [vmem:[%s257 + $0xcb] sm:$0xff]
      %v1927 = vld [vmem:[%s257 + $0xd3] sm:$0xff]
      %v1928 = vld [vmem:[%s257 + $0xdb] sm:$0xff]
      %v1929 = vld [vmem:[%s257 + $0xe3] sm:$0xff]
      %v1930 = vld [vmem:[%s257 + $0xeb] sm:$0xff]
      %v1931 = vld [vmem:[%s257 + $0xf3] sm:$0xff]
      %v1932 = vld [vmem:[%s257 + $0xfb] sm:$0xff]
      %v1933 = vld [vmem:[%s257 + $0x103] sm:$0xff]
      %v1934 = vld [vmem:[%s257 + $0x10b] sm:$0xff]
      %v1935 = vld [vmem:[%s257 + $0x113] sm:$0xff]
      %v1936 = vld [vmem:[%s257 + $0x11b] sm:$0xff]
      %v1937 = vld [vmem:[%s257 + $0x123] sm:$0xff]
      %v1938 = vld [vmem:[%s257 + $0x12b] sm:$0xff]
      %v1939 = vld [vmem:[%s257 + $0x133] sm:$0xff]
      %v1940 = vld [vmem:[%s257 + $0x13b] sm:$0xff]
      %v1941 = vld [vmem:[%s257 + $0x143] sm:$0xff]
      %v1942 = vld [vmem:[%s257 + $0x14b] sm:$0xff]
      %v1943 = vld [vmem:[%s257 + $0x153] sm:$0xff]
      %s1944 = scalar_lea.vmem %s1, 32
      %v1945 = vld [vmem:[%s1944] sm:$0xff]
      %v1947 = vsel %vm311, %v1903, 0
      %v1950 = vsel %vm311, %v1904, 0
      %v1953 = vsel %vm311, %v1905, 0
      %v1956 = vsel %vm311, %v1906, 0
      %v1959 = vsel %vm311, %v1907, 0
      %v1962 = vsel %vm311, %v1908, 0
      %v1965 = vsel %vm311, %v1909, 0
      %v1968 = vsel %vm311, %v1910, 0
      %v1971 = vsel %vm311, %v1911, 0
      %v1974 = vsel %vm311, %v1912, 0
      %v1977 = vsel %vm311, %v1913, 0
      %v1980 = vsel %vm311, %v1914, 0
      %v1983 = vsel %vm311, %v1915, 0
      %v1986 = vsel %vm311, %v1916, 0
      %v1989 = vsel %vm311, %v1917, 0
      %v1992 = vsel %vm311, %v1918, 0
      %v1995 = vsel %vm311, %v1919, 0
      %v1998 = vsel %vm311, %v1920, 0
      %v2001 = vsel %vm311, %v1921, 0
      %v2004 = vsel %vm311, %v1922, 0
      %v2007 = vsel %vm311, %v1923, 0
      %v2010 = vsel %vm311, %v1924, 0
      %v2013 = vsel %vm311, %v1925, 0
      %v2016 = vsel %vm311, %v1926, 0
      %v2019 = vsel %vm311, %v1927, 0
      %v2022 = vsel %vm311, %v1928, 0
      %v2025 = vsel %vm311, %v1929, 0
      %v2028 = vsel %vm311, %v1930, 0
      %v2031 = vsel %vm311, %v1931, 0
      %v2034 = vsel %vm311, %v1932, 0
      %v2037 = vsel %vm311, %v1933, 0
      %v2040 = vsel %vm311, %v1934, 0
      %v2043 = vsel %vm311, %v1935, 0
      %v2046 = vsel %vm311, %v1936, 0
      %v2049 = vsel %vm311, %v1937, 0
      %v2052 = vsel %vm311, %v1938, 0
      %v2055 = vsel %vm311, %v1939, 0
      %v2058 = vsel %vm311, %v1940, 0
      %v2061 = vsel %vm311, %v1941, 0
      %v2064 = vsel %vm311, %v1942, 0
      %v2067 = vsel %vm311, %v1943, 0
      %2069 = vmatpush.msra.mxu0 0.0
      %2070 = vmatpush.msra.mxu0 0.0
      %2071 = vmatpush.msra.mxu0 0.0
      %2072 = vmatpush.msra.mxu0 0.0
      %2073 = vmatpush.msra.mxu0 0.0
      %2074 = vmatpush.msra.mxu0 0.0
      %2075 = vmatpush.msra.mxu0 0.0
      %2076 = vmatpush.msra.mxu0 0.0
      %2077 = vmatpush.msra.mxu0 0.0
      %2078 = vmatpush.msra.mxu0 0.0
      %2079 = vmatpush.msra.mxu0 0.0
      %2080 = vmatpush.msra.mxu0 0.0
      %2081 = vmatpush.msra.mxu0 0.0
      %2082 = vmatpush.msra.mxu0 0.0
      %2083 = vmatpush.msra.mxu0 0.0
      %2084 = vmatpush.msra.mxu0 %v1945
      %2085 = vmatmul.f32.gmra.mxu0 %v1947
      %v2086 = vpop.f32.mrf.mxu0
      %v2087 = vadd.f32 0.0, %v2086
      %2088 = vmatmul.f32.gmra.mxu0 %v1950
      %v2089 = vpop.f32.mrf.mxu0
      %v2090 = vadd.f32 0.0, %v2089
      %2091 = vmatmul.f32.gmra.mxu0 %v1953
      %v2092 = vpop.f32.mrf.mxu0
      %v2093 = vadd.f32 0.0, %v2092
      %2094 = vmatmul.f32.gmra.mxu0 %v1956
      %v2095 = vpop.f32.mrf.mxu0
      %v2096 = vadd.f32 0.0, %v2095
      %2097 = vmatmul.f32.gmra.mxu0 %v1959
      %v2098 = vpop.f32.mrf.mxu0
      %v2099 = vadd.f32 0.0, %v2098
      %2100 = vmatmul.f32.gmra.mxu0 %v1962
      %v2101 = vpop.f32.mrf.mxu0
      %v2102 = vadd.f32 0.0, %v2101
      %2103 = vmatmul.f32.gmra.mxu0 %v1965
      %v2104 = vpop.f32.mrf.mxu0
      %v2105 = vadd.f32 0.0, %v2104
      %2106 = vmatmul.f32.gmra.mxu0 %v1968
      %v2107 = vpop.f32.mrf.mxu0
      %v2108 = vadd.f32 0.0, %v2107
      %2109 = vmatmul.f32.gmra.mxu0 %v1971
      %v2110 = vpop.f32.mrf.mxu0
      %v2111 = vadd.f32 0.0, %v2110
      %2112 = vmatmul.f32.gmra.mxu0 %v1974
      %v2113 = vpop.f32.mrf.mxu0
      %v2114 = vadd.f32 0.0, %v2113
      %2115 = vmatmul.f32.gmra.mxu0 %v1977
      %v2116 = vpop.f32.mrf.mxu0
      %v2117 = vadd.f32 0.0, %v2116
      %2118 = vmatmul.f32.gmra.mxu0 %v1980
      %v2119 = vpop.f32.mrf.mxu0
      %v2120 = vadd.f32 0.0, %v2119
      %2121 = vmatmul.f32.gmra.mxu0 %v1983
      %v2122 = vpop.f32.mrf.mxu0
      %v2123 = vadd.f32 0.0, %v2122
      %2124 = vmatmul.f32.gmra.mxu0 %v1986
      %v2125 = vpop.f32.mrf.mxu0
      %v2126 = vadd.f32 0.0, %v2125
      %2127 = vmatmul.f32.gmra.mxu0 %v1989
      %v2128 = vpop.f32.mrf.mxu0
      %v2129 = vadd.f32 0.0, %v2128
      %2130 = vmatmul.f32.gmra.mxu0 %v1992
      %v2131 = vpop.f32.mrf.mxu0
      %v2132 = vadd.f32 0.0, %v2131
      %2133 = vmatmul.f32.gmra.mxu0 %v1995
      %v2134 = vpop.f32.mrf.mxu0
      %v2135 = vadd.f32 0.0, %v2134
      %2136 = vmatmul.f32.gmra.mxu0 %v1998
      %v2137 = vpop.f32.mrf.mxu0
      %v2138 = vadd.f32 0.0, %v2137
      %2139 = vmatmul.f32.gmra.mxu0 %v2001
      %v2140 = vpop.f32.mrf.mxu0
      %v2141 = vadd.f32 0.0, %v2140
      %2142 = vmatmul.f32.gmra.mxu0 %v2004
      %v2143 = vpop.f32.mrf.mxu0
      %v2144 = vadd.f32 0.0, %v2143
      %2145 = vmatmul.f32.gmra.mxu0 %v2007
      %v2146 = vpop.f32.mrf.mxu0
      %v2147 = vadd.f32 0.0, %v2146
      %2148 = vmatmul.f32.gmra.mxu0 %v2010
      %v2149 = vpop.f32.mrf.mxu0
      %v2150 = vadd.f32 0.0, %v2149
      %2151 = vmatmul.f32.gmra.mxu0 %v2013
      %v2152 = vpop.f32.mrf.mxu0
      %v2153 = vadd.f32 0.0, %v2152
      %2154 = vmatmul.f32.gmra.mxu0 %v2016
      %v2155 = vpop.f32.mrf.mxu0
      %v2156 = vadd.f32 0.0, %v2155
      %2157 = vmatmul.f32.gmra.mxu0 %v2019
      %v2158 = vpop.f32.mrf.mxu0
      %v2159 = vadd.f32 0.0, %v2158
      %2160 = vmatmul.f32.gmra.mxu0 %v2022
      %v2161 = vpop.f32.mrf.mxu0
      %v2162 = vadd.f32 0.0, %v2161
      %2163 = vmatmul.f32.gmra.mxu0 %v2025
      %v2164 = vpop.f32.mrf.mxu0
      %v2165 = vadd.f32 0.0, %v2164
      %2166 = vmatmul.f32.gmra.mxu0 %v2028
      %v2167 = vpop.f32.mrf.mxu0
      %v2168 = vadd.f32 0.0, %v2167
      %2169 = vmatmul.f32.gmra.mxu0 %v2031
      %v2170 = vpop.f32.mrf.mxu0
      %v2171 = vadd.f32 0.0, %v2170
      %2172 = vmatmul.f32.gmra.mxu0 %v2034
      %v2173 = vpop.f32.mrf.mxu0
      %v2174 = vadd.f32 0.0, %v2173
      %2175 = vmatmul.f32.gmra.mxu0 %v2037
      %v2176 = vpop.f32.mrf.mxu0
      %v2177 = vadd.f32 0.0, %v2176
      %2178 = vmatmul.f32.gmra.mxu0 %v2040
      %v2179 = vpop.f32.mrf.mxu0
      %v2180 = vadd.f32 0.0, %v2179
      %2181 = vmatmul.f32.gmra.mxu0 %v2043
      %v2182 = vpop.f32.mrf.mxu0
      %v2183 = vadd.f32 0.0, %v2182
      %2184 = vmatmul.f32.gmra.mxu0 %v2046
      %v2185 = vpop.f32.mrf.mxu0
      %v2186 = vadd.f32 0.0, %v2185
      %2187 = vmatmul.f32.gmra.mxu0 %v2049
      %v2188 = vpop.f32.mrf.mxu0
      %v2189 = vadd.f32 0.0, %v2188
      %2190 = vmatmul.f32.gmra.mxu0 %v2052
      %v2191 = vpop.f32.mrf.mxu0
      %v2192 = vadd.f32 0.0, %v2191
      %2193 = vmatmul.f32.gmra.mxu0 %v2055
      %v2194 = vpop.f32.mrf.mxu0
      %v2195 = vadd.f32 0.0, %v2194
      %2196 = vmatmul.f32.gmra.mxu0 %v2058
      %v2197 = vpop.f32.mrf.mxu0
      %v2198 = vadd.f32 0.0, %v2197
      %2199 = vmatmul.f32.gmra.mxu0 %v2061
      %v2200 = vpop.f32.mrf.mxu0
      %v2201 = vadd.f32 0.0, %v2200
      %2202 = vmatmul.f32.gmra.mxu0 %v2064
      %v2203 = vpop.f32.mrf.mxu0
      %v2204 = vadd.f32 0.0, %v2203
      %2205 = vmatmul.f32.gmra.mxu0 %v2067
      %v2206 = vpop.f32.mrf.mxu0
      %v2207 = vadd.f32 0.0, %v2206
      %2208 = vdwg.mxu0
      %v2209 = vld [vmem:[%s262] sm:$0xff]
      %v2210 = vld [vmem:[%s262 + $0x8] sm:$0xff]
      %v2211 = vld [vmem:[%s262 + $0x10] sm:$0xff]
      %v2212 = vld [vmem:[%s262 + $0x18] sm:$0xff]
      %v2213 = vld [vmem:[%s262 + $0x20] sm:$0xff]
      %v2214 = vld [vmem:[%s262 + $0x28] sm:$0xff]
      %v2215 = vld [vmem:[%s262 + $0x30] sm:$0xff]
      %v2216 = vld [vmem:[%s262 + $0x38] sm:$0xff]
      %v2217 = vld [vmem:[%s262 + $0x40] sm:$0xff]
      %v2218 = vld [vmem:[%s262 + $0x48] sm:$0xff]
      %v2219 = vld [vmem:[%s262 + $0x50] sm:$0xff]
      %v2220 = vld [vmem:[%s262 + $0x58] sm:$0xff]
      %v2221 = vld [vmem:[%s262 + $0x60] sm:$0xff]
      %v2222 = vld [vmem:[%s262 + $0x68] sm:$0xff]
      %v2223 = vld [vmem:[%s262 + $0x70] sm:$0xff]
      %v2224 = vld [vmem:[%s262 + $0x78] sm:$0xff]
      %v2225 = vld [vmem:[%s262 + $0x80] sm:$0xff]
      %v2226 = vld [vmem:[%s262 + $0x88] sm:$0xff]
      %v2227 = vld [vmem:[%s262 + $0x90] sm:$0xff]
      %v2228 = vld [vmem:[%s262 + $0x98] sm:$0xff]
      %v2229 = vld [vmem:[%s262 + $0xa0] sm:$0xff]
      %v2230 = vld [vmem:[%s262 + $0xa8] sm:$0xff]
      %v2231 = vld [vmem:[%s262 + $0xb0] sm:$0xff]
      %v2232 = vld [vmem:[%s262 + $0xb8] sm:$0xff]
      %v2233 = vld [vmem:[%s262 + $0xc0] sm:$0xff]
      %v2234 = vld [vmem:[%s262 + $0xc8] sm:$0xff]
      %v2235 = vld [vmem:[%s262 + $0xd0] sm:$0xff]
      %v2236 = vld [vmem:[%s262 + $0xd8] sm:$0xff]
      %v2237 = vld [vmem:[%s262 + $0xe0] sm:$0xff]
      %v2238 = vld [vmem:[%s262 + $0xe8] sm:$0xff]
      %v2239 = vld [vmem:[%s262 + $0xf0] sm:$0xff]
      %v2240 = vld [vmem:[%s262 + $0xf8] sm:$0xff]
      %v2241 = vld [vmem:[%s262 + $0x100] sm:$0xff]
      %v2242 = vld [vmem:[%s262 + $0x108] sm:$0xff]
      %v2243 = vld [vmem:[%s262 + $0x110] sm:$0xff]
      %v2244 = vld [vmem:[%s262 + $0x118] sm:$0xff]
      %v2245 = vld [vmem:[%s262 + $0x120] sm:$0xff]
      %v2246 = vld [vmem:[%s262 + $0x128] sm:$0xff]
      %v2247 = vld [vmem:[%s262 + $0x130] sm:$0xff]
      %v2248 = vld [vmem:[%s262 + $0x138] sm:$0xff]
      %v2249 = vld [vmem:[%s262 + $0x140] sm:$0xff]
      %v2250 = vadd.f32 %v2209, %v2087
      %v2251 = vadd.f32 %v2210, %v2090
      %v2252 = vadd.f32 %v2211, %v2093
      %v2253 = vadd.f32 %v2212, %v2096
      %v2254 = vadd.f32 %v2213, %v2099
      %v2255 = vadd.f32 %v2214, %v2102
      %v2256 = vadd.f32 %v2215, %v2105
      %v2257 = vadd.f32 %v2216, %v2108
      %v2258 = vadd.f32 %v2217, %v2111
      %v2259 = vadd.f32 %v2218, %v2114
      %v2260 = vadd.f32 %v2219, %v2117
      %v2261 = vadd.f32 %v2220, %v2120
      %v2262 = vadd.f32 %v2221, %v2123
      %v2263 = vadd.f32 %v2222, %v2126
      %v2264 = vadd.f32 %v2223, %v2129
      %v2265 = vadd.f32 %v2224, %v2132
      %v2266 = vadd.f32 %v2225, %v2135
      %v2267 = vadd.f32 %v2226, %v2138
      %v2268 = vadd.f32 %v2227, %v2141
      %v2269 = vadd.f32 %v2228, %v2144
      %v2270 = vadd.f32 %v2229, %v2147
      %v2271 = vadd.f32 %v2230, %v2150
      %v2272 = vadd.f32 %v2231, %v2153
      %v2273 = vadd.f32 %v2232, %v2156
      %v2274 = vadd.f32 %v2233, %v2159
      %v2275 = vadd.f32 %v2234, %v2162
      %v2276 = vadd.f32 %v2235, %v2165
      %v2277 = vadd.f32 %v2236, %v2168
      %v2278 = vadd.f32 %v2237, %v2171
      %v2279 = vadd.f32 %v2238, %v2174
      %v2280 = vadd.f32 %v2239, %v2177
      %v2281 = vadd.f32 %v2240, %v2180
      %v2282 = vadd.f32 %v2241, %v2183
      %v2283 = vadd.f32 %v2242, %v2186
      %v2284 = vadd.f32 %v2243, %v2189
      %v2285 = vadd.f32 %v2244, %v2192
      %v2286 = vadd.f32 %v2245, %v2195
      %v2287 = vadd.f32 %v2246, %v2198
      %v2288 = vadd.f32 %v2247, %v2201
      %v2289 = vadd.f32 %v2248, %v2204
      %v2290 = vadd.f32 %v2249, %v2207
      %2291 = vst [vmem:[%s262] sm:$0xff] %v2250
      %2292 = vst [vmem:[%s262 + $0x8] sm:$0xff] %v2251
      %2293 = vst [vmem:[%s262 + $0x10] sm:$0xff] %v2252
      %2294 = vst [vmem:[%s262 + $0x18] sm:$0xff] %v2253
      %2295 = vst [vmem:[%s262 + $0x20] sm:$0xff] %v2254
      %2296 = vst [vmem:[%s262 + $0x28] sm:$0xff] %v2255
      %2297 = vst [vmem:[%s262 + $0x30] sm:$0xff] %v2256
      %2298 = vst [vmem:[%s262 + $0x38] sm:$0xff] %v2257
      %2299 = vst [vmem:[%s262 + $0x40] sm:$0xff] %v2258
      %2300 = vst [vmem:[%s262 + $0x48] sm:$0xff] %v2259
      %2301 = vst [vmem:[%s262 + $0x50] sm:$0xff] %v2260
      %2302 = vst [vmem:[%s262 + $0x58] sm:$0xff] %v2261
      %2303 = vst [vmem:[%s262 + $0x60] sm:$0xff] %v2262
      %2304 = vst [vmem:[%s262 + $0x68] sm:$0xff] %v2263
      %2305 = vst [vmem:[%s262 + $0x70] sm:$0xff] %v2264
      %2306 = vst [vmem:[%s262 + $0x78] sm:$0xff] %v2265
      %2307 = vst [vmem:[%s262 + $0x80] sm:$0xff] %v2266
      %2308 = vst [vmem:[%s262 + $0x88] sm:$0xff] %v2267
      %2309 = vst [vmem:[%s262 + $0x90] sm:$0xff] %v2268
      %2310 = vst [vmem:[%s262 + $0x98] sm:$0xff] %v2269
      %2311 = vst [vmem:[%s262 + $0xa0] sm:$0xff] %v2270
      %2312 = vst [vmem:[%s262 + $0xa8] sm:$0xff] %v2271
      %2313 = vst [vmem:[%s262 + $0xb0] sm:$0xff] %v2272
      %2314 = vst [vmem:[%s262 + $0xb8] sm:$0xff] %v2273
      %2315 = vst [vmem:[%s262 + $0xc0] sm:$0xff] %v2274
      %2316 = vst [vmem:[%s262 + $0xc8] sm:$0xff] %v2275
      %2317 = vst [vmem:[%s262 + $0xd0] sm:$0xff] %v2276
      %2318 = vst [vmem:[%s262 + $0xd8] sm:$0xff] %v2277
      %2319 = vst [vmem:[%s262 + $0xe0] sm:$0xff] %v2278
      %2320 = vst [vmem:[%s262 + $0xe8] sm:$0xff] %v2279
      %2321 = vst [vmem:[%s262 + $0xf0] sm:$0xff] %v2280
      %2322 = vst [vmem:[%s262 + $0xf8] sm:$0xff] %v2281
      %2323 = vst [vmem:[%s262 + $0x100] sm:$0xff] %v2282
      %2324 = vst [vmem:[%s262 + $0x108] sm:$0xff] %v2283
      %2325 = vst [vmem:[%s262 + $0x110] sm:$0xff] %v2284
      %2326 = vst [vmem:[%s262 + $0x118] sm:$0xff] %v2285
      %2327 = vst [vmem:[%s262 + $0x120] sm:$0xff] %v2286
      %2328 = vst [vmem:[%s262 + $0x128] sm:$0xff] %v2287
      %2329 = vst [vmem:[%s262 + $0x130] sm:$0xff] %v2288
      %2330 = vst [vmem:[%s262 + $0x138] sm:$0xff] %v2289
      %2331 = vst [vmem:[%s262 + $0x140] sm:$0xff] %v2290
      %v2332 = vld [vmem:[%s257 + $0x14] sm:$0xff]
      %v2333 = vld [vmem:[%s257 + $0x1c] sm:$0xff]
      %v2334 = vld [vmem:[%s257 + $0x24] sm:$0xff]
      %v2335 = vld [vmem:[%s257 + $0x2c] sm:$0xff]
      %v2336 = vld [vmem:[%s257 + $0x34] sm:$0xff]
      %v2337 = vld [vmem:[%s257 + $0x3c] sm:$0xff]
      %v2338 = vld [vmem:[%s257 + $0x44] sm:$0xff]
      %v2339 = vld [vmem:[%s257 + $0x4c] sm:$0xff]
      %v2340 = vld [vmem:[%s257 + $0x54] sm:$0xff]
      %v2341 = vld [vmem:[%s257 + $0x5c] sm:$0xff]
      %v2342 = vld [vmem:[%s257 + $0x64] sm:$0xff]
      %v2343 = vld [vmem:[%s257 + $0x6c] sm:$0xff]
      %v2344 = vld [vmem:[%s257 + $0x74] sm:$0xff]
      %v2345 = vld [vmem:[%s257 + $0x7c] sm:$0xff]
      %v2346 = vld [vmem:[%s257 + $0x84] sm:$0xff]
      %v2347 = vld [vmem:[%s257 + $0x8c] sm:$0xff]
      %v2348 = vld [vmem:[%s257 + $0x94] sm:$0xff]
      %v2349 = vld [vmem:[%s257 + $0x9c] sm:$0xff]
      %v2350 = vld [vmem:[%s257 + $0xa4] sm:$0xff]
      %v2351 = vld [vmem:[%s257 + $0xac] sm:$0xff]
      %v2352 = vld [vmem:[%s257 + $0xb4] sm:$0xff]
      %v2353 = vld [vmem:[%s257 + $0xbc] sm:$0xff]
      %v2354 = vld [vmem:[%s257 + $0xc4] sm:$0xff]
      %v2355 = vld [vmem:[%s257 + $0xcc] sm:$0xff]
      %v2356 = vld [vmem:[%s257 + $0xd4] sm:$0xff]
      %v2357 = vld [vmem:[%s257 + $0xdc] sm:$0xff]
      %v2358 = vld [vmem:[%s257 + $0xe4] sm:$0xff]
      %v2359 = vld [vmem:[%s257 + $0xec] sm:$0xff]
      %v2360 = vld [vmem:[%s257 + $0xf4] sm:$0xff]
      %v2361 = vld [vmem:[%s257 + $0xfc] sm:$0xff]
      %v2362 = vld [vmem:[%s257 + $0x104] sm:$0xff]
      %v2363 = vld [vmem:[%s257 + $0x10c] sm:$0xff]
      %v2364 = vld [vmem:[%s257 + $0x114] sm:$0xff]
      %v2365 = vld [vmem:[%s257 + $0x11c] sm:$0xff]
      %v2366 = vld [vmem:[%s257 + $0x124] sm:$0xff]
      %v2367 = vld [vmem:[%s257 + $0x12c] sm:$0xff]
      %v2368 = vld [vmem:[%s257 + $0x134] sm:$0xff]
      %v2369 = vld [vmem:[%s257 + $0x13c] sm:$0xff]
      %v2370 = vld [vmem:[%s257 + $0x144] sm:$0xff]
      %v2371 = vld [vmem:[%s257 + $0x14c] sm:$0xff]
      %v2372 = vld [vmem:[%s257 + $0x154] sm:$0xff]
      %s2373 = scalar_lea.vmem %s1, 40
      %v2374 = vld [vmem:[%s2373] sm:$0xff]
      %v2376 = vsel %vm311, %v2332, 0
      %v2379 = vsel %vm311, %v2333, 0
      %v2382 = vsel %vm311, %v2334, 0
      %v2385 = vsel %vm311, %v2335, 0
      %v2388 = vsel %vm311, %v2336, 0
      %v2391 = vsel %vm311, %v2337, 0
      %v2394 = vsel %vm311, %v2338, 0
      %v2397 = vsel %vm311, %v2339, 0
      %v2400 = vsel %vm311, %v2340, 0
      %v2403 = vsel %vm311, %v2341, 0
      %v2406 = vsel %vm311, %v2342, 0
      %v2409 = vsel %vm311, %v2343, 0
      %v2412 = vsel %vm311, %v2344, 0
      %v2415 = vsel %vm311, %v2345, 0
      %v2418 = vsel %vm311, %v2346, 0
      %v2421 = vsel %vm311, %v2347, 0
      %v2424 = vsel %vm311, %v2348, 0
      %v2427 = vsel %vm311, %v2349, 0
      %v2430 = vsel %vm311, %v2350, 0
      %v2433 = vsel %vm311, %v2351, 0
      %v2436 = vsel %vm311, %v2352, 0
      %v2439 = vsel %vm311, %v2353, 0
      %v2442 = vsel %vm311, %v2354, 0
      %v2445 = vsel %vm311, %v2355, 0
      %v2448 = vsel %vm311, %v2356, 0
      %v2451 = vsel %vm311, %v2357, 0
      %v2454 = vsel %vm311, %v2358, 0
      %v2457 = vsel %vm311, %v2359, 0
      %v2460 = vsel %vm311, %v2360, 0
      %v2463 = vsel %vm311, %v2361, 0
      %v2466 = vsel %vm311, %v2362, 0
      %v2469 = vsel %vm311, %v2363, 0
      %v2472 = vsel %vm311, %v2364, 0
      %v2475 = vsel %vm311, %v2365, 0
      %v2478 = vsel %vm311, %v2366, 0
      %v2481 = vsel %vm311, %v2367, 0
      %v2484 = vsel %vm311, %v2368, 0
      %v2487 = vsel %vm311, %v2369, 0
      %v2490 = vsel %vm311, %v2370, 0
      %v2493 = vsel %vm311, %v2371, 0
      %v2496 = vsel %vm311, %v2372, 0
      %2498 = vmatpush.msra.mxu0 0.0
      %2499 = vmatpush.msra.mxu0 0.0
      %2500 = vmatpush.msra.mxu0 0.0
      %2501 = vmatpush.msra.mxu0 0.0
      %2502 = vmatpush.msra.mxu0 0.0
      %2503 = vmatpush.msra.mxu0 0.0
      %2504 = vmatpush.msra.mxu0 0.0
      %2505 = vmatpush.msra.mxu0 0.0
      %2506 = vmatpush.msra.mxu0 0.0
      %2507 = vmatpush.msra.mxu0 0.0
      %2508 = vmatpush.msra.mxu0 0.0
      %2509 = vmatpush.msra.mxu0 0.0
      %2510 = vmatpush.msra.mxu0 0.0
      %2511 = vmatpush.msra.mxu0 0.0
      %2512 = vmatpush.msra.mxu0 0.0
      %2513 = vmatpush.msra.mxu0 %v2374
      %2514 = vmatmul.f32.gmra.mxu0 %v2376
      %v2515 = vpop.f32.mrf.mxu0
      %v2516 = vadd.f32 0.0, %v2515
      %2517 = vmatmul.f32.gmra.mxu0 %v2379
      %v2518 = vpop.f32.mrf.mxu0
      %v2519 = vadd.f32 0.0, %v2518
      %2520 = vmatmul.f32.gmra.mxu0 %v2382
      %v2521 = vpop.f32.mrf.mxu0
      %v2522 = vadd.f32 0.0, %v2521
      %2523 = vmatmul.f32.gmra.mxu0 %v2385
      %v2524 = vpop.f32.mrf.mxu0
      %v2525 = vadd.f32 0.0, %v2524
      %2526 = vmatmul.f32.gmra.mxu0 %v2388
      %v2527 = vpop.f32.mrf.mxu0
      %v2528 = vadd.f32 0.0, %v2527
      %2529 = vmatmul.f32.gmra.mxu0 %v2391
      %v2530 = vpop.f32.mrf.mxu0
      %v2531 = vadd.f32 0.0, %v2530
      %2532 = vmatmul.f32.gmra.mxu0 %v2394
      %v2533 = vpop.f32.mrf.mxu0
      %v2534 = vadd.f32 0.0, %v2533
      %2535 = vmatmul.f32.gmra.mxu0 %v2397
      %v2536 = vpop.f32.mrf.mxu0
      %v2537 = vadd.f32 0.0, %v2536
      %2538 = vmatmul.f32.gmra.mxu0 %v2400
      %v2539 = vpop.f32.mrf.mxu0
      %v2540 = vadd.f32 0.0, %v2539
      %2541 = vmatmul.f32.gmra.mxu0 %v2403
      %v2542 = vpop.f32.mrf.mxu0
      %v2543 = vadd.f32 0.0, %v2542
      %2544 = vmatmul.f32.gmra.mxu0 %v2406
      %v2545 = vpop.f32.mrf.mxu0
      %v2546 = vadd.f32 0.0, %v2545
      %2547 = vmatmul.f32.gmra.mxu0 %v2409
      %v2548 = vpop.f32.mrf.mxu0
      %v2549 = vadd.f32 0.0, %v2548
      %2550 = vmatmul.f32.gmra.mxu0 %v2412
      %v2551 = vpop.f32.mrf.mxu0
      %v2552 = vadd.f32 0.0, %v2551
      %2553 = vmatmul.f32.gmra.mxu0 %v2415
      %v2554 = vpop.f32.mrf.mxu0
      %v2555 = vadd.f32 0.0, %v2554
      %2556 = vmatmul.f32.gmra.mxu0 %v2418
      %v2557 = vpop.f32.mrf.mxu0
      %v2558 = vadd.f32 0.0, %v2557
      %2559 = vmatmul.f32.gmra.mxu0 %v2421
      %v2560 = vpop.f32.mrf.mxu0
      %v2561 = vadd.f32 0.0, %v2560
      %2562 = vmatmul.f32.gmra.mxu0 %v2424
      %v2563 = vpop.f32.mrf.mxu0
      %v2564 = vadd.f32 0.0, %v2563
      %2565 = vmatmul.f32.gmra.mxu0 %v2427
      %v2566 = vpop.f32.mrf.mxu0
      %v2567 = vadd.f32 0.0, %v2566
      %2568 = vmatmul.f32.gmra.mxu0 %v2430
      %v2569 = vpop.f32.mrf.mxu0
      %v2570 = vadd.f32 0.0, %v2569
      %2571 = vmatmul.f32.gmra.mxu0 %v2433
      %v2572 = vpop.f32.mrf.mxu0
      %v2573 = vadd.f32 0.0, %v2572
      %2574 = vmatmul.f32.gmra.mxu0 %v2436
      %v2575 = vpop.f32.mrf.mxu0
      %v2576 = vadd.f32 0.0, %v2575
      %2577 = vmatmul.f32.gmra.mxu0 %v2439
      %v2578 = vpop.f32.mrf.mxu0
      %v2579 = vadd.f32 0.0, %v2578
      %2580 = vmatmul.f32.gmra.mxu0 %v2442
      %v2581 = vpop.f32.mrf.mxu0
      %v2582 = vadd.f32 0.0, %v2581
      %2583 = vmatmul.f32.gmra.mxu0 %v2445
      %v2584 = vpop.f32.mrf.mxu0
      %v2585 = vadd.f32 0.0, %v2584
      %2586 = vmatmul.f32.gmra.mxu0 %v2448
      %v2587 = vpop.f32.mrf.mxu0
      %v2588 = vadd.f32 0.0, %v2587
      %2589 = vmatmul.f32.gmra.mxu0 %v2451
      %v2590 = vpop.f32.mrf.mxu0
      %v2591 = vadd.f32 0.0, %v2590
      %2592 = vmatmul.f32.gmra.mxu0 %v2454
      %v2593 = vpop.f32.mrf.mxu0
      %v2594 = vadd.f32 0.0, %v2593
      %2595 = vmatmul.f32.gmra.mxu0 %v2457
      %v2596 = vpop.f32.mrf.mxu0
      %v2597 = vadd.f32 0.0, %v2596
      %2598 = vmatmul.f32.gmra.mxu0 %v2460
      %v2599 = vpop.f32.mrf.mxu0
      %v2600 = vadd.f32 0.0, %v2599
      %2601 = vmatmul.f32.gmra.mxu0 %v2463
      %v2602 = vpop.f32.mrf.mxu0
      %v2603 = vadd.f32 0.0, %v2602
      %2604 = vmatmul.f32.gmra.mxu0 %v2466
      %v2605 = vpop.f32.mrf.mxu0
      %v2606 = vadd.f32 0.0, %v2605
      %2607 = vmatmul.f32.gmra.mxu0 %v2469
      %v2608 = vpop.f32.mrf.mxu0
      %v2609 = vadd.f32 0.0, %v2608
      %2610 = vmatmul.f32.gmra.mxu0 %v2472
      %v2611 = vpop.f32.mrf.mxu0
      %v2612 = vadd.f32 0.0, %v2611
      %2613 = vmatmul.f32.gmra.mxu0 %v2475
      %v2614 = vpop.f32.mrf.mxu0
      %v2615 = vadd.f32 0.0, %v2614
      %2616 = vmatmul.f32.gmra.mxu0 %v2478
      %v2617 = vpop.f32.mrf.mxu0
      %v2618 = vadd.f32 0.0, %v2617
      %2619 = vmatmul.f32.gmra.mxu0 %v2481
      %v2620 = vpop.f32.mrf.mxu0
      %v2621 = vadd.f32 0.0, %v2620
      %2622 = vmatmul.f32.gmra.mxu0 %v2484
      %v2623 = vpop.f32.mrf.mxu0
      %v2624 = vadd.f32 0.0, %v2623
      %2625 = vmatmul.f32.gmra.mxu0 %v2487
      %v2626 = vpop.f32.mrf.mxu0
      %v2627 = vadd.f32 0.0, %v2626
      %2628 = vmatmul.f32.gmra.mxu0 %v2490
      %v2629 = vpop.f32.mrf.mxu0
      %v2630 = vadd.f32 0.0, %v2629
      %2631 = vmatmul.f32.gmra.mxu0 %v2493
      %v2632 = vpop.f32.mrf.mxu0
      %v2633 = vadd.f32 0.0, %v2632
      %2634 = vmatmul.f32.gmra.mxu0 %v2496
      %v2635 = vpop.f32.mrf.mxu0
      %v2636 = vadd.f32 0.0, %v2635
      %2637 = vdwg.mxu0
      %v2638 = vld [vmem:[%s262] sm:$0xff]
      %v2639 = vld [vmem:[%s262 + $0x8] sm:$0xff]
      %v2640 = vld [vmem:[%s262 + $0x10] sm:$0xff]
      %v2641 = vld [vmem:[%s262 + $0x18] sm:$0xff]
      %v2642 = vld [vmem:[%s262 + $0x20] sm:$0xff]
      %v2643 = vld [vmem:[%s262 + $0x28] sm:$0xff]
      %v2644 = vld [vmem:[%s262 + $0x30] sm:$0xff]
      %v2645 = vld [vmem:[%s262 + $0x38] sm:$0xff]
      %v2646 = vld [vmem:[%s262 + $0x40] sm:$0xff]
      %v2647 = vld [vmem:[%s262 + $0x48] sm:$0xff]
      %v2648 = vld [vmem:[%s262 + $0x50] sm:$0xff]
      %v2649 = vld [vmem:[%s262 + $0x58] sm:$0xff]
      %v2650 = vld [vmem:[%s262 + $0x60] sm:$0xff]
      %v2651 = vld [vmem:[%s262 + $0x68] sm:$0xff]
      %v2652 = vld [vmem:[%s262 + $0x70] sm:$0xff]
      %v2653 = vld [vmem:[%s262 + $0x78] sm:$0xff]
      %v2654 = vld [vmem:[%s262 + $0x80] sm:$0xff]
      %v2655 = vld [vmem:[%s262 + $0x88] sm:$0xff]
      %v2656 = vld [vmem:[%s262 + $0x90] sm:$0xff]
      %v2657 = vld [vmem:[%s262 + $0x98] sm:$0xff]
      %v2658 = vld [vmem:[%s262 + $0xa0] sm:$0xff]
      %v2659 = vld [vmem:[%s262 + $0xa8] sm:$0xff]
      %v2660 = vld [vmem:[%s262 + $0xb0] sm:$0xff]
      %v2661 = vld [vmem:[%s262 + $0xb8] sm:$0xff]
      %v2662 = vld [vmem:[%s262 + $0xc0] sm:$0xff]
      %v2663 = vld [vmem:[%s262 + $0xc8] sm:$0xff]
      %v2664 = vld [vmem:[%s262 + $0xd0] sm:$0xff]
      %v2665 = vld [vmem:[%s262 + $0xd8] sm:$0xff]
      %v2666 = vld [vmem:[%s262 + $0xe0] sm:$0xff]
      %v2667 = vld [vmem:[%s262 + $0xe8] sm:$0xff]
      %v2668 = vld [vmem:[%s262 + $0xf0] sm:$0xff]
      %v2669 = vld [vmem:[%s262 + $0xf8] sm:$0xff]
      %v2670 = vld [vmem:[%s262 + $0x100] sm:$0xff]
      %v2671 = vld [vmem:[%s262 + $0x108] sm:$0xff]
      %v2672 = vld [vmem:[%s262 + $0x110] sm:$0xff]
      %v2673 = vld [vmem:[%s262 + $0x118] sm:$0xff]
      %v2674 = vld [vmem:[%s262 + $0x120] sm:$0xff]
      %v2675 = vld [vmem:[%s262 + $0x128] sm:$0xff]
      %v2676 = vld [vmem:[%s262 + $0x130] sm:$0xff]
      %v2677 = vld [vmem:[%s262 + $0x138] sm:$0xff]
      %v2678 = vld [vmem:[%s262 + $0x140] sm:$0xff]
      %v2679 = vadd.f32 %v2638, %v2516
      %v2680 = vadd.f32 %v2639, %v2519
      %v2681 = vadd.f32 %v2640, %v2522
      %v2682 = vadd.f32 %v2641, %v2525
      %v2683 = vadd.f32 %v2642, %v2528
      %v2684 = vadd.f32 %v2643, %v2531
      %v2685 = vadd.f32 %v2644, %v2534
      %v2686 = vadd.f32 %v2645, %v2537
      %v2687 = vadd.f32 %v2646, %v2540
      %v2688 = vadd.f32 %v2647, %v2543
      %v2689 = vadd.f32 %v2648, %v2546
      %v2690 = vadd.f32 %v2649, %v2549
      %v2691 = vadd.f32 %v2650, %v2552
      %v2692 = vadd.f32 %v2651, %v2555
      %v2693 = vadd.f32 %v2652, %v2558
      %v2694 = vadd.f32 %v2653, %v2561
      %v2695 = vadd.f32 %v2654, %v2564
      %v2696 = vadd.f32 %v2655, %v2567
      %v2697 = vadd.f32 %v2656, %v2570
      %v2698 = vadd.f32 %v2657, %v2573
      %v2699 = vadd.f32 %v2658, %v2576
      %v2700 = vadd.f32 %v2659, %v2579
      %v2701 = vadd.f32 %v2660, %v2582
      %v2702 = vadd.f32 %v2661, %v2585
      %v2703 = vadd.f32 %v2662, %v2588
      %v2704 = vadd.f32 %v2663, %v2591
      %v2705 = vadd.f32 %v2664, %v2594
      %v2706 = vadd.f32 %v2665, %v2597
      %v2707 = vadd.f32 %v2666, %v2600
      %v2708 = vadd.f32 %v2667, %v2603
      %v2709 = vadd.f32 %v2668, %v2606
      %v2710 = vadd.f32 %v2669, %v2609
      %v2711 = vadd.f32 %v2670, %v2612
      %v2712 = vadd.f32 %v2671, %v2615
      %v2713 = vadd.f32 %v2672, %v2618
      %v2714 = vadd.f32 %v2673, %v2621
      %v2715 = vadd.f32 %v2674, %v2624
      %v2716 = vadd.f32 %v2675, %v2627
      %v2717 = vadd.f32 %v2676, %v2630
      %v2718 = vadd.f32 %v2677, %v2633
      %v2719 = vadd.f32 %v2678, %v2636
      %2720 = vst [vmem:[%s262] sm:$0xff] %v2679
      %2721 = vst [vmem:[%s262 + $0x8] sm:$0xff] %v2680
      %2722 = vst [vmem:[%s262 + $0x10] sm:$0xff] %v2681
      %2723 = vst [vmem:[%s262 + $0x18] sm:$0xff] %v2682
      %2724 = vst [vmem:[%s262 + $0x20] sm:$0xff] %v2683
      %2725 = vst [vmem:[%s262 + $0x28] sm:$0xff] %v2684
      %2726 = vst [vmem:[%s262 + $0x30] sm:$0xff] %v2685
      %2727 = vst [vmem:[%s262 + $0x38] sm:$0xff] %v2686
      %2728 = vst [vmem:[%s262 + $0x40] sm:$0xff] %v2687
      %2729 = vst [vmem:[%s262 + $0x48] sm:$0xff] %v2688
      %2730 = vst [vmem:[%s262 + $0x50] sm:$0xff] %v2689
      %2731 = vst [vmem:[%s262 + $0x58] sm:$0xff] %v2690
      %2732 = vst [vmem:[%s262 + $0x60] sm:$0xff] %v2691
      %2733 = vst [vmem:[%s262 + $0x68] sm:$0xff] %v2692
      %2734 = vst [vmem:[%s262 + $0x70] sm:$0xff] %v2693
      %2735 = vst [vmem:[%s262 + $0x78] sm:$0xff] %v2694
      %2736 = vst [vmem:[%s262 + $0x80] sm:$0xff] %v2695
      %2737 = vst [vmem:[%s262 + $0x88] sm:$0xff] %v2696
      %2738 = vst [vmem:[%s262 + $0x90] sm:$0xff] %v2697
      %2739 = vst [vmem:[%s262 + $0x98] sm:$0xff] %v2698
      %2740 = vst [vmem:[%s262 + $0xa0] sm:$0xff] %v2699
      %2741 = vst [vmem:[%s262 + $0xa8] sm:$0xff] %v2700
      %2742 = vst [vmem:[%s262 + $0xb0] sm:$0xff] %v2701
      %2743 = vst [vmem:[%s262 + $0xb8] sm:$0xff] %v2702
      %2744 = vst [vmem:[%s262 + $0xc0] sm:$0xff] %v2703
      %2745 = vst [vmem:[%s262 + $0xc8] sm:$0xff] %v2704
      %2746 = vst [vmem:[%s262 + $0xd0] sm:$0xff] %v2705
      %2747 = vst [vmem:[%s262 + $0xd8] sm:$0xff] %v2706
      %2748 = vst [vmem:[%s262 + $0xe0] sm:$0xff] %v2707
      %2749 = vst [vmem:[%s262 + $0xe8] sm:$0xff] %v2708
      %2750 = vst [vmem:[%s262 + $0xf0] sm:$0xff] %v2709
      %2751 = vst [vmem:[%s262 + $0xf8] sm:$0xff] %v2710
      %2752 = vst [vmem:[%s262 + $0x100] sm:$0xff] %v2711
      %2753 = vst [vmem:[%s262 + $0x108] sm:$0xff] %v2712
      %2754 = vst [vmem:[%s262 + $0x110] sm:$0xff] %v2713
      %2755 = vst [vmem:[%s262 + $0x118] sm:$0xff] %v2714
      %2756 = vst [vmem:[%s262 + $0x120] sm:$0xff] %v2715
      %2757 = vst [vmem:[%s262 + $0x128] sm:$0xff] %v2716
      %2758 = vst [vmem:[%s262 + $0x130] sm:$0xff] %v2717
      %2759 = vst [vmem:[%s262 + $0x138] sm:$0xff] %v2718
      %2760 = vst [vmem:[%s262 + $0x140] sm:$0xff] %v2719
      %v2761 = vld [vmem:[%s257 + $0x24] sm:$0xff]
      %v2762 = vld [vmem:[%s257 + $0x2c] sm:$0xff]
      %v2763 = vld [vmem:[%s257 + $0x34] sm:$0xff]
      %v2764 = vld [vmem:[%s257 + $0x3c] sm:$0xff]
      %v2765 = vld [vmem:[%s257 + $0x44] sm:$0xff]
      %v2766 = vld [vmem:[%s257 + $0x4c] sm:$0xff]
      %v2767 = vld [vmem:[%s257 + $0x54] sm:$0xff]
      %v2768 = vld [vmem:[%s257 + $0x5c] sm:$0xff]
      %v2769 = vld [vmem:[%s257 + $0x64] sm:$0xff]
      %v2770 = vld [vmem:[%s257 + $0x6c] sm:$0xff]
      %v2771 = vld [vmem:[%s257 + $0x74] sm:$0xff]
      %v2772 = vld [vmem:[%s257 + $0x7c] sm:$0xff]
      %v2773 = vld [vmem:[%s257 + $0x84] sm:$0xff]
      %v2774 = vld [vmem:[%s257 + $0x8c] sm:$0xff]
      %v2775 = vld [vmem:[%s257 + $0x94] sm:$0xff]
      %v2776 = vld [vmem:[%s257 + $0x9c] sm:$0xff]
      %v2777 = vld [vmem:[%s257 + $0xa4] sm:$0xff]
      %v2778 = vld [vmem:[%s257 + $0xac] sm:$0xff]
      %v2779 = vld [vmem:[%s257 + $0xb4] sm:$0xff]
      %v2780 = vld [vmem:[%s257 + $0xbc] sm:$0xff]
      %v2781 = vld [vmem:[%s257 + $0xc4] sm:$0xff]
      %v2782 = vld [vmem:[%s257 + $0xcc] sm:$0xff]
      %v2783 = vld [vmem:[%s257 + $0xd4] sm:$0xff]
      %v2784 = vld [vmem:[%s257 + $0xdc] sm:$0xff]
      %v2785 = vld [vmem:[%s257 + $0xe4] sm:$0xff]
      %v2786 = vld [vmem:[%s257 + $0xec] sm:$0xff]
      %v2787 = vld [vmem:[%s257 + $0xf4] sm:$0xff]
      %v2788 = vld [vmem:[%s257 + $0xfc] sm:$0xff]
      %v2789 = vld [vmem:[%s257 + $0x104] sm:$0xff]
      %v2790 = vld [vmem:[%s257 + $0x10c] sm:$0xff]
      %v2791 = vld [vmem:[%s257 + $0x114] sm:$0xff]
      %v2792 = vld [vmem:[%s257 + $0x11c] sm:$0xff]
      %v2793 = vld [vmem:[%s257 + $0x124] sm:$0xff]
      %v2794 = vld [vmem:[%s257 + $0x12c] sm:$0xff]
      %v2795 = vld [vmem:[%s257 + $0x134] sm:$0xff]
      %v2796 = vld [vmem:[%s257 + $0x13c] sm:$0xff]
      %v2797 = vld [vmem:[%s257 + $0x144] sm:$0xff]
      %v2798 = vld [vmem:[%s257 + $0x14c] sm:$0xff]
      %v2799 = vld [vmem:[%s257 + $0x154] sm:$0xff]
      %v2800 = vld [vmem:[%s257 + $0x15c] sm:$0xff]
      %v2801 = vld [vmem:[%s257 + $0x164] sm:$0xff]
      %s2802 = scalar_lea.vmem %s1, 48
      %v2803 = vld [vmem:[%s2802] sm:$0xff]
      %v2805 = vsel %vm311, %v2761, 0
      %v2808 = vsel %vm311, %v2762, 0
      %v2811 = vsel %vm311, %v2763, 0
      %v2814 = vsel %vm311, %v2764, 0
      %v2817 = vsel %vm311, %v2765, 0
      %v2820 = vsel %vm311, %v2766, 0
      %v2823 = vsel %vm311, %v2767, 0
      %v2826 = vsel %vm311, %v2768, 0
      %v2829 = vsel %vm311, %v2769, 0
      %v2832 = vsel %vm311, %v2770, 0
      %v2835 = vsel %vm311, %v2771, 0
      %v2838 = vsel %vm311, %v2772, 0
      %v2841 = vsel %vm311, %v2773, 0
      %v2844 = vsel %vm311, %v2774, 0
      %v2847 = vsel %vm311, %v2775, 0
      %v2850 = vsel %vm311, %v2776, 0
      %v2853 = vsel %vm311, %v2777, 0
      %v2856 = vsel %vm311, %v2778, 0
      %v2859 = vsel %vm311, %v2779, 0
      %v2862 = vsel %vm311, %v2780, 0
      %v2865 = vsel %vm311, %v2781, 0
      %v2868 = vsel %vm311, %v2782, 0
      %v2871 = vsel %vm311, %v2783, 0
      %v2874 = vsel %vm311, %v2784, 0
      %v2877 = vsel %vm311, %v2785, 0
      %v2880 = vsel %vm311, %v2786, 0
      %v2883 = vsel %vm311, %v2787, 0
      %v2886 = vsel %vm311, %v2788, 0
      %v2889 = vsel %vm311, %v2789, 0
      %v2892 = vsel %vm311, %v2790, 0
      %v2895 = vsel %vm311, %v2791, 0
      %v2898 = vsel %vm311, %v2792, 0
      %v2901 = vsel %vm311, %v2793, 0
      %v2904 = vsel %vm311, %v2794, 0
      %v2907 = vsel %vm311, %v2795, 0
      %v2910 = vsel %vm311, %v2796, 0
      %v2913 = vsel %vm311, %v2797, 0
      %v2916 = vsel %vm311, %v2798, 0
      %v2919 = vsel %vm311, %v2799, 0
      %v2922 = vsel %vm311, %v2800, 0
      %v2925 = vsel %vm311, %v2801, 0
      %2927 = vmatpush.msra.mxu0 0.0
      %2928 = vmatpush.msra.mxu0 0.0
      %2929 = vmatpush.msra.mxu0 0.0
      %2930 = vmatpush.msra.mxu0 0.0
      %2931 = vmatpush.msra.mxu0 0.0
      %2932 = vmatpush.msra.mxu0 0.0
      %2933 = vmatpush.msra.mxu0 0.0
      %2934 = vmatpush.msra.mxu0 0.0
      %2935 = vmatpush.msra.mxu0 0.0
      %2936 = vmatpush.msra.mxu0 0.0
      %2937 = vmatpush.msra.mxu0 0.0
      %2938 = vmatpush.msra.mxu0 0.0
      %2939 = vmatpush.msra.mxu0 0.0
      %2940 = vmatpush.msra.mxu0 0.0
      %2941 = vmatpush.msra.mxu0 0.0
      %2942 = vmatpush.msra.mxu0 %v2803
      %2943 = vmatmul.f32.gmra.mxu0 %v2805
      %v2944 = vpop.f32.mrf.mxu0
      %v2945 = vadd.f32 0.0, %v2944
      %2946 = vmatmul.f32.gmra.mxu0 %v2808
      %v2947 = vpop.f32.mrf.mxu0
      %v2948 = vadd.f32 0.0, %v2947
      %2949 = vmatmul.f32.gmra.mxu0 %v2811
      %v2950 = vpop.f32.mrf.mxu0
      %v2951 = vadd.f32 0.0, %v2950
      %2952 = vmatmul.f32.gmra.mxu0 %v2814
      %v2953 = vpop.f32.mrf.mxu0
      %v2954 = vadd.f32 0.0, %v2953
      %2955 = vmatmul.f32.gmra.mxu0 %v2817
      %v2956 = vpop.f32.mrf.mxu0
      %v2957 = vadd.f32 0.0, %v2956
      %2958 = vmatmul.f32.gmra.mxu0 %v2820
      %v2959 = vpop.f32.mrf.mxu0
      %v2960 = vadd.f32 0.0, %v2959
      %2961 = vmatmul.f32.gmra.mxu0 %v2823
      %v2962 = vpop.f32.mrf.mxu0
      %v2963 = vadd.f32 0.0, %v2962
      %2964 = vmatmul.f32.gmra.mxu0 %v2826
      %v2965 = vpop.f32.mrf.mxu0
      %v2966 = vadd.f32 0.0, %v2965
      %2967 = vmatmul.f32.gmra.mxu0 %v2829
      %v2968 = vpop.f32.mrf.mxu0
      %v2969 = vadd.f32 0.0, %v2968
      %2970 = vmatmul.f32.gmra.mxu0 %v2832
      %v2971 = vpop.f32.mrf.mxu0
      %v2972 = vadd.f32 0.0, %v2971
      %2973 = vmatmul.f32.gmra.mxu0 %v2835
      %v2974 = vpop.f32.mrf.mxu0
      %v2975 = vadd.f32 0.0, %v2974
      %2976 = vmatmul.f32.gmra.mxu0 %v2838
      %v2977 = vpop.f32.mrf.mxu0
      %v2978 = vadd.f32 0.0, %v2977
      %2979 = vmatmul.f32.gmra.mxu0 %v2841
      %v2980 = vpop.f32.mrf.mxu0
      %v2981 = vadd.f32 0.0, %v2980
      %2982 = vmatmul.f32.gmra.mxu0 %v2844
      %v2983 = vpop.f32.mrf.mxu0
      %v2984 = vadd.f32 0.0, %v2983
      %2985 = vmatmul.f32.gmra.mxu0 %v2847
      %v2986 = vpop.f32.mrf.mxu0
      %v2987 = vadd.f32 0.0, %v2986
      %2988 = vmatmul.f32.gmra.mxu0 %v2850
      %v2989 = vpop.f32.mrf.mxu0
      %v2990 = vadd.f32 0.0, %v2989
      %2991 = vmatmul.f32.gmra.mxu0 %v2853
      %v2992 = vpop.f32.mrf.mxu0
      %v2993 = vadd.f32 0.0, %v2992
      %2994 = vmatmul.f32.gmra.mxu0 %v2856
      %v2995 = vpop.f32.mrf.mxu0
      %v2996 = vadd.f32 0.0, %v2995
      %2997 = vmatmul.f32.gmra.mxu0 %v2859
      %v2998 = vpop.f32.mrf.mxu0
      %v2999 = vadd.f32 0.0, %v2998
      %3000 = vmatmul.f32.gmra.mxu0 %v2862
      %v3001 = vpop.f32.mrf.mxu0
      %v3002 = vadd.f32 0.0, %v3001
      %3003 = vmatmul.f32.gmra.mxu0 %v2865
      %v3004 = vpop.f32.mrf.mxu0
      %v3005 = vadd.f32 0.0, %v3004
      %3006 = vmatmul.f32.gmra.mxu0 %v2868
      %v3007 = vpop.f32.mrf.mxu0
      %v3008 = vadd.f32 0.0, %v3007
      %3009 = vmatmul.f32.gmra.mxu0 %v2871
      %v3010 = vpop.f32.mrf.mxu0
      %v3011 = vadd.f32 0.0, %v3010
      %3012 = vmatmul.f32.gmra.mxu0 %v2874
      %v3013 = vpop.f32.mrf.mxu0
      %v3014 = vadd.f32 0.0, %v3013
      %3015 = vmatmul.f32.gmra.mxu0 %v2877
      %v3016 = vpop.f32.mrf.mxu0
      %v3017 = vadd.f32 0.0, %v3016
      %3018 = vmatmul.f32.gmra.mxu0 %v2880
      %v3019 = vpop.f32.mrf.mxu0
      %v3020 = vadd.f32 0.0, %v3019
      %3021 = vmatmul.f32.gmra.mxu0 %v2883
      %v3022 = vpop.f32.mrf.mxu0
      %v3023 = vadd.f32 0.0, %v3022
      %3024 = vmatmul.f32.gmra.mxu0 %v2886
      %v3025 = vpop.f32.mrf.mxu0
      %v3026 = vadd.f32 0.0, %v3025
      %3027 = vmatmul.f32.gmra.mxu0 %v2889
      %v3028 = vpop.f32.mrf.mxu0
      %v3029 = vadd.f32 0.0, %v3028
      %3030 = vmatmul.f32.gmra.mxu0 %v2892
      %v3031 = vpop.f32.mrf.mxu0
      %v3032 = vadd.f32 0.0, %v3031
      %3033 = vmatmul.f32.gmra.mxu0 %v2895
      %v3034 = vpop.f32.mrf.mxu0
      %v3035 = vadd.f32 0.0, %v3034
      %3036 = vmatmul.f32.gmra.mxu0 %v2898
      %v3037 = vpop.f32.mrf.mxu0
      %v3038 = vadd.f32 0.0, %v3037
      %3039 = vmatmul.f32.gmra.mxu0 %v2901
      %v3040 = vpop.f32.mrf.mxu0
      %v3041 = vadd.f32 0.0, %v3040
      %3042 = vmatmul.f32.gmra.mxu0 %v2904
      %v3043 = vpop.f32.mrf.mxu0
      %v3044 = vadd.f32 0.0, %v3043
      %3045 = vmatmul.f32.gmra.mxu0 %v2907
      %v3046 = vpop.f32.mrf.mxu0
      %v3047 = vadd.f32 0.0, %v3046
      %3048 = vmatmul.f32.gmra.mxu0 %v2910
      %v3049 = vpop.f32.mrf.mxu0
      %v3050 = vadd.f32 0.0, %v3049
      %3051 = vmatmul.f32.gmra.mxu0 %v2913
      %v3052 = vpop.f32.mrf.mxu0
      %v3053 = vadd.f32 0.0, %v3052
      %3054 = vmatmul.f32.gmra.mxu0 %v2916
      %v3055 = vpop.f32.mrf.mxu0
      %v3056 = vadd.f32 0.0, %v3055
      %3057 = vmatmul.f32.gmra.mxu0 %v2919
      %v3058 = vpop.f32.mrf.mxu0
      %v3059 = vadd.f32 0.0, %v3058
      %3060 = vmatmul.f32.gmra.mxu0 %v2922
      %v3061 = vpop.f32.mrf.mxu0
      %v3062 = vadd.f32 0.0, %v3061
      %3063 = vmatmul.f32.gmra.mxu0 %v2925
      %v3064 = vpop.f32.mrf.mxu0
      %v3065 = vadd.f32 0.0, %v3064
      %3066 = vdwg.mxu0
      %v3067 = vld [vmem:[%s262] sm:$0xff]
      %v3068 = vld [vmem:[%s262 + $0x8] sm:$0xff]
      %v3069 = vld [vmem:[%s262 + $0x10] sm:$0xff]
      %v3070 = vld [vmem:[%s262 + $0x18] sm:$0xff]
      %v3071 = vld [vmem:[%s262 + $0x20] sm:$0xff]
      %v3072 = vld [vmem:[%s262 + $0x28] sm:$0xff]
      %v3073 = vld [vmem:[%s262 + $0x30] sm:$0xff]
      %v3074 = vld [vmem:[%s262 + $0x38] sm:$0xff]
      %v3075 = vld [vmem:[%s262 + $0x40] sm:$0xff]
      %v3076 = vld [vmem:[%s262 + $0x48] sm:$0xff]
      %v3077 = vld [vmem:[%s262 + $0x50] sm:$0xff]
      %v3078 = vld [vmem:[%s262 + $0x58] sm:$0xff]
      %v3079 = vld [vmem:[%s262 + $0x60] sm:$0xff]
      %v3080 = vld [vmem:[%s262 + $0x68] sm:$0xff]
      %v3081 = vld [vmem:[%s262 + $0x70] sm:$0xff]
      %v3082 = vld [vmem:[%s262 + $0x78] sm:$0xff]
      %v3083 = vld [vmem:[%s262 + $0x80] sm:$0xff]
      %v3084 = vld [vmem:[%s262 + $0x88] sm:$0xff]
      %v3085 = vld [vmem:[%s262 + $0x90] sm:$0xff]
      %v3086 = vld [vmem:[%s262 + $0x98] sm:$0xff]
      %v3087 = vld [vmem:[%s262 + $0xa0] sm:$0xff]
      %v3088 = vld [vmem:[%s262 + $0xa8] sm:$0xff]
      %v3089 = vld [vmem:[%s262 + $0xb0] sm:$0xff]
      %v3090 = vld [vmem:[%s262 + $0xb8] sm:$0xff]
      %v3091 = vld [vmem:[%s262 + $0xc0] sm:$0xff]
      %v3092 = vld [vmem:[%s262 + $0xc8] sm:$0xff]
      %v3093 = vld [vmem:[%s262 + $0xd0] sm:$0xff]
      %v3094 = vld [vmem:[%s262 + $0xd8] sm:$0xff]
      %v3095 = vld [vmem:[%s262 + $0xe0] sm:$0xff]
      %v3096 = vld [vmem:[%s262 + $0xe8] sm:$0xff]
      %v3097 = vld [vmem:[%s262 + $0xf0] sm:$0xff]
      %v3098 = vld [vmem:[%s262 + $0xf8] sm:$0xff]
      %v3099 = vld [vmem:[%s262 + $0x100] sm:$0xff]
      %v3100 = vld [vmem:[%s262 + $0x108] sm:$0xff]
      %v3101 = vld [vmem:[%s262 + $0x110] sm:$0xff]
      %v3102 = vld [vmem:[%s262 + $0x118] sm:$0xff]
      %v3103 = vld [vmem:[%s262 + $0x120] sm:$0xff]
      %v3104 = vld [vmem:[%s262 + $0x128] sm:$0xff]
      %v3105 = vld [vmem:[%s262 + $0x130] sm:$0xff]
      %v3106 = vld [vmem:[%s262 + $0x138] sm:$0xff]
      %v3107 = vld [vmem:[%s262 + $0x140] sm:$0xff]
      %v3108 = vadd.f32 %v3067, %v2945
      %v3109 = vadd.f32 %v3068, %v2948
      %v3110 = vadd.f32 %v3069, %v2951
      %v3111 = vadd.f32 %v3070, %v2954
      %v3112 = vadd.f32 %v3071, %v2957
      %v3113 = vadd.f32 %v3072, %v2960
      %v3114 = vadd.f32 %v3073, %v2963
      %v3115 = vadd.f32 %v3074, %v2966
      %v3116 = vadd.f32 %v3075, %v2969
      %v3117 = vadd.f32 %v3076, %v2972
      %v3118 = vadd.f32 %v3077, %v2975
      %v3119 = vadd.f32 %v3078, %v2978
      %v3120 = vadd.f32 %v3079, %v2981
      %v3121 = vadd.f32 %v3080, %v2984
      %v3122 = vadd.f32 %v3081, %v2987
      %v3123 = vadd.f32 %v3082, %v2990
      %v3124 = vadd.f32 %v3083, %v2993
      %v3125 = vadd.f32 %v3084, %v2996
      %v3126 = vadd.f32 %v3085, %v2999
      %v3127 = vadd.f32 %v3086, %v3002
      %v3128 = vadd.f32 %v3087, %v3005
      %v3129 = vadd.f32 %v3088, %v3008
      %v3130 = vadd.f32 %v3089, %v3011
      %v3131 = vadd.f32 %v3090, %v3014
      %v3132 = vadd.f32 %v3091, %v3017
      %v3133 = vadd.f32 %v3092, %v3020
      %v3134 = vadd.f32 %v3093, %v3023
      %v3135 = vadd.f32 %v3094, %v3026
      %v3136 = vadd.f32 %v3095, %v3029
      %v3137 = vadd.f32 %v3096, %v3032
      %v3138 = vadd.f32 %v3097, %v3035
      %v3139 = vadd.f32 %v3098, %v3038
      %v3140 = vadd.f32 %v3099, %v3041
      %v3141 = vadd.f32 %v3100, %v3044
      %v3142 = vadd.f32 %v3101, %v3047
      %v3143 = vadd.f32 %v3102, %v3050
      %v3144 = vadd.f32 %v3103, %v3053
      %v3145 = vadd.f32 %v3104, %v3056
      %v3146 = vadd.f32 %v3105, %v3059
      %v3147 = vadd.f32 %v3106, %v3062
      %v3148 = vadd.f32 %v3107, %v3065
      %3149 = vst [vmem:[%s262] sm:$0xff] %v3108
      %3150 = vst [vmem:[%s262 + $0x8] sm:$0xff] %v3109
      %3151 = vst [vmem:[%s262 + $0x10] sm:$0xff] %v3110
      %3152 = vst [vmem:[%s262 + $0x18] sm:$0xff] %v3111
      %3153 = vst [vmem:[%s262 + $0x20] sm:$0xff] %v3112
      %3154 = vst [vmem:[%s262 + $0x28] sm:$0xff] %v3113
      %3155 = vst [vmem:[%s262 + $0x30] sm:$0xff] %v3114
      %3156 = vst [vmem:[%s262 + $0x38] sm:$0xff] %v3115
      %3157 = vst [vmem:[%s262 + $0x40] sm:$0xff] %v3116
      %3158 = vst [vmem:[%s262 + $0x48] sm:$0xff] %v3117
      %3159 = vst [vmem:[%s262 + $0x50] sm:$0xff] %v3118
      %3160 = vst [vmem:[%s262 + $0x58] sm:$0xff] %v3119
      %3161 = vst [vmem:[%s262 + $0x60] sm:$0xff] %v3120
      %3162 = vst [vmem:[%s262 + $0x68] sm:$0xff] %v3121
      %3163 = vst [vmem:[%s262 + $0x70] sm:$0xff] %v3122
      %3164 = vst [vmem:[%s262 + $0x78] sm:$0xff] %v3123
      %3165 = vst [vmem:[%s262 + $0x80] sm:$0xff] %v3124
      %3166 = vst [vmem:[%s262 + $0x88] sm:$0xff] %v3125
      %3167 = vst [vmem:[%s262 + $0x90] sm:$0xff] %v3126
      %3168 = vst [vmem:[%s262 + $0x98] sm:$0xff] %v3127
      %3169 = vst [vmem:[%s262 + $0xa0] sm:$0xff] %v3128
      %3170 = vst [vmem:[%s262 + $0xa8] sm:$0xff] %v3129
      %3171 = vst [vmem:[%s262 + $0xb0] sm:$0xff] %v3130
      %3172 = vst [vmem:[%s262 + $0xb8] sm:$0xff] %v3131
      %3173 = vst [vmem:[%s262 + $0xc0] sm:$0xff] %v3132
      %3174 = vst [vmem:[%s262 + $0xc8] sm:$0xff] %v3133
      %3175 = vst [vmem:[%s262 + $0xd0] sm:$0xff] %v3134
      %3176 = vst [vmem:[%s262 + $0xd8] sm:$0xff] %v3135
      %3177 = vst [vmem:[%s262 + $0xe0] sm:$0xff] %v3136
      %3178 = vst [vmem:[%s262 + $0xe8] sm:$0xff] %v3137
      %3179 = vst [vmem:[%s262 + $0xf0] sm:$0xff] %v3138
      %3180 = vst [vmem:[%s262 + $0xf8] sm:$0xff] %v3139
      %3181 = vst [vmem:[%s262 + $0x100] sm:$0xff] %v3140
      %3182 = vst [vmem:[%s262 + $0x108] sm:$0xff] %v3141
      %3183 = vst [vmem:[%s262 + $0x110] sm:$0xff] %v3142
      %3184 = vst [vmem:[%s262 + $0x118] sm:$0xff] %v3143
      %3185 = vst [vmem:[%s262 + $0x120] sm:$0xff] %v3144
      %3186 = vst [vmem:[%s262 + $0x128] sm:$0xff] %v3145
      %3187 = vst [vmem:[%s262 + $0x130] sm:$0xff] %v3146
      %3188 = vst [vmem:[%s262 + $0x138] sm:$0xff] %v3147
      %3189 = vst [vmem:[%s262 + $0x140] sm:$0xff] %v3148
      %v3190 = vld [vmem:[%s257 + $0x25] sm:$0xff]
      %v3191 = vld [vmem:[%s257 + $0x2d] sm:$0xff]
      %v3192 = vld [vmem:[%s257 + $0x35] sm:$0xff]
      %v3193 = vld [vmem:[%s257 + $0x3d] sm:$0xff]
      %v3194 = vld [vmem:[%s257 + $0x45] sm:$0xff]
      %v3195 = vld [vmem:[%s257 + $0x4d] sm:$0xff]
      %v3196 = vld [vmem:[%s257 + $0x55] sm:$0xff]
      %v3197 = vld [vmem:[%s257 + $0x5d] sm:$0xff]
      %v3198 = vld [vmem:[%s257 + $0x65] sm:$0xff]
      %v3199 = vld [vmem:[%s257 + $0x6d] sm:$0xff]
      %v3200 = vld [vmem:[%s257 + $0x75] sm:$0xff]
      %v3201 = vld [vmem:[%s257 + $0x7d] sm:$0xff]
      %v3202 = vld [vmem:[%s257 + $0x85] sm:$0xff]
      %v3203 = vld [vmem:[%s257 + $0x8d] sm:$0xff]
      %v3204 = vld [vmem:[%s257 + $0x95] sm:$0xff]
      %v3205 = vld [vmem:[%s257 + $0x9d] sm:$0xff]
      %v3206 = vld [vmem:[%s257 + $0xa5] sm:$0xff]
      %v3207 = vld [vmem:[%s257 + $0xad] sm:$0xff]
      %v3208 = vld [vmem:[%s257 + $0xb5] sm:$0xff]
      %v3209 = vld [vmem:[%s257 + $0xbd] sm:$0xff]
      %v3210 = vld [vmem:[%s257 + $0xc5] sm:$0xff]
      %v3211 = vld [vmem:[%s257 + $0xcd] sm:$0xff]
      %v3212 = vld [vmem:[%s257 + $0xd5] sm:$0xff]
      %v3213 = vld [vmem:[%s257 + $0xdd] sm:$0xff]
      %v3214 = vld [vmem:[%s257 + $0xe5] sm:$0xff]
      %v3215 = vld [vmem:[%s257 + $0xed] sm:$0xff]
      %v3216 = vld [vmem:[%s257 + $0xf5] sm:$0xff]
      %v3217 = vld [vmem:[%s257 + $0xfd] sm:$0xff]
      %v3218 = vld [vmem:[%s257 + $0x105] sm:$0xff]
      %v3219 = vld [vmem:[%s257 + $0x10d] sm:$0xff]
      %v3220 = vld [vmem:[%s257 + $0x115] sm:$0xff]
      %v3221 = vld [vmem:[%s257 + $0x11d] sm:$0xff]
      %v3222 = vld [vmem:[%s257 + $0x125] sm:$0xff]
      %v3223 = vld [vmem:[%s257 + $0x12d] sm:$0xff]
      %v3224 = vld [vmem:[%s257 + $0x135] sm:$0xff]
      %v3225 = vld [vmem:[%s257 + $0x13d] sm:$0xff]
      %v3226 = vld [vmem:[%s257 + $0x145] sm:$0xff]
      %v3227 = vld [vmem:[%s257 + $0x14d] sm:$0xff]
      %v3228 = vld [vmem:[%s257 + $0x155] sm:$0xff]
      %v3229 = vld [vmem:[%s257 + $0x15d] sm:$0xff]
      %v3230 = vld [vmem:[%s257 + $0x165] sm:$0xff]
      %s3231 = scalar_lea.vmem %s1, 56
      %v3232 = vld [vmem:[%s3231] sm:$0xff]
      %v3234 = vsel %vm311, %v3190, 0
      %v3237 = vsel %vm311, %v3191, 0
      %v3240 = vsel %vm311, %v3192, 0
      %v3243 = vsel %vm311, %v3193, 0
      %v3246 = vsel %vm311, %v3194, 0
      %v3249 = vsel %vm311, %v3195, 0
      %v3252 = vsel %vm311, %v3196, 0
      %v3255 = vsel %vm311, %v3197, 0
      %v3258 = vsel %vm311, %v3198, 0
      %v3261 = vsel %vm311, %v3199, 0
      %v3264 = vsel %vm311, %v3200, 0
      %v3267 = vsel %vm311, %v3201, 0
      %v3270 = vsel %vm311, %v3202, 0
      %v3273 = vsel %vm311, %v3203, 0
      %v3276 = vsel %vm311, %v3204, 0
      %v3279 = vsel %vm311, %v3205, 0
      %v3282 = vsel %vm311, %v3206, 0
      %v3285 = vsel %vm311, %v3207, 0
      %v3288 = vsel %vm311, %v3208, 0
      %v3291 = vsel %vm311, %v3209, 0
      %v3294 = vsel %vm311, %v3210, 0
      %v3297 = vsel %vm311, %v3211, 0
      %v3300 = vsel %vm311, %v3212, 0
      %v3303 = vsel %vm311, %v3213, 0
      %v3306 = vsel %vm311, %v3214, 0
      %v3309 = vsel %vm311, %v3215, 0
      %v3312 = vsel %vm311, %v3216, 0
      %v3315 = vsel %vm311, %v3217, 0
      %v3318 = vsel %vm311, %v3218, 0
      %v3321 = vsel %vm311, %v3219, 0
      %v3324 = vsel %vm311, %v3220, 0
      %v3327 = vsel %vm311, %v3221, 0
      %v3330 = vsel %vm311, %v3222, 0
      %v3333 = vsel %vm311, %v3223, 0
      %v3336 = vsel %vm311, %v3224, 0
      %v3339 = vsel %vm311, %v3225, 0
      %v3342 = vsel %vm311, %v3226, 0
      %v3345 = vsel %vm311, %v3227, 0
      %v3348 = vsel %vm311, %v3228, 0
      %v3351 = vsel %vm311, %v3229, 0
      %v3354 = vsel %vm311, %v3230, 0
      %3356 = vmatpush.msra.mxu0 0.0
      %3357 = vmatpush.msra.mxu0 0.0
      %3358 = vmatpush.msra.mxu0 0.0
      %3359 = vmatpush.msra.mxu0 0.0
      %3360 = vmatpush.msra.mxu0 0.0
      %3361 = vmatpush.msra.mxu0 0.0
      %3362 = vmatpush.msra.mxu0 0.0
      %3363 = vmatpush.msra.mxu0 0.0
      %3364 = vmatpush.msra.mxu0 0.0
      %3365 = vmatpush.msra.mxu0 0.0
      %3366 = vmatpush.msra.mxu0 0.0
      %3367 = vmatpush.msra.mxu0 0.0
      %3368 = vmatpush.msra.mxu0 0.0
      %3369 = vmatpush.msra.mxu0 0.0
      %3370 = vmatpush.msra.mxu0 0.0
      %3371 = vmatpush.msra.mxu0 %v3232
      %3372 = vmatmul.f32.gmra.mxu0 %v3234
      %v3373 = vpop.f32.mrf.mxu0
      %v3374 = vadd.f32 0.0, %v3373
      %3375 = vmatmul.f32.gmra.mxu0 %v3237
      %v3376 = vpop.f32.mrf.mxu0
      %v3377 = vadd.f32 0.0, %v3376
      %3378 = vmatmul.f32.gmra.mxu0 %v3240
      %v3379 = vpop.f32.mrf.mxu0
      %v3380 = vadd.f32 0.0, %v3379
      %3381 = vmatmul.f32.gmra.mxu0 %v3243
      %v3382 = vpop.f32.mrf.mxu0
      %v3383 = vadd.f32 0.0, %v3382
      %3384 = vmatmul.f32.gmra.mxu0 %v3246
      %v3385 = vpop.f32.mrf.mxu0
      %v3386 = vadd.f32 0.0, %v3385
      %3387 = vmatmul.f32.gmra.mxu0 %v3249
      %v3388 = vpop.f32.mrf.mxu0
      %v3389 = vadd.f32 0.0, %v3388
      %3390 = vmatmul.f32.gmra.mxu0 %v3252
      %v3391 = vpop.f32.mrf.mxu0
      %v3392 = vadd.f32 0.0, %v3391
      %3393 = vmatmul.f32.gmra.mxu0 %v3255
      %v3394 = vpop.f32.mrf.mxu0
      %v3395 = vadd.f32 0.0, %v3394
      %3396 = vmatmul.f32.gmra.mxu0 %v3258
      %v3397 = vpop.f32.mrf.mxu0
      %v3398 = vadd.f32 0.0, %v3397
      %3399 = vmatmul.f32.gmra.mxu0 %v3261
      %v3400 = vpop.f32.mrf.mxu0
      %v3401 = vadd.f32 0.0, %v3400
      %3402 = vmatmul.f32.gmra.mxu0 %v3264
      %v3403 = vpop.f32.mrf.mxu0
      %v3404 = vadd.f32 0.0, %v3403
      %3405 = vmatmul.f32.gmra.mxu0 %v3267
      %v3406 = vpop.f32.mrf.mxu0
      %v3407 = vadd.f32 0.0, %v3406
      %3408 = vmatmul.f32.gmra.mxu0 %v3270
      %v3409 = vpop.f32.mrf.mxu0
      %v3410 = vadd.f32 0.0, %v3409
      %3411 = vmatmul.f32.gmra.mxu0 %v3273
      %v3412 = vpop.f32.mrf.mxu0
      %v3413 = vadd.f32 0.0, %v3412
      %3414 = vmatmul.f32.gmra.mxu0 %v3276
      %v3415 = vpop.f32.mrf.mxu0
      %v3416 = vadd.f32 0.0, %v3415
      %3417 = vmatmul.f32.gmra.mxu0 %v3279
      %v3418 = vpop.f32.mrf.mxu0
      %v3419 = vadd.f32 0.0, %v3418
      %3420 = vmatmul.f32.gmra.mxu0 %v3282
      %v3421 = vpop.f32.mrf.mxu0
      %v3422 = vadd.f32 0.0, %v3421
      %3423 = vmatmul.f32.gmra.mxu0 %v3285
      %v3424 = vpop.f32.mrf.mxu0
      %v3425 = vadd.f32 0.0, %v3424
      %3426 = vmatmul.f32.gmra.mxu0 %v3288
      %v3427 = vpop.f32.mrf.mxu0
      %v3428 = vadd.f32 0.0, %v3427
      %3429 = vmatmul.f32.gmra.mxu0 %v3291
      %v3430 = vpop.f32.mrf.mxu0
      %v3431 = vadd.f32 0.0, %v3430
      %3432 = vmatmul.f32.gmra.mxu0 %v3294
      %v3433 = vpop.f32.mrf.mxu0
      %v3434 = vadd.f32 0.0, %v3433
      %3435 = vmatmul.f32.gmra.mxu0 %v3297
      %v3436 = vpop.f32.mrf.mxu0
      %v3437 = vadd.f32 0.0, %v3436
      %3438 = vmatmul.f32.gmra.mxu0 %v3300
      %v3439 = vpop.f32.mrf.mxu0
      %v3440 = vadd.f32 0.0, %v3439
      %3441 = vmatmul.f32.gmra.mxu0 %v3303
      %v3442 = vpop.f32.mrf.mxu0
      %v3443 = vadd.f32 0.0, %v3442
      %3444 = vmatmul.f32.gmra.mxu0 %v3306
      %v3445 = vpop.f32.mrf.mxu0
      %v3446 = vadd.f32 0.0, %v3445
      %3447 = vmatmul.f32.gmra.mxu0 %v3309
      %v3448 = vpop.f32.mrf.mxu0
      %v3449 = vadd.f32 0.0, %v3448
      %3450 = vmatmul.f32.gmra.mxu0 %v3312
      %v3451 = vpop.f32.mrf.mxu0
      %v3452 = vadd.f32 0.0, %v3451
      %3453 = vmatmul.f32.gmra.mxu0 %v3315
      %v3454 = vpop.f32.mrf.mxu0
      %v3455 = vadd.f32 0.0, %v3454
      %3456 = vmatmul.f32.gmra.mxu0 %v3318
      %v3457 = vpop.f32.mrf.mxu0
      %v3458 = vadd.f32 0.0, %v3457
      %3459 = vmatmul.f32.gmra.mxu0 %v3321
      %v3460 = vpop.f32.mrf.mxu0
      %v3461 = vadd.f32 0.0, %v3460
      %3462 = vmatmul.f32.gmra.mxu0 %v3324
      %v3463 = vpop.f32.mrf.mxu0
      %v3464 = vadd.f32 0.0, %v3463
      %3465 = vmatmul.f32.gmra.mxu0 %v3327
      %v3466 = vpop.f32.mrf.mxu0
      %v3467 = vadd.f32 0.0, %v3466
      %3468 = vmatmul.f32.gmra.mxu0 %v3330
      %v3469 = vpop.f32.mrf.mxu0
      %v3470 = vadd.f32 0.0, %v3469
      %3471 = vmatmul.f32.gmra.mxu0 %v3333
      %v3472 = vpop.f32.mrf.mxu0
      %v3473 = vadd.f32 0.0, %v3472
      %3474 = vmatmul.f32.gmra.mxu0 %v3336
      %v3475 = vpop.f32.mrf.mxu0
      %v3476 = vadd.f32 0.0, %v3475
      %3477 = vmatmul.f32.gmra.mxu0 %v3339
      %v3478 = vpop.f32.mrf.mxu0
      %v3479 = vadd.f32 0.0, %v3478
      %3480 = vmatmul.f32.gmra.mxu0 %v3342
      %v3481 = vpop.f32.mrf.mxu0
      %v3482 = vadd.f32 0.0, %v3481
      %3483 = vmatmul.f32.gmra.mxu0 %v3345
      %v3484 = vpop.f32.mrf.mxu0
      %v3485 = vadd.f32 0.0, %v3484
      %3486 = vmatmul.f32.gmra.mxu0 %v3348
      %v3487 = vpop.f32.mrf.mxu0
      %v3488 = vadd.f32 0.0, %v3487
      %3489 = vmatmul.f32.gmra.mxu0 %v3351
      %v3490 = vpop.f32.mrf.mxu0
      %v3491 = vadd.f32 0.0, %v3490
      %3492 = vmatmul.f32.gmra.mxu0 %v3354
      %v3493 = vpop.f32.mrf.mxu0
      %v3494 = vadd.f32 0.0, %v3493
      %3495 = vdwg.mxu0
      %v3496 = vld [vmem:[%s262] sm:$0xff]
      %v3497 = vld [vmem:[%s262 + $0x8] sm:$0xff]
      %v3498 = vld [vmem:[%s262 + $0x10] sm:$0xff]
      %v3499 = vld [vmem:[%s262 + $0x18] sm:$0xff]
      %v3500 = vld [vmem:[%s262 + $0x20] sm:$0xff]
      %v3501 = vld [vmem:[%s262 + $0x28] sm:$0xff]
      %v3502 = vld [vmem:[%s262 + $0x30] sm:$0xff]
      %v3503 = vld [vmem:[%s262 + $0x38] sm:$0xff]
      %v3504 = vld [vmem:[%s262 + $0x40] sm:$0xff]
      %v3505 = vld [vmem:[%s262 + $0x48] sm:$0xff]
      %v3506 = vld [vmem:[%s262 + $0x50] sm:$0xff]
      %v3507 = vld [vmem:[%s262 + $0x58] sm:$0xff]
      %v3508 = vld [vmem:[%s262 + $0x60] sm:$0xff]
      %v3509 = vld [vmem:[%s262 + $0x68] sm:$0xff]
      %v3510 = vld [vmem:[%s262 + $0x70] sm:$0xff]
      %v3511 = vld [vmem:[%s262 + $0x78] sm:$0xff]
      %v3512 = vld [vmem:[%s262 + $0x80] sm:$0xff]
      %v3513 = vld [vmem:[%s262 + $0x88] sm:$0xff]
      %v3514 = vld [vmem:[%s262 + $0x90] sm:$0xff]
      %v3515 = vld [vmem:[%s262 + $0x98] sm:$0xff]
      %v3516 = vld [vmem:[%s262 + $0xa0] sm:$0xff]
      %v3517 = vld [vmem:[%s262 + $0xa8] sm:$0xff]
      %v3518 = vld [vmem:[%s262 + $0xb0] sm:$0xff]
      %v3519 = vld [vmem:[%s262 + $0xb8] sm:$0xff]
      %v3520 = vld [vmem:[%s262 + $0xc0] sm:$0xff]
      %v3521 = vld [vmem:[%s262 + $0xc8] sm:$0xff]
      %v3522 = vld [vmem:[%s262 + $0xd0] sm:$0xff]
      %v3523 = vld [vmem:[%s262 + $0xd8] sm:$0xff]
      %v3524 = vld [vmem:[%s262 + $0xe0] sm:$0xff]
      %v3525 = vld [vmem:[%s262 + $0xe8] sm:$0xff]
      %v3526 = vld [vmem:[%s262 + $0xf0] sm:$0xff]
      %v3527 = vld [vmem:[%s262 + $0xf8] sm:$0xff]
      %v3528 = vld [vmem:[%s262 + $0x100] sm:$0xff]
      %v3529 = vld [vmem:[%s262 + $0x108] sm:$0xff]
      %v3530 = vld [vmem:[%s262 + $0x110] sm:$0xff]
      %v3531 = vld [vmem:[%s262 + $0x118] sm:$0xff]
      %v3532 = vld [vmem:[%s262 + $0x120] sm:$0xff]
      %v3533 = vld [vmem:[%s262 + $0x128] sm:$0xff]
      %v3534 = vld [vmem:[%s262 + $0x130] sm:$0xff]
      %v3535 = vld [vmem:[%s262 + $0x138] sm:$0xff]
      %v3536 = vld [vmem:[%s262 + $0x140] sm:$0xff]
      %v3537 = vadd.f32 %v3496, %v3374
      %v3538 = vadd.f32 %v3497, %v3377
      %v3539 = vadd.f32 %v3498, %v3380
      %v3540 = vadd.f32 %v3499, %v3383
      %v3541 = vadd.f32 %v3500, %v3386
      %v3542 = vadd.f32 %v3501, %v3389
      %v3543 = vadd.f32 %v3502, %v3392
      %v3544 = vadd.f32 %v3503, %v3395
      %v3545 = vadd.f32 %v3504, %v3398
      %v3546 = vadd.f32 %v3505, %v3401
      %v3547 = vadd.f32 %v3506, %v3404
      %v3548 = vadd.f32 %v3507, %v3407
      %v3549 = vadd.f32 %v3508, %v3410
      %v3550 = vadd.f32 %v3509, %v3413
      %v3551 = vadd.f32 %v3510, %v3416
      %v3552 = vadd.f32 %v3511, %v3419
      %v3553 = vadd.f32 %v3512, %v3422
      %v3554 = vadd.f32 %v3513, %v3425
      %v3555 = vadd.f32 %v3514, %v3428
      %v3556 = vadd.f32 %v3515, %v3431
      %v3557 = vadd.f32 %v3516, %v3434
      %v3558 = vadd.f32 %v3517, %v3437
      %v3559 = vadd.f32 %v3518, %v3440
      %v3560 = vadd.f32 %v3519, %v3443
      %v3561 = vadd.f32 %v3520, %v3446
      %v3562 = vadd.f32 %v3521, %v3449
      %v3563 = vadd.f32 %v3522, %v3452
      %v3564 = vadd.f32 %v3523, %v3455
      %v3565 = vadd.f32 %v3524, %v3458
      %v3566 = vadd.f32 %v3525, %v3461
      %v3567 = vadd.f32 %v3526, %v3464
      %v3568 = vadd.f32 %v3527, %v3467
      %v3569 = vadd.f32 %v3528, %v3470
      %v3570 = vadd.f32 %v3529, %v3473
      %v3571 = vadd.f32 %v3530, %v3476
      %v3572 = vadd.f32 %v3531, %v3479
      %v3573 = vadd.f32 %v3532, %v3482
      %v3574 = vadd.f32 %v3533, %v3485
      %v3575 = vadd.f32 %v3534, %v3488
      %v3576 = vadd.f32 %v3535, %v3491
      %v3577 = vadd.f32 %v3536, %v3494
      %3578 = vst [vmem:[%s262] sm:$0xff] %v3537
      %3579 = vst [vmem:[%s262 + $0x8] sm:$0xff] %v3538
      %3580 = vst [vmem:[%s262 + $0x10] sm:$0xff] %v3539
      %3581 = vst [vmem:[%s262 + $0x18] sm:$0xff] %v3540
      %3582 = vst [vmem:[%s262 + $0x20] sm:$0xff] %v3541
      %3583 = vst [vmem:[%s262 + $0x28] sm:$0xff] %v3542
      %3584 = vst [vmem:[%s262 + $0x30] sm:$0xff] %v3543
      %3585 = vst [vmem:[%s262 + $0x38] sm:$0xff] %v3544
      %3586 = vst [vmem:[%s262 + $0x40] sm:$0xff] %v3545
      %3587 = vst [vmem:[%s262 + $0x48] sm:$0xff] %v3546
      %3588 = vst [vmem:[%s262 + $0x50] sm:$0xff] %v3547
      %3589 = vst [vmem:[%s262 + $0x58] sm:$0xff] %v3548
      %3590 = vst [vmem:[%s262 + $0x60] sm:$0xff] %v3549
      %3591 = vst [vmem:[%s262 + $0x68] sm:$0xff] %v3550
      %3592 = vst [vmem:[%s262 + $0x70] sm:$0xff] %v3551
      %3593 = vst [vmem:[%s262 + $0x78] sm:$0xff] %v3552
      %3594 = vst [vmem:[%s262 + $0x80] sm:$0xff] %v3553
      %3595 = vst [vmem:[%s262 + $0x88] sm:$0xff] %v3554
      %3596 = vst [vmem:[%s262 + $0x90] sm:$0xff] %v3555
      %3597 = vst [vmem:[%s262 + $0x98] sm:$0xff] %v3556
      %3598 = vst [vmem:[%s262 + $0xa0] sm:$0xff] %v3557
      %3599 = vst [vmem:[%s262 + $0xa8] sm:$0xff] %v3558
      %3600 = vst [vmem:[%s262 + $0xb0] sm:$0xff] %v3559
      %3601 = vst [vmem:[%s262 + $0xb8] sm:$0xff] %v3560
      %3602 = vst [vmem:[%s262 + $0xc0] sm:$0xff] %v3561
      %3603 = vst [vmem:[%s262 + $0xc8] sm:$0xff] %v3562
      %3604 = vst [vmem:[%s262 + $0xd0] sm:$0xff] %v3563
      %3605 = vst [vmem:[%s262 + $0xd8] sm:$0xff] %v3564
      %3606 = vst [vmem:[%s262 + $0xe0] sm:$0xff] %v3565
      %3607 = vst [vmem:[%s262 + $0xe8] sm:$0xff] %v3566
      %3608 = vst [vmem:[%s262 + $0xf0] sm:$0xff] %v3567
      %3609 = vst [vmem:[%s262 + $0xf8] sm:$0xff] %v3568
      %3610 = vst [vmem:[%s262 + $0x100] sm:$0xff] %v3569
      %3611 = vst [vmem:[%s262 + $0x108] sm:$0xff] %v3570
      %3612 = vst [vmem:[%s262 + $0x110] sm:$0xff] %v3571
      %3613 = vst [vmem:[%s262 + $0x118] sm:$0xff] %v3572
      %3614 = vst [vmem:[%s262 + $0x120] sm:$0xff] %v3573
      %3615 = vst [vmem:[%s262 + $0x128] sm:$0xff] %v3574
      %3616 = vst [vmem:[%s262 + $0x130] sm:$0xff] %v3575
      %3617 = vst [vmem:[%s262 + $0x138] sm:$0xff] %v3576
      %3618 = vst [vmem:[%s262 + $0x140] sm:$0xff] %v3577
      %v3619 = vld [vmem:[%s257 + $0x26] sm:$0xff]
      %v3620 = vld [vmem:[%s257 + $0x2e] sm:$0xff]
      %v3621 = vld [vmem:[%s257 + $0x36] sm:$0xff]
      %v3622 = vld [vmem:[%s257 + $0x3e] sm:$0xff]
      %v3623 = vld [vmem:[%s257 + $0x46] sm:$0xff]
      %v3624 = vld [vmem:[%s257 + $0x4e] sm:$0xff]
      %v3625 = vld [vmem:[%s257 + $0x56] sm:$0xff]
      %v3626 = vld [vmem:[%s257 + $0x5e] sm:$0xff]
      %v3627 = vld [vmem:[%s257 + $0x66] sm:$0xff]
      %v3628 = vld [vmem:[%s257 + $0x6e] sm:$0xff]
      %v3629 = vld [vmem:[%s257 + $0x76] sm:$0xff]
      %v3630 = vld [vmem:[%s257 + $0x7e] sm:$0xff]
      %v3631 = vld [vmem:[%s257 + $0x86] sm:$0xff]
      %v3632 = vld [vmem:[%s257 + $0x8e] sm:$0xff]
      %v3633 = vld [vmem:[%s257 + $0x96] sm:$0xff]
      %v3634 = vld [vmem:[%s257 + $0x9e] sm:$0xff]
      %v3635 = vld [vmem:[%s257 + $0xa6] sm:$0xff]
      %v3636 = vld [vmem:[%s257 + $0xae] sm:$0xff]
      %v3637 = vld [vmem:[%s257 + $0xb6] sm:$0xff]
      %v3638 = vld [vmem:[%s257 + $0xbe] sm:$0xff]
      %v3639 = vld [vmem:[%s257 + $0xc6] sm:$0xff]
      %v3640 = vld [vmem:[%s257 + $0xce] sm:$0xff]
      %v3641 = vld [vmem:[%s257 + $0xd6] sm:$0xff]
      %v3642 = vld [vmem:[%s257 + $0xde] sm:$0xff]
      %v3643 = vld [vmem:[%s257 + $0xe6] sm:$0xff]
      %v3644 = vld [vmem:[%s257 + $0xee] sm:$0xff]
      %v3645 = vld [vmem:[%s257 + $0xf6] sm:$0xff]
      %v3646 = vld [vmem:[%s257 + $0xfe] sm:$0xff]
      %v3647 = vld [vmem:[%s257 + $0x106] sm:$0xff]
      %v3648 = vld [vmem:[%s257 + $0x10e] sm:$0xff]
      %v3649 = vld [vmem:[%s257 + $0x116] sm:$0xff]
      %v3650 = vld [vmem:[%s257 + $0x11e] sm:$0xff]
      %v3651 = vld [vmem:[%s257 + $0x126] sm:$0xff]
      %v3652 = vld [vmem:[%s257 + $0x12e] sm:$0xff]
      %v3653 = vld [vmem:[%s257 + $0x136] sm:$0xff]
      %v3654 = vld [vmem:[%s257 + $0x13e] sm:$0xff]
      %v3655 = vld [vmem:[%s257 + $0x146] sm:$0xff]
      %v3656 = vld [vmem:[%s257 + $0x14e] sm:$0xff]
      %v3657 = vld [vmem:[%s257 + $0x156] sm:$0xff]
      %v3658 = vld [vmem:[%s257 + $0x15e] sm:$0xff]
      %v3659 = vld [vmem:[%s257 + $0x166] sm:$0xff]
      %s3660 = scalar_lea.vmem %s1, 64
      %v3661 = vld [vmem:[%s3660] sm:$0xff]
      %v3663 = vsel %vm311, %v3619, 0
      %v3666 = vsel %vm311, %v3620, 0
      %v3669 = vsel %vm311, %v3621, 0
      %v3672 = vsel %vm311, %v3622, 0
      %v3675 = vsel %vm311, %v3623, 0
      %v3678 = vsel %vm311, %v3624, 0
      %v3681 = vsel %vm311, %v3625, 0
      %v3684 = vsel %vm311, %v3626, 0
      %v3687 = vsel %vm311, %v3627, 0
      %v3690 = vsel %vm311, %v3628, 0
      %v3693 = vsel %vm311, %v3629, 0
      %v3696 = vsel %vm311, %v3630, 0
      %v3699 = vsel %vm311, %v3631, 0
      %v3702 = vsel %vm311, %v3632, 0
      %v3705 = vsel %vm311, %v3633, 0
      %v3708 = vsel %vm311, %v3634, 0
      %v3711 = vsel %vm311, %v3635, 0
      %v3714 = vsel %vm311, %v3636, 0
      %v3717 = vsel %vm311, %v3637, 0
      %v3720 = vsel %vm311, %v3638, 0
      %v3723 = vsel %vm311, %v3639, 0
      %v3726 = vsel %vm311, %v3640, 0
      %v3729 = vsel %vm311, %v3641, 0
      %v3732 = vsel %vm311, %v3642, 0
      %v3735 = vsel %vm311, %v3643, 0
      %v3738 = vsel %vm311, %v3644, 0
      %v3741 = vsel %vm311, %v3645, 0
      %v3744 = vsel %vm311, %v3646, 0
      %v3747 = vsel %vm311, %v3647, 0
      %v3750 = vsel %vm311, %v3648, 0
      %v3753 = vsel %vm311, %v3649, 0
      %v3756 = vsel %vm311, %v3650, 0
      %v3759 = vsel %vm311, %v3651, 0
      %v3762 = vsel %vm311, %v3652, 0
      %v3765 = vsel %vm311, %v3653, 0
      %v3768 = vsel %vm311, %v3654, 0
      %v3771 = vsel %vm311, %v3655, 0
      %v3774 = vsel %vm311, %v3656, 0
      %v3777 = vsel %vm311, %v3657, 0
      %v3780 = vsel %vm311, %v3658, 0
      %v3783 = vsel %vm311, %v3659, 0
      %3785 = vmatpush.msra.mxu0 0.0
      %3786 = vmatpush.msra.mxu0 0.0
      %3787 = vmatpush.msra.mxu0 0.0
      %3788 = vmatpush.msra.mxu0 0.0
      %3789 = vmatpush.msra.mxu0 0.0
      %3790 = vmatpush.msra.mxu0 0.0
      %3791 = vmatpush.msra.mxu0 0.0
      %3792 = vmatpush.msra.mxu0 0.0
      %3793 = vmatpush.msra.mxu0 0.0
      %3794 = vmatpush.msra.mxu0 0.0
      %3795 = vmatpush.msra.mxu0 0.0
      %3796 = vmatpush.msra.mxu0 0.0
      %3797 = vmatpush.msra.mxu0 0.0
      %3798 = vmatpush.msra.mxu0 0.0
      %3799 = vmatpush.msra.mxu0 0.0
      %3800 = vmatpush.msra.mxu0 %v3661
      %3801 = vmatmul.f32.gmra.mxu0 %v3663
      %v3802 = vpop.f32.mrf.mxu0
      %v3803 = vadd.f32 0.0, %v3802
      %3804 = vmatmul.f32.gmra.mxu0 %v3666
      %v3805 = vpop.f32.mrf.mxu0
      %v3806 = vadd.f32 0.0, %v3805
      %3807 = vmatmul.f32.gmra.mxu0 %v3669
      %v3808 = vpop.f32.mrf.mxu0
      %v3809 = vadd.f32 0.0, %v3808
      %3810 = vmatmul.f32.gmra.mxu0 %v3672
      %v3811 = vpop.f32.mrf.mxu0
      %v3812 = vadd.f32 0.0, %v3811
      %3813 = vmatmul.f32.gmra.mxu0 %v3675
      %v3814 = vpop.f32.mrf.mxu0
      %v3815 = vadd.f32 0.0, %v3814
      %3816 = vmatmul.f32.gmra.mxu0 %v3678
      %v3817 = vpop.f32.mrf.mxu0
      %v3818 = vadd.f32 0.0, %v3817
      %3819 = vmatmul.f32.gmra.mxu0 %v3681
      %v3820 = vpop.f32.mrf.mxu0
      %v3821 = vadd.f32 0.0, %v3820
      %3822 = vmatmul.f32.gmra.mxu0 %v3684
      %v3823 = vpop.f32.mrf.mxu0
      %v3824 = vadd.f32 0.0, %v3823
      %3825 = vmatmul.f32.gmra.mxu0 %v3687
      %v3826 = vpop.f32.mrf.mxu0
      %v3827 = vadd.f32 0.0, %v3826
      %3828 = vmatmul.f32.gmra.mxu0 %v3690
      %v3829 = vpop.f32.mrf.mxu0
      %v3830 = vadd.f32 0.0, %v3829
      %3831 = vmatmul.f32.gmra.mxu0 %v3693
      %v3832 = vpop.f32.mrf.mxu0
      %v3833 = vadd.f32 0.0, %v3832
      %3834 = vmatmul.f32.gmra.mxu0 %v3696
      %v3835 = vpop.f32.mrf.mxu0
      %v3836 = vadd.f32 0.0, %v3835
      %3837 = vmatmul.f32.gmra.mxu0 %v3699
      %v3838 = vpop.f32.mrf.mxu0
      %v3839 = vadd.f32 0.0, %v3838
      %3840 = vmatmul.f32.gmra.mxu0 %v3702
      %v3841 = vpop.f32.mrf.mxu0
      %v3842 = vadd.f32 0.0, %v3841
      %3843 = vmatmul.f32.gmra.mxu0 %v3705
      %v3844 = vpop.f32.mrf.mxu0
      %v3845 = vadd.f32 0.0, %v3844
      %3846 = vmatmul.f32.gmra.mxu0 %v3708
      %v3847 = vpop.f32.mrf.mxu0
      %v3848 = vadd.f32 0.0, %v3847
      %3849 = vmatmul.f32.gmra.mxu0 %v3711
      %v3850 = vpop.f32.mrf.mxu0
      %v3851 = vadd.f32 0.0, %v3850
      %3852 = vmatmul.f32.gmra.mxu0 %v3714
      %v3853 = vpop.f32.mrf.mxu0
      %v3854 = vadd.f32 0.0, %v3853
      %3855 = vmatmul.f32.gmra.mxu0 %v3717
      %v3856 = vpop.f32.mrf.mxu0
      %v3857 = vadd.f32 0.0, %v3856
      %3858 = vmatmul.f32.gmra.mxu0 %v3720
      %v3859 = vpop.f32.mrf.mxu0
      %v3860 = vadd.f32 0.0, %v3859
      %3861 = vmatmul.f32.gmra.mxu0 %v3723
      %v3862 = vpop.f32.mrf.mxu0
      %v3863 = vadd.f32 0.0, %v3862
      %3864 = vmatmul.f32.gmra.mxu0 %v3726
      %v3865 = vpop.f32.mrf.mxu0
      %v3866 = vadd.f32 0.0, %v3865
      %3867 = vmatmul.f32.gmra.mxu0 %v3729
      %v3868 = vpop.f32.mrf.mxu0
      %v3869 = vadd.f32 0.0, %v3868
      %3870 = vmatmul.f32.gmra.mxu0 %v3732
      %v3871 = vpop.f32.mrf.mxu0
      %v3872 = vadd.f32 0.0, %v3871
      %3873 = vmatmul.f32.gmra.mxu0 %v3735
      %v3874 = vpop.f32.mrf.mxu0
      %v3875 = vadd.f32 0.0, %v3874
      %3876 = vmatmul.f32.gmra.mxu0 %v3738
      %v3877 = vpop.f32.mrf.mxu0
      %v3878 = vadd.f32 0.0, %v3877
      %3879 = vmatmul.f32.gmra.mxu0 %v3741
      %v3880 = vpop.f32.mrf.mxu0
      %v3881 = vadd.f32 0.0, %v3880
      %3882 = vmatmul.f32.gmra.mxu0 %v3744
      %v3883 = vpop.f32.mrf.mxu0
      %v3884 = vadd.f32 0.0, %v3883
      %3885 = vmatmul.f32.gmra.mxu0 %v3747
      %v3886 = vpop.f32.mrf.mxu0
      %v3887 = vadd.f32 0.0, %v3886
      %3888 = vmatmul.f32.gmra.mxu0 %v3750
      %v3889 = vpop.f32.mrf.mxu0
      %v3890 = vadd.f32 0.0, %v3889
      %3891 = vmatmul.f32.gmra.mxu0 %v3753
      %v3892 = vpop.f32.mrf.mxu0
      %v3893 = vadd.f32 0.0, %v3892
      %3894 = vmatmul.f32.gmra.mxu0 %v3756
      %v3895 = vpop.f32.mrf.mxu0
      %v3896 = vadd.f32 0.0, %v3895
      %3897 = vmatmul.f32.gmra.mxu0 %v3759
      %v3898 = vpop.f32.mrf.mxu0
      %v3899 = vadd.f32 0.0, %v3898
      %3900 = vmatmul.f32.gmra.mxu0 %v3762
      %v3901 = vpop.f32.mrf.mxu0
      %v3902 = vadd.f32 0.0, %v3901
      %3903 = vmatmul.f32.gmra.mxu0 %v3765
      %v3904 = vpop.f32.mrf.mxu0
      %v3905 = vadd.f32 0.0, %v3904
      %3906 = vmatmul.f32.gmra.mxu0 %v3768
      %v3907 = vpop.f32.mrf.mxu0
      %v3908 = vadd.f32 0.0, %v3907
      %3909 = vmatmul.f32.gmra.mxu0 %v3771
      %v3910 = vpop.f32.mrf.mxu0
      %v3911 = vadd.f32 0.0, %v3910
      %3912 = vmatmul.f32.gmra.mxu0 %v3774
      %v3913 = vpop.f32.mrf.mxu0
      %v3914 = vadd.f32 0.0, %v3913
      %3915 = vmatmul.f32.gmra.mxu0 %v3777
      %v3916 = vpop.f32.mrf.mxu0
      %v3917 = vadd.f32 0.0, %v3916
      %3918 = vmatmul.f32.gmra.mxu0 %v3780
      %v3919 = vpop.f32.mrf.mxu0
      %v3920 = vadd.f32 0.0, %v3919
      %3921 = vmatmul.f32.gmra.mxu0 %v3783
      %v3922 = vpop.f32.mrf.mxu0
      %v3923 = vadd.f32 0.0, %v3922
      %3924 = vdwg.mxu0
      %v3925 = vld [vmem:[%s262] sm:$0xff]
      %v3926 = vld [vmem:[%s262 + $0x8] sm:$0xff]
      %v3927 = vld [vmem:[%s262 + $0x10] sm:$0xff]
      %v3928 = vld [vmem:[%s262 + $0x18] sm:$0xff]
      %v3929 = vld [vmem:[%s262 + $0x20] sm:$0xff]
      %v3930 = vld [vmem:[%s262 + $0x28] sm:$0xff]
      %v3931 = vld [vmem:[%s262 + $0x30] sm:$0xff]
      %v3932 = vld [vmem:[%s262 + $0x38] sm:$0xff]
      %v3933 = vld [vmem:[%s262 + $0x40] sm:$0xff]
      %v3934 = vld [vmem:[%s262 + $0x48] sm:$0xff]
      %v3935 = vld [vmem:[%s262 + $0x50] sm:$0xff]
      %v3936 = vld [vmem:[%s262 + $0x58] sm:$0xff]
      %v3937 = vld [vmem:[%s262 + $0x60] sm:$0xff]
      %v3938 = vld [vmem:[%s262 + $0x68] sm:$0xff]
      %v3939 = vld [vmem:[%s262 + $0x70] sm:$0xff]
      %v3940 = vld [vmem:[%s262 + $0x78] sm:$0xff]
      %v3941 = vld [vmem:[%s262 + $0x80] sm:$0xff]
      %v3942 = vld [vmem:[%s262 + $0x88] sm:$0xff]
      %v3943 = vld [vmem:[%s262 + $0x90] sm:$0xff]
      %v3944 = vld [vmem:[%s262 + $0x98] sm:$0xff]
      %v3945 = vld [vmem:[%s262 + $0xa0] sm:$0xff]
      %v3946 = vld [vmem:[%s262 + $0xa8] sm:$0xff]
      %v3947 = vld [vmem:[%s262 + $0xb0] sm:$0xff]
      %v3948 = vld [vmem:[%s262 + $0xb8] sm:$0xff]
      %v3949 = vld [vmem:[%s262 + $0xc0] sm:$0xff]
      %v3950 = vld [vmem:[%s262 + $0xc8] sm:$0xff]
      %v3951 = vld [vmem:[%s262 + $0xd0] sm:$0xff]
      %v3952 = vld [vmem:[%s262 + $0xd8] sm:$0xff]
      %v3953 = vld [vmem:[%s262 + $0xe0] sm:$0xff]
      %v3954 = vld [vmem:[%s262 + $0xe8] sm:$0xff]
      %v3955 = vld [vmem:[%s262 + $0xf0] sm:$0xff]
      %v3956 = vld [vmem:[%s262 + $0xf8] sm:$0xff]
      %v3957 = vld [vmem:[%s262 + $0x100] sm:$0xff]
      %v3958 = vld [vmem:[%s262 + $0x108] sm:$0xff]
      %v3959 = vld [vmem:[%s262 + $0x110] sm:$0xff]
      %v3960 = vld [vmem:[%s262 + $0x118] sm:$0xff]
      %v3961 = vld [vmem:[%s262 + $0x120] sm:$0xff]
      %v3962 = vld [vmem:[%s262 + $0x128] sm:$0xff]
      %v3963 = vld [vmem:[%s262 + $0x130] sm:$0xff]
      %v3964 = vld [vmem:[%s262 + $0x138] sm:$0xff]
      %v3965 = vld [vmem:[%s262 + $0x140] sm:$0xff]
      %v3966 = vadd.f32 %v3925, %v3803
      %v3967 = vadd.f32 %v3926, %v3806
      %v3968 = vadd.f32 %v3927, %v3809
      %v3969 = vadd.f32 %v3928, %v3812
      %v3970 = vadd.f32 %v3929, %v3815
      %v3971 = vadd.f32 %v3930, %v3818
      %v3972 = vadd.f32 %v3931, %v3821
      %v3973 = vadd.f32 %v3932, %v3824
      %v3974 = vadd.f32 %v3933, %v3827
      %v3975 = vadd.f32 %v3934, %v3830
      %v3976 = vadd.f32 %v3935, %v3833
      %v3977 = vadd.f32 %v3936, %v3836
      %v3978 = vadd.f32 %v3937, %v3839
      %v3979 = vadd.f32 %v3938, %v3842
      %v3980 = vadd.f32 %v3939, %v3845
      %v3981 = vadd.f32 %v3940, %v3848
      %v3982 = vadd.f32 %v3941, %v3851
      %v3983 = vadd.f32 %v3942, %v3854
      %v3984 = vadd.f32 %v3943, %v3857
      %v3985 = vadd.f32 %v3944, %v3860
      %v3986 = vadd.f32 %v3945, %v3863
      %v3987 = vadd.f32 %v3946, %v3866
      %v3988 = vadd.f32 %v3947, %v3869
      %v3989 = vadd.f32 %v3948, %v3872
      %v3990 = vadd.f32 %v3949, %v3875
      %v3991 = vadd.f32 %v3950, %v3878
      %v3992 = vadd.f32 %v3951, %v3881
      %v3993 = vadd.f32 %v3952, %v3884
      %v3994 = vadd.f32 %v3953, %v3887
      %v3995 = vadd.f32 %v3954, %v3890
      %v3996 = vadd.f32 %v3955, %v3893
      %v3997 = vadd.f32 %v3956, %v3896
      %v3998 = vadd.f32 %v3957, %v3899
      %v3999 = vadd.f32 %v3958, %v3902
      %v4000 = vadd.f32 %v3959, %v3905
      %v4001 = vadd.f32 %v3960, %v3908
      %v4002 = vadd.f32 %v3961, %v3911
      %v4003 = vadd.f32 %v3962, %v3914
      %v4004 = vadd.f32 %v3963, %v3917
      %v4005 = vadd.f32 %v3964, %v3920
      %v4006 = vadd.f32 %v3965, %v3923
      %4007 = vst [vmem:[%s262] sm:$0xff] %v3966
      %4008 = vst [vmem:[%s262 + $0x8] sm:$0xff] %v3967
      %4009 = vst [vmem:[%s262 + $0x10] sm:$0xff] %v3968
      %4010 = vst [vmem:[%s262 + $0x18] sm:$0xff] %v3969
      %4011 = vst [vmem:[%s262 + $0x20] sm:$0xff] %v3970
      %4012 = vst [vmem:[%s262 + $0x28] sm:$0xff] %v3971
      %4013 = vst [vmem:[%s262 + $0x30] sm:$0xff] %v3972
      %4014 = vst [vmem:[%s262 + $0x38] sm:$0xff] %v3973
      %4015 = vst [vmem:[%s262 + $0x40] sm:$0xff] %v3974
      %4016 = vst [vmem:[%s262 + $0x48] sm:$0xff] %v3975
      %4017 = vst [vmem:[%s262 + $0x50] sm:$0xff] %v3976
      %4018 = vst [vmem:[%s262 + $0x58] sm:$0xff] %v3977
      %4019 = vst [vmem:[%s262 + $0x60] sm:$0xff] %v3978
      %4020 = vst [vmem:[%s262 + $0x68] sm:$0xff] %v3979
      %4021 = vst [vmem:[%s262 + $0x70] sm:$0xff] %v3980
      %4022 = vst [vmem:[%s262 + $0x78] sm:$0xff] %v3981
      %4023 = vst [vmem:[%s262 + $0x80] sm:$0xff] %v3982
      %4024 = vst [vmem:[%s262 + $0x88] sm:$0xff] %v3983
      %4025 = vst [vmem:[%s262 + $0x90] sm:$0xff] %v3984
      %4026 = vst [vmem:[%s262 + $0x98] sm:$0xff] %v3985
      %4027 = vst [vmem:[%s262 + $0xa0] sm:$0xff] %v3986
      %4028 = vst [vmem:[%s262 + $0xa8] sm:$0xff] %v3987
      %4029 = vst [vmem:[%s262 + $0xb0] sm:$0xff] %v3988
      %4030 = vst [vmem:[%s262 + $0xb8] sm:$0xff] %v3989
      %4031 = vst [vmem:[%s262 + $0xc0] sm:$0xff] %v3990
      %4032 = vst [vmem:[%s262 + $0xc8] sm:$0xff] %v3991
      %4033 = vst [vmem:[%s262 + $0xd0] sm:$0xff] %v3992
      %4034 = vst [vmem:[%s262 + $0xd8] sm:$0xff] %v3993
      %4035 = vst [vmem:[%s262 + $0xe0] sm:$0xff] %v3994
      %4036 = vst [vmem:[%s262 + $0xe8] sm:$0xff] %v3995
      %4037 = vst [vmem:[%s262 + $0xf0] sm:$0xff] %v3996
      %4038 = vst [vmem:[%s262 + $0xf8] sm:$0xff] %v3997
      %4039 = vst [vmem:[%s262 + $0x100] sm:$0xff] %v3998
      %4040 = vst [vmem:[%s262 + $0x108] sm:$0xff] %v3999
      %4041 = vst [vmem:[%s262 + $0x110] sm:$0xff] %v4000
      %4042 = vst [vmem:[%s262 + $0x118] sm:$0xff] %v4001
      %4043 = vst [vmem:[%s262 + $0x120] sm:$0xff] %v4002
      %4044 = vst [vmem:[%s262 + $0x128] sm:$0xff] %v4003
      %4045 = vst [vmem:[%s262 + $0x130] sm:$0xff] %v4004
      %4046 = vst [vmem:[%s262 + $0x138] sm:$0xff] %v4005
      %4047 = vst [vmem:[%s262 + $0x140] sm:$0xff] %v4006
      %v4048 = vld [vmem:[%s262] sm:$0xff]
      %v4049 = vld [vmem:[%s262 + $0x8] sm:$0xff]
      %v4050 = vld [vmem:[%s262 + $0x10] sm:$0xff]
      %v4051 = vld [vmem:[%s262 + $0x18] sm:$0xff]
      %v4052 = vld [vmem:[%s262 + $0x20] sm:$0xff]
      %v4053 = vld [vmem:[%s262 + $0x28] sm:$0xff]
      %v4054 = vld [vmem:[%s262 + $0x30] sm:$0xff]
      %v4055 = vld [vmem:[%s262 + $0x38] sm:$0xff]
      %v4056 = vld [vmem:[%s262 + $0x40] sm:$0xff]
      %v4057 = vld [vmem:[%s262 + $0x48] sm:$0xff]
      %v4058 = vld [vmem:[%s262 + $0x50] sm:$0xff]
      %v4059 = vld [vmem:[%s262 + $0x58] sm:$0xff]
      %v4060 = vld [vmem:[%s262 + $0x60] sm:$0xff]
      %v4061 = vld [vmem:[%s262 + $0x68] sm:$0xff]
      %v4062 = vld [vmem:[%s262 + $0x70] sm:$0xff]
      %v4063 = vld [vmem:[%s262 + $0x78] sm:$0xff]
      %v4064 = vld [vmem:[%s262 + $0x80] sm:$0xff]
      %v4065 = vld [vmem:[%s262 + $0x88] sm:$0xff]
      %v4066 = vld [vmem:[%s262 + $0x90] sm:$0xff]
      %v4067 = vld [vmem:[%s262 + $0x98] sm:$0xff]
      %v4068 = vld [vmem:[%s262 + $0xa0] sm:$0xff]
      %v4069 = vld [vmem:[%s262 + $0xa8] sm:$0xff]
      %v4070 = vld [vmem:[%s262 + $0xb0] sm:$0xff]
      %v4071 = vld [vmem:[%s262 + $0xb8] sm:$0xff]
      %v4072 = vld [vmem:[%s262 + $0xc0] sm:$0xff]
      %v4073 = vld [vmem:[%s262 + $0xc8] sm:$0xff]
      %v4074 = vld [vmem:[%s262 + $0xd0] sm:$0xff]
      %v4075 = vld [vmem:[%s262 + $0xd8] sm:$0xff]
      %v4076 = vld [vmem:[%s262 + $0xe0] sm:$0xff]
      %v4077 = vld [vmem:[%s262 + $0xe8] sm:$0xff]
      %v4078 = vld [vmem:[%s262 + $0xf0] sm:$0xff]
      %v4079 = vld [vmem:[%s262 + $0xf8] sm:$0xff]
      %v4080 = vld [vmem:[%s262 + $0x100] sm:$0xff]
      %v4081 = vld [vmem:[%s262 + $0x108] sm:$0xff]
      %v4082 = vld [vmem:[%s262 + $0x110] sm:$0xff]
      %v4083 = vld [vmem:[%s262 + $0x118] sm:$0xff]
      %v4084 = vld [vmem:[%s262 + $0x120] sm:$0xff]
      %v4085 = vld [vmem:[%s262 + $0x128] sm:$0xff]
      %v4086 = vld [vmem:[%s262 + $0x130] sm:$0xff]
      %v4087 = vld [vmem:[%s262 + $0x138] sm:$0xff]
      %v4088 = vld [vmem:[%s262 + $0x140] sm:$0xff]
      %v4089 = vld [vmem:[%s2] sm:$0x1]
      %v4091 = vperm.slane %v4089, 0
      %v4093 = vadd.f32 %v4048, %v4091
      %v4094 = vadd.f32 %v4049, %v4091
      %v4095 = vadd.f32 %v4050, %v4091
      %v4096 = vadd.f32 %v4051, %v4091
      %v4097 = vadd.f32 %v4052, %v4091
      %v4098 = vadd.f32 %v4053, %v4091
      %v4099 = vadd.f32 %v4054, %v4091
      %v4100 = vadd.f32 %v4055, %v4091
      %v4101 = vadd.f32 %v4056, %v4091
      %v4102 = vadd.f32 %v4057, %v4091
      %v4103 = vadd.f32 %v4058, %v4091
      %v4104 = vadd.f32 %v4059, %v4091
      %v4105 = vadd.f32 %v4060, %v4091
      %v4106 = vadd.f32 %v4061, %v4091
      %v4107 = vadd.f32 %v4062, %v4091
      %v4108 = vadd.f32 %v4063, %v4091
      %v4109 = vadd.f32 %v4064, %v4091
      %v4110 = vadd.f32 %v4065, %v4091
      %v4111 = vadd.f32 %v4066, %v4091
      %v4112 = vadd.f32 %v4067, %v4091
      %v4113 = vadd.f32 %v4068, %v4091
      %v4114 = vadd.f32 %v4069, %v4091
      %v4115 = vadd.f32 %v4070, %v4091
      %v4116 = vadd.f32 %v4071, %v4091
      %v4117 = vadd.f32 %v4072, %v4091
      %v4118 = vadd.f32 %v4073, %v4091
      %v4119 = vadd.f32 %v4074, %v4091
      %v4120 = vadd.f32 %v4075, %v4091
      %v4121 = vadd.f32 %v4076, %v4091
      %v4122 = vadd.f32 %v4077, %v4091
      %v4123 = vadd.f32 %v4078, %v4091
      %v4124 = vadd.f32 %v4079, %v4091
      %v4125 = vadd.f32 %v4080, %v4091
      %v4126 = vadd.f32 %v4081, %v4091
      %v4127 = vadd.f32 %v4082, %v4091
      %v4128 = vadd.f32 %v4083, %v4091
      %v4129 = vadd.f32 %v4084, %v4091
      %v4130 = vadd.f32 %v4085, %v4091
      %v4131 = vadd.f32 %v4086, %v4091
      %v4132 = vadd.f32 %v4087, %v4091
      %v4133 = vadd.f32 %v4088, %v4091
      %4134 = vst [vmem:[%s262] sm:$0xff] %v4093
      %4135 = vst [vmem:[%s262 + $0x8] sm:$0xff] %v4094
      %4136 = vst [vmem:[%s262 + $0x10] sm:$0xff] %v4095
      %4137 = vst [vmem:[%s262 + $0x18] sm:$0xff] %v4096
      %4138 = vst [vmem:[%s262 + $0x20] sm:$0xff] %v4097
      %4139 = vst [vmem:[%s262 + $0x28] sm:$0xff] %v4098
      %4140 = vst [vmem:[%s262 + $0x30] sm:$0xff] %v4099
      %4141 = vst [vmem:[%s262 + $0x38] sm:$0xff] %v4100
      %4142 = vst [vmem:[%s262 + $0x40] sm:$0xff] %v4101
      %4143 = vst [vmem:[%s262 + $0x48] sm:$0xff] %v4102
      %4144 = vst [vmem:[%s262 + $0x50] sm:$0xff] %v4103
      %4145 = vst [vmem:[%s262 + $0x58] sm:$0xff] %v4104
      %4146 = vst [vmem:[%s262 + $0x60] sm:$0xff] %v4105
      %4147 = vst [vmem:[%s262 + $0x68] sm:$0xff] %v4106
      %4148 = vst [vmem:[%s262 + $0x70] sm:$0xff] %v4107
      %4149 = vst [vmem:[%s262 + $0x78] sm:$0xff] %v4108
      %4150 = vst [vmem:[%s262 + $0x80] sm:$0xff] %v4109
      %4151 = vst [vmem:[%s262 + $0x88] sm:$0xff] %v4110
      %4152 = vst [vmem:[%s262 + $0x90] sm:$0xff] %v4111
      %4153 = vst [vmem:[%s262 + $0x98] sm:$0xff] %v4112
      %4154 = vst [vmem:[%s262 + $0xa0] sm:$0xff] %v4113
      %4155 = vst [vmem:[%s262 + $0xa8] sm:$0xff] %v4114
      %4156 = vst [vmem:[%s262 + $0xb0] sm:$0xff] %v4115
      %4157 = vst [vmem:[%s262 + $0xb8] sm:$0xff] %v4116
      %4158 = vst [vmem:[%s262 + $0xc0] sm:$0xff] %v4117
      %4159 = vst [vmem:[%s262 + $0xc8] sm:$0xff] %v4118
      %4160 = vst [vmem:[%s262 + $0xd0] sm:$0xff] %v4119
      %4161 = vst [vmem:[%s262 + $0xd8] sm:$0xff] %v4120
      %4162 = vst [vmem:[%s262 + $0xe0] sm:$0xff] %v4121
      %4163 = vst [vmem:[%s262 + $0xe8] sm:$0xff] %v4122
      %4164 = vst [vmem:[%s262 + $0xf0] sm:$0xff] %v4123
      %4165 = vst [vmem:[%s262 + $0xf8] sm:$0xff] %v4124
      %4166 = vst [vmem:[%s262 + $0x100] sm:$0xff] %v4125
      %4167 = vst [vmem:[%s262 + $0x108] sm:$0xff] %v4126
      %4168 = vst [vmem:[%s262 + $0x110] sm:$0xff] %v4127
      %4169 = vst [vmem:[%s262 + $0x118] sm:$0xff] %v4128
      %4170 = vst [vmem:[%s262 + $0x120] sm:$0xff] %v4129
      %4171 = vst [vmem:[%s262 + $0x128] sm:$0xff] %v4130
      %4172 = vst [vmem:[%s262 + $0x130] sm:$0xff] %v4131
      %4173 = vst [vmem:[%s262 + $0x138] sm:$0xff] %v4132
      %4174 = vst [vmem:[%s262 + $0x140] sm:$0xff] %v4133
      %v4175 = vld [vmem:[%s3] sm:$0xff]
      %v4176 = vld [vmem:[%s3 + $0x8] sm:$0xff]
      %v4177 = vld [vmem:[%s3 + $0x10] sm:$0xff]
      %v4178 = vld [vmem:[%s3 + $0x18] sm:$0xff]
      %v4179 = vld [vmem:[%s3 + $0x20] sm:$0xff]
      %v4180 = vld [vmem:[%s3 + $0x28] sm:$0xff]
      %v4181 = vld [vmem:[%s3 + $0x30] sm:$0xff]
      %v4182 = vld [vmem:[%s3 + $0x38] sm:$0xff]
      %v4183 = vld [vmem:[%s3 + $0x40] sm:$0xff]
      %v4184 = vld [vmem:[%s3 + $0x48] sm:$0xff]
      %v4185 = vld [vmem:[%s3 + $0x50] sm:$0xff]
      %v4186 = vld [vmem:[%s3 + $0x58] sm:$0xff]
      %v4187 = vld [vmem:[%s3 + $0x60] sm:$0xff]
      %v4188 = vld [vmem:[%s3 + $0x68] sm:$0xff]
      %v4189 = vld [vmem:[%s3 + $0x70] sm:$0xff]
      %v4190 = vld [vmem:[%s3 + $0x78] sm:$0xff]
      %v4191 = vld [vmem:[%s3 + $0x80] sm:$0xff]
      %v4192 = vld [vmem:[%s3 + $0x88] sm:$0xff]
      %v4193 = vld [vmem:[%s3 + $0x90] sm:$0xff]
      %v4194 = vld [vmem:[%s3 + $0x98] sm:$0xff]
      %v4195 = vld [vmem:[%s3 + $0xa0] sm:$0xff]
      %v4196 = vld [vmem:[%s3 + $0xa8] sm:$0xff]
      %v4197 = vld [vmem:[%s3 + $0xb0] sm:$0xff]
      %v4198 = vld [vmem:[%s3 + $0xb8] sm:$0xff]
      %v4199 = vld [vmem:[%s3 + $0xc0] sm:$0xff]
      %v4200 = vld [vmem:[%s3 + $0xc8] sm:$0xff]
      %v4201 = vld [vmem:[%s3 + $0xd0] sm:$0xff]
      %v4202 = vld [vmem:[%s3 + $0xd8] sm:$0xff]
      %v4203 = vld [vmem:[%s3 + $0xe0] sm:$0xff]
      %v4204 = vld [vmem:[%s3 + $0xe8] sm:$0xff]
      %v4205 = vld [vmem:[%s3 + $0xf0] sm:$0xff]
      %v4206 = vld [vmem:[%s3 + $0xf8] sm:$0xff]
      %v4207 = vld [vmem:[%s3 + $0x100] sm:$0xff]
      %v4208 = vld [vmem:[%s3 + $0x108] sm:$0xff]
      %v4209 = vld [vmem:[%s3 + $0x110] sm:$0xff]
      %v4210 = vld [vmem:[%s3 + $0x118] sm:$0xff]
      %v4211 = vld [vmem:[%s3 + $0x120] sm:$0xff]
      %v4212 = vld [vmem:[%s3 + $0x128] sm:$0xff]
      %v4213 = vld [vmem:[%s3 + $0x130] sm:$0xff]
      %v4214 = vld [vmem:[%s3 + $0x138] sm:$0xff]
      %v4215 = vld [vmem:[%s3 + $0x140] sm:$0xff]
      %4217 = vset.pattern.permute.xlu0 0
      %4218 = vperm.xlu0 %4217, %v4175
      %v4219 = vpop.permute.xlu0 %4218
      %4222 = vset.pattern.permute.xlu0 0
      %4223 = vperm.xlu0 %4222, %v4176
      %v4224 = vpop.permute.xlu0 %4223
      %4227 = vset.pattern.permute.xlu0 0
      %4228 = vperm.xlu0 %4227, %v4177
      %v4229 = vpop.permute.xlu0 %4228
      %4232 = vset.pattern.permute.xlu0 0
      %4233 = vperm.xlu0 %4232, %v4178
      %v4234 = vpop.permute.xlu0 %4233
      %4237 = vset.pattern.permute.xlu0 0
      %4238 = vperm.xlu0 %4237, %v4179
      %v4239 = vpop.permute.xlu0 %4238
      %4242 = vset.pattern.permute.xlu0 0
      %4243 = vperm.xlu0 %4242, %v4180
      %v4244 = vpop.permute.xlu0 %4243
      %4247 = vset.pattern.permute.xlu0 0
      %4248 = vperm.xlu0 %4247, %v4181
      %v4249 = vpop.permute.xlu0 %4248
      %4252 = vset.pattern.permute.xlu0 0
      %4253 = vperm.xlu0 %4252, %v4182
      %v4254 = vpop.permute.xlu0 %4253
      %4257 = vset.pattern.permute.xlu0 0
      %4258 = vperm.xlu0 %4257, %v4183
      %v4259 = vpop.permute.xlu0 %4258
      %4262 = vset.pattern.permute.xlu0 0
      %4263 = vperm.xlu0 %4262, %v4184
      %v4264 = vpop.permute.xlu0 %4263
      %4267 = vset.pattern.permute.xlu0 0
      %4268 = vperm.xlu0 %4267, %v4185
      %v4269 = vpop.permute.xlu0 %4268
      %4272 = vset.pattern.permute.xlu0 0
      %4273 = vperm.xlu0 %4272, %v4186
      %v4274 = vpop.permute.xlu0 %4273
      %4277 = vset.pattern.permute.xlu0 0
      %4278 = vperm.xlu0 %4277, %v4187
      %v4279 = vpop.permute.xlu0 %4278
      %4282 = vset.pattern.permute.xlu0 0
      %4283 = vperm.xlu0 %4282, %v4188
      %v4284 = vpop.permute.xlu0 %4283
      %4287 = vset.pattern.permute.xlu0 0
      %4288 = vperm.xlu0 %4287, %v4189
      %v4289 = vpop.permute.xlu0 %4288
      %4292 = vset.pattern.permute.xlu0 0
      %4293 = vperm.xlu0 %4292, %v4190
      %v4294 = vpop.permute.xlu0 %4293
      %4297 = vset.pattern.permute.xlu0 0
      %4298 = vperm.xlu0 %4297, %v4191
      %v4299 = vpop.permute.xlu0 %4298
      %4302 = vset.pattern.permute.xlu0 0
      %4303 = vperm.xlu0 %4302, %v4192
      %v4304 = vpop.permute.xlu0 %4303
      %4307 = vset.pattern.permute.xlu0 0
      %4308 = vperm.xlu0 %4307, %v4193
      %v4309 = vpop.permute.xlu0 %4308
      %4312 = vset.pattern.permute.xlu0 0
      %4313 = vperm.xlu0 %4312, %v4194
      %v4314 = vpop.permute.xlu0 %4313
      %4317 = vset.pattern.permute.xlu0 0
      %4318 = vperm.xlu0 %4317, %v4195
      %v4319 = vpop.permute.xlu0 %4318
      %4322 = vset.pattern.permute.xlu0 0
      %4323 = vperm.xlu0 %4322, %v4196
      %v4324 = vpop.permute.xlu0 %4323
      %4327 = vset.pattern.permute.xlu0 0
      %4328 = vperm.xlu0 %4327, %v4197
      %v4329 = vpop.permute.xlu0 %4328
      %4332 = vset.pattern.permute.xlu0 0
      %4333 = vperm.xlu0 %4332, %v4198
      %v4334 = vpop.permute.xlu0 %4333
      %4337 = vset.pattern.permute.xlu0 0
      %4338 = vperm.xlu0 %4337, %v4199
      %v4339 = vpop.permute.xlu0 %4338
      %4342 = vset.pattern.permute.xlu0 0
      %4343 = vperm.xlu0 %4342, %v4200
      %v4344 = vpop.permute.xlu0 %4343
      %4347 = vset.pattern.permute.xlu0 0
      %4348 = vperm.xlu0 %4347, %v4201
      %v4349 = vpop.permute.xlu0 %4348
      %4352 = vset.pattern.permute.xlu0 0
      %4353 = vperm.xlu0 %4352, %v4202
      %v4354 = vpop.permute.xlu0 %4353
      %4357 = vset.pattern.permute.xlu0 0
      %4358 = vperm.xlu0 %4357, %v4203
      %v4359 = vpop.permute.xlu0 %4358
      %4362 = vset.pattern.permute.xlu0 0
      %4363 = vperm.xlu0 %4362, %v4204
      %v4364 = vpop.permute.xlu0 %4363
      %4367 = vset.pattern.permute.xlu0 0
      %4368 = vperm.xlu0 %4367, %v4205
      %v4369 = vpop.permute.xlu0 %4368
      %4372 = vset.pattern.permute.xlu0 0
      %4373 = vperm.xlu0 %4372, %v4206
      %v4374 = vpop.permute.xlu0 %4373
      %4377 = vset.pattern.permute.xlu0 0
      %4378 = vperm.xlu0 %4377, %v4207
      %v4379 = vpop.permute.xlu0 %4378
      %4382 = vset.pattern.permute.xlu0 0
      %4383 = vperm.xlu0 %4382, %v4208
      %v4384 = vpop.permute.xlu0 %4383
      %4387 = vset.pattern.permute.xlu0 0
      %4388 = vperm.xlu0 %4387, %v4209
      %v4389 = vpop.permute.xlu0 %4388
      %4392 = vset.pattern.permute.xlu0 0
      %4393 = vperm.xlu0 %4392, %v4210
      %v4394 = vpop.permute.xlu0 %4393
      %4397 = vset.pattern.permute.xlu0 0
      %4398 = vperm.xlu0 %4397, %v4211
      %v4399 = vpop.permute.xlu0 %4398
      %4402 = vset.pattern.permute.xlu0 0
      %4403 = vperm.xlu0 %4402, %v4212
      %v4404 = vpop.permute.xlu0 %4403
      %4407 = vset.pattern.permute.xlu0 0
      %4408 = vperm.xlu0 %4407, %v4213
      %v4409 = vpop.permute.xlu0 %4408
      %4412 = vset.pattern.permute.xlu0 0
      %4413 = vperm.xlu0 %4412, %v4214
      %v4414 = vpop.permute.xlu0 %4413
      %4417 = vset.pattern.permute.xlu0 0
      %4418 = vperm.xlu0 %4417, %v4215
      %v4419 = vpop.permute.xlu0 %4418
      %v4421 = vmul.f32 %v4093, %v4219
      %v4422 = vmul.f32 %v4094, %v4224
      %v4423 = vmul.f32 %v4095, %v4229
      %v4424 = vmul.f32 %v4096, %v4234
      %v4425 = vmul.f32 %v4097, %v4239
      %v4426 = vmul.f32 %v4098, %v4244
      %v4427 = vmul.f32 %v4099, %v4249
      %v4428 = vmul.f32 %v4100, %v4254
      %v4429 = vmul.f32 %v4101, %v4259
      %v4430 = vmul.f32 %v4102, %v4264
      %v4431 = vmul.f32 %v4103, %v4269
      %v4432 = vmul.f32 %v4104, %v4274
      %v4433 = vmul.f32 %v4105, %v4279
      %v4434 = vmul.f32 %v4106, %v4284
      %v4435 = vmul.f32 %v4107, %v4289
      %v4436 = vmul.f32 %v4108, %v4294
      %v4437 = vmul.f32 %v4109, %v4299
      %v4438 = vmul.f32 %v4110, %v4304
      %v4439 = vmul.f32 %v4111, %v4309
      %v4440 = vmul.f32 %v4112, %v4314
      %v4441 = vmul.f32 %v4113, %v4319
      %v4442 = vmul.f32 %v4114, %v4324
      %v4443 = vmul.f32 %v4115, %v4329
      %v4444 = vmul.f32 %v4116, %v4334
      %v4445 = vmul.f32 %v4117, %v4339
      %v4446 = vmul.f32 %v4118, %v4344
      %v4447 = vmul.f32 %v4119, %v4349
      %v4448 = vmul.f32 %v4120, %v4354
      %v4449 = vmul.f32 %v4121, %v4359
      %v4450 = vmul.f32 %v4122, %v4364
      %v4451 = vmul.f32 %v4123, %v4369
      %v4452 = vmul.f32 %v4124, %v4374
      %v4453 = vmul.f32 %v4125, %v4379
      %v4454 = vmul.f32 %v4126, %v4384
      %v4455 = vmul.f32 %v4127, %v4389
      %v4456 = vmul.f32 %v4128, %v4394
      %v4457 = vmul.f32 %v4129, %v4399
      %v4458 = vmul.f32 %v4130, %v4404
      %v4459 = vmul.f32 %v4131, %v4409
      %v4460 = vmul.f32 %v4132, %v4414
      %v4461 = vmul.f32 %v4133, %v4419
      %v4462 = vadd.f32 %v4421, %v4422
      %v4463 = vadd.f32 %v4462, %v4423
      %v4464 = vadd.f32 %v4463, %v4424
      %v4465 = vadd.f32 %v4464, %v4425
      %v4466 = vadd.f32 %v4465, %v4426
      %v4467 = vadd.f32 %v4466, %v4427
      %v4468 = vadd.f32 %v4467, %v4428
      %v4469 = vadd.f32 %v4468, %v4429
      %v4470 = vadd.f32 %v4469, %v4430
      %v4471 = vadd.f32 %v4470, %v4431
      %v4472 = vadd.f32 %v4471, %v4432
      %v4473 = vadd.f32 %v4472, %v4433
      %v4474 = vadd.f32 %v4473, %v4434
      %v4475 = vadd.f32 %v4474, %v4435
      %v4476 = vadd.f32 %v4475, %v4436
      %v4477 = vadd.f32 %v4476, %v4437
      %v4478 = vadd.f32 %v4477, %v4438
      %v4479 = vadd.f32 %v4478, %v4439
      %v4480 = vadd.f32 %v4479, %v4440
      %v4481 = vadd.f32 %v4480, %v4441
      %v4482 = vadd.f32 %v4481, %v4442
      %v4483 = vadd.f32 %v4482, %v4443
      %v4484 = vadd.f32 %v4483, %v4444
      %v4485 = vadd.f32 %v4484, %v4445
      %v4486 = vadd.f32 %v4485, %v4446
      %v4487 = vadd.f32 %v4486, %v4447
      %v4488 = vadd.f32 %v4487, %v4448
      %v4489 = vadd.f32 %v4488, %v4449
      %v4490 = vadd.f32 %v4489, %v4450
      %v4491 = vadd.f32 %v4490, %v4451
      %v4492 = vadd.f32 %v4491, %v4452
      %v4493 = vadd.f32 %v4492, %v4453
      %v4494 = vadd.f32 %v4493, %v4454
      %v4495 = vadd.f32 %v4494, %v4455
      %v4496 = vadd.f32 %v4495, %v4456
      %v4497 = vadd.f32 %v4496, %v4457
      %v4498 = vadd.f32 %v4497, %v4458
      %v4499 = vadd.f32 %v4498, %v4459
      %v4500 = vadd.f32 %v4499, %v4460
      %v4501 = vadd.f32 %v4500, %v4461
      %v4502 = vrot.slane %v4501, 4
      %v4503 = vadd.f32 %v4501, %v4502
      %v4504 = vrot.slane %v4503, 2
      %v4505 = vadd.f32 %v4503, %v4504
      %v4506 = vrot.slane %v4505, 1
      %v4507 = vadd.f32 %v4505, %v4506
      %4508 = vst [vmem:[%s265] sm:$0x1] %v4507
      %v4509 = vmul.f32 %v4421, %v4093
      %v4510 = vmul.f32 %v4422, %v4094
      %v4511 = vmul.f32 %v4423, %v4095
      %v4512 = vmul.f32 %v4424, %v4096
      %v4513 = vmul.f32 %v4425, %v4097
      %v4514 = vmul.f32 %v4426, %v4098
      %v4515 = vmul.f32 %v4427, %v4099
      %v4516 = vmul.f32 %v4428, %v4100
      %v4517 = vmul.f32 %v4429, %v4101
      %v4518 = vmul.f32 %v4430, %v4102
      %v4519 = vmul.f32 %v4431, %v4103
      %v4520 = vmul.f32 %v4432, %v4104
      %v4521 = vmul.f32 %v4433, %v4105
      %v4522 = vmul.f32 %v4434, %v4106
      %v4523 = vmul.f32 %v4435, %v4107
      %v4524 = vmul.f32 %v4436, %v4108
      %v4525 = vmul.f32 %v4437, %v4109
      %v4526 = vmul.f32 %v4438, %v4110
      %v4527 = vmul.f32 %v4439, %v4111
      %v4528 = vmul.f32 %v4440, %v4112
      %v4529 = vmul.f32 %v4441, %v4113
      %v4530 = vmul.f32 %v4442, %v4114
      %v4531 = vmul.f32 %v4443, %v4115
      %v4532 = vmul.f32 %v4444, %v4116
      %v4533 = vmul.f32 %v4445, %v4117
      %v4534 = vmul.f32 %v4446, %v4118
      %v4535 = vmul.f32 %v4447, %v4119
      %v4536 = vmul.f32 %v4448, %v4120
      %v4537 = vmul.f32 %v4449, %v4121
      %v4538 = vmul.f32 %v4450, %v4122
      %v4539 = vmul.f32 %v4451, %v4123
      %v4540 = vmul.f32 %v4452, %v4124
      %v4541 = vmul.f32 %v4453, %v4125
      %v4542 = vmul.f32 %v4454, %v4126
      %v4543 = vmul.f32 %v4455, %v4127
      %v4544 = vmul.f32 %v4456, %v4128
      %v4545 = vmul.f32 %v4457, %v4129
      %v4546 = vmul.f32 %v4458, %v4130
      %v4547 = vmul.f32 %v4459, %v4131
      %v4548 = vmul.f32 %v4460, %v4132
      %v4549 = vmul.f32 %v4461, %v4133
      %v4550 = vadd.f32 %v4509, %v4510
      %v4551 = vadd.f32 %v4550, %v4511
      %v4552 = vadd.f32 %v4551, %v4512
      %v4553 = vadd.f32 %v4552, %v4513
      %v4554 = vadd.f32 %v4553, %v4514
      %v4555 = vadd.f32 %v4554, %v4515
      %v4556 = vadd.f32 %v4555, %v4516
      %v4557 = vadd.f32 %v4556, %v4517
      %v4558 = vadd.f32 %v4557, %v4518
      %v4559 = vadd.f32 %v4558, %v4519
      %v4560 = vadd.f32 %v4559, %v4520
      %v4561 = vadd.f32 %v4560, %v4521
      %v4562 = vadd.f32 %v4561, %v4522
      %v4563 = vadd.f32 %v4562, %v4523
      %v4564 = vadd.f32 %v4563, %v4524
      %v4565 = vadd.f32 %v4564, %v4525
      %v4566 = vadd.f32 %v4565, %v4526
      %v4567 = vadd.f32 %v4566, %v4527
      %v4568 = vadd.f32 %v4567, %v4528
      %v4569 = vadd.f32 %v4568, %v4529
      %v4570 = vadd.f32 %v4569, %v4530
      %v4571 = vadd.f32 %v4570, %v4531
      %v4572 = vadd.f32 %v4571, %v4532
      %v4573 = vadd.f32 %v4572, %v4533
      %v4574 = vadd.f32 %v4573, %v4534
      %v4575 = vadd.f32 %v4574, %v4535
      %v4576 = vadd.f32 %v4575, %v4536
      %v4577 = vadd.f32 %v4576, %v4537
      %v4578 = vadd.f32 %v4577, %v4538
      %v4579 = vadd.f32 %v4578, %v4539
      %v4580 = vadd.f32 %v4579, %v4540
      %v4581 = vadd.f32 %v4580, %v4541
      %v4582 = vadd.f32 %v4581, %v4542
      %v4583 = vadd.f32 %v4582, %v4543
      %v4584 = vadd.f32 %v4583, %v4544
      %v4585 = vadd.f32 %v4584, %v4545
      %v4586 = vadd.f32 %v4585, %v4546
      %v4587 = vadd.f32 %v4586, %v4547
      %v4588 = vadd.f32 %v4587, %v4548
      %v4589 = vadd.f32 %v4588, %v4549
      %v4590 = vrot.slane %v4589, 4
      %v4591 = vadd.f32 %v4589, %v4590
      %v4592 = vrot.slane %v4591, 2
      %v4593 = vadd.f32 %v4591, %v4592
      %v4594 = vrot.slane %v4593, 1
      %v4595 = vadd.f32 %v4593, %v4594
      %4596 = vst [vmem:[%s268] sm:$0x1] %v4595
      %p4597 = scmp.lt.s32.totalorder %s18, 1
      %s4598 = scalar_select %p4597, %s18, 1
      %s4599 = smul.addr %s4598, 41
      %s4600 = smul.addr %s4599, 8
      %s4601 = scalar_lea.vmem %s4, %s4600
      %p4602 = scmp.lt.s32.totalorder %s18, 1
      %s4603 = scalar_select %p4602, %s18, 1
      %s4604 = scalar_lea.vmem %s5, %s4603
      %p4605 = scmp.lt.s32.totalorder %s18, 1
      %s4606 = scalar_select %p4605, %s18, 1
      %s4607 = scalar_lea.vmem %s6, %s4606
      // Predicated region
      $region37: #{conv_block_forward.2} parent=35 // pred_check
        %p4608 = pneg %p125
      $region38: #{conv_block_forward.2} parent=35 // pred_check_branch
        %4610 = sbr.rel (%p4608) target = $region40
      $region39: #{conv_block_forward.2} parent=35 // pred_region
        _
      $region40: #{conv_block_forward.2} parent=35 // pred_fallthru
        _
      // Predicated region
      $region41: #{conv_block_forward.2} parent=35 // pred_check
        %p4611 = pneg %p151
      $region42: #{conv_block_forward.2} parent=35 // pred_check_branch
        %4613 = sbr.rel (%p4611) target = $region44
      $region43: #{conv_block_forward.2} parent=35 // pred_region
        _
      $region44: #{conv_block_forward.2} parent=35 // pred_fallthru
        _
      // Predicated region
      $region45: #{conv_block_forward.2} parent=35 // pred_check
        %p4614 = pneg %p177
      $region46: #{conv_block_forward.2} parent=35 // pred_check_branch
        %4616 = sbr.rel (%p4614) target = $region48
      $region47: #{conv_block_forward.2} parent=35 // pred_region
        _
      $region48: #{conv_block_forward.2} parent=35 // pred_fallthru
        _
    $region36: #{conv_block_forward.2} parent=5 // pred_fallthru
      _
    %p4617 = scmp.le.s32.totalorder 2, %s13
    // Predicated region
    $region49: #{conv_block_forward.2} parent=5 // pred_check
      %p4618 = pneg %p4617
    $region50: #{conv_block_forward.2} parent=5 // pred_check_branch
      %4620 = sbr.rel (%p4618) target = $region52
    $region51: #{conv_block_forward.2} parent=5 // pred_region
      %s4621 = ssub.s32 %s13, 2
      // Predicated region
      $region53: #{conv_block_forward.2} parent=51 // pred_check
        %p4622 = pneg %p131
      $region54: #{conv_block_forward.2} parent=51 // pred_check_branch
        %4624 = sbr.rel (%p4622) target = $region56
      $region55: #{conv_block_forward.2} parent=51 // pred_region
        %p4625 = scmp.lt.s32.totalorder %s19, 1
        %s4626 = scalar_select %p4625, %s19, 1
        %s4627 = smul.addr %s4626, 41
        %s4628 = smul.addr %s4627, 8
        %s4629 = scalar_lea.vmem %s4, %s4628
      $region56: #{conv_block_forward.2} parent=51 // pred_fallthru
        _
      // Predicated region
      $region57: #{conv_block_forward.2} parent=51 // pred_check
        %p4630 = pneg %p157
      $region58: #{conv_block_forward.2} parent=51 // pred_check_branch
        %4632 = sbr.rel (%p4630) target = $region60
      $region59: #{conv_block_forward.2} parent=51 // pred_region
        %p4633 = scmp.lt.s32.totalorder %s19, 1
        %s4634 = scalar_select %p4633, %s19, 1
        %s4635 = scalar_lea.vmem %s5, %s4634
      $region60: #{conv_block_forward.2} parent=51 // pred_fallthru
        _
      // Predicated region
      $region61: #{conv_block_forward.2} parent=51 // pred_check
        %p4636 = pneg %p183
      $region62: #{conv_block_forward.2} parent=51 // pred_check_branch
        %4638 = sbr.rel (%p4636) target = $region64
      $region63: #{conv_block_forward.2} parent=51 // pred_region
        %p4639 = scmp.lt.s32.totalorder %s19, 1
        %s4640 = scalar_select %p4639, %s19, 1
        %s4641 = scalar_lea.vmem %s6, %s4640
      $region64: #{conv_block_forward.2} parent=51 // pred_fallthru
        _
    $region52: #{conv_block_forward.2} parent=5 // pred_fallthru
      _
  $region6: #{conv_block_forward.2} parent=0 // loop_footer
    %s17 = sadd.s32 1, %s13
  $region7: #{conv_block_forward.2} parent=0 // loop_footer_branch
    %12 = sbr.rel target = $region3
  $region8: #{conv_block_forward.2} parent=0 // loop_exit
    _

</llo_original>
